<compile_context>
chip_gen: v7x
topology: tpu7x:2x2x1
jax: 0.10.0
libtpu: 0.0.40
codegen_flags: <defaults>
</compile_context>

<pallas_src>
import math
import jax
import jax.numpy as jnp
from jax import lax
from jax.experimental import pallas as pl
from jax.experimental.pallas import tpu as pltpu


# -----------------------------------------------------------------------------
# Pallas kernel: embedding gather + LSTM recurrence + Linear(128, 1) head.
#
#   ids_ref  : SMEM (S*B,) int32   — time-major flattened token ids
#   embed_ref: HBM  (vocab, I) f32 — stand-in "BERT" table (raw ref, manual DMA)
#   wih_ref  : VMEM (I, 4H) bf16
#   whh_ref  : VMEM (H, 4H) bf16
#   b_ref    : VMEM (1, 4H) f32    — b_ih + b_hh folded together
#   wfc_ref  : VMEM (1, H)  f32    — pruned fc weight row
#   bfc_ref  : SMEM (1,)    f32
#   out_ref  : VMEM (B, 1)  f32
#   xbuf     : VMEM (S*B, I) f32 scratch (gather destination)
#   sems     : DMA semaphores, one per gathered row
# -----------------------------------------------------------------------------
def bert_lstm_kernel(ids_ref, embed_ref, wih_ref, whh_ref, b_ref, wfc_ref,
                     bfc_ref, out_ref, xbuf, sems):
    SB, I = xbuf.shape
    H = whh_ref.shape[0]
    B = out_ref.shape[0]
    S = SB // B

    # --- fused embedding gather (stand-in for BERT last_hidden_state) -------
    # One small row DMA per token, all issued before any wait so they overlap.
    copies = []
    for r in range(SB):
        cp = pltpu.make_async_copy(
            embed_ref.at[pl.ds(ids_ref[r], 1), :],   # (1, I) row in HBM
            xbuf.at[pl.ds(r, 1), :],                 # (1, I) row in VMEM
            sems.at[r])
        cp.start()
        copies.append(cp)
    for cp in copies:
        cp.wait()

    # --- hoisted input projection: one (S*B, I) @ (I, 4H) bf16 MXU matmul ---
    # Bias (b_ih + b_hh) folded in; accumulation + gate math stay in f32.
    x_bf16 = xbuf[...].astype(jnp.bfloat16)
    x_gates = (jnp.dot(x_bf16, wih_ref[...],
                       preferred_element_type=jnp.float32)
               + b_ref[...])                                   # (S*B, 4H) f32

    h = jnp.zeros((B, H), jnp.float32)
    c = jnp.zeros((B, H), jnp.float32)

    # --- fully unrolled recurrence (S is static and small) ------------------
    # W_hh is re-read from VMEM inside each dot (no huge live value / spills);
    # only h @ W_hh stays on the serial critical path.
    for t in range(S):
        gates = x_gates[t * B:(t + 1) * B, :] + jnp.dot(
            h.astype(jnp.bfloat16), whh_ref[...],
            preferred_element_type=jnp.float32)                # (B, 4H) f32
        # PyTorch gate order: i, f, g, o — each slice is 128 lanes (aligned).
        i_g = jax.nn.sigmoid(gates[:, 0 * H:1 * H])
        f_g = jax.nn.sigmoid(gates[:, 1 * H:2 * H])
        g_g = jnp.tanh(gates[:, 2 * H:3 * H])
        o_g = jax.nn.sigmoid(gates[:, 3 * H:4 * H])
        c = f_g * c + i_g * g_g
        h = o_g * jnp.tanh(c)

    # --- fc head on the last timestep (lstm_out[:, -1, :] == h) -------------
    # N=1 output: VPU multiply + lane reduction instead of a 1-column MXU dot.
    out_ref[...] = (jnp.sum(h * wfc_ref[...], axis=-1, keepdims=True)
                    + bfc_ref[0])                              # (B, 1)


# -----------------------------------------------------------------------------
# Parameter construction (deterministic; mirrors nn.LSTM / nn.Linear init and
# the PruningMixin's 40% L1-unstructured pruning of Linear weights).
# -----------------------------------------------------------------------------
def prune_l1(w, amount=0.4):
    """Mimic torch.nn.utils.prune.l1_unstructured: zero the smallest-|w| 40%."""
    flat = w.ravel()
    k = int(round(amount * flat.size))
    order = jnp.argsort(jnp.abs(flat))
    mask = jnp.ones_like(flat).at[order[:k]].set(0.0)
    return (flat * mask).reshape(w.shape)


def make_params(key, input_dim, hidden, out_dim, vocab):
    ks = jax.random.split(key, 7)

    def uniform(k, shape, bound):
        return jax.random.uniform(k, shape, jnp.float32, -bound, bound)

    # nn.LSTM: U(-1/sqrt(H), 1/sqrt(H))
    kb = 1.0 / math.sqrt(hidden)
    w_ih = uniform(ks[0], (4 * hidden, input_dim), kb)
    w_hh = uniform(ks[1], (4 * hidden, hidden), kb)
    b_ih = uniform(ks[2], (4 * hidden,), kb)
    b_hh = uniform(ks[3], (4 * hidden,), kb)

    # nn.Linear(128, 1): U(-1/sqrt(128), 1/sqrt(128)), then 40% L1 pruning.
    bound = 1.0 / math.sqrt(hidden)
    w_fc = prune_l1(uniform(ks[4], (out_dim, hidden), bound))   # (1, H)
    b_fc = uniform(ks[5], (out_dim,), bound)                    # (1,)

    # Stand-in "BERT" embedding table (deterministic), kept f32 in HBM;
    # gathered rows are cast to bf16 at the MXU dot inside the kernel.
    embed = jax.random.normal(ks[6], (vocab, input_dim), jnp.float32) * 0.02

    return {
        "w_ih_t": w_ih.T.astype(jnp.bfloat16),     # (I, 4H) bf16
        "w_hh_t": w_hh.T.astype(jnp.bfloat16),     # (H, 4H) bf16
        "b_lstm": (b_ih + b_hh)[None, :],          # (1, 4H) f32
        "w_fc_row": w_fc,                          # (1, H)  f32
        "b_fc": b_fc,                              # (1,)    f32
        "embed": embed,                            # (vocab, I) f32
    }


# -----------------------------------------------------------------------------
# Wrapper around pallas_call
# -----------------------------------------------------------------------------
def bert_lstm_forward(input_ids, attention_mask, p):
    # TODO(synk): pretrained BertModel('bert-base-uncased') is not translatable
    # to a from-scratch Pallas kernel; a deterministic embedding lookup stands
    # in for outputs.last_hidden_state (attention_mask is only consumed inside
    # BERT's self-attention, so it is unused here).
    del attention_mask

    B, S = input_ids.shape
    I = p["embed"].shape[1]
    O = p["w_fc_row"].shape[0]

    # Time-major flat id order so that x_gates row t*B + b is (time t, batch b).
    ids_flat = input_ids.T.reshape(-1).astype(jnp.int32)        # (S*B,)

    smem = pl.BlockSpec(memory_space=pltpu.MemorySpace.SMEM)
    vmem = pl.BlockSpec(memory_space=pltpu.MemorySpace.VMEM)
    hbm = pl.BlockSpec(memory_space=pl.ANY)

    out = pl.pallas_call(
        bert_lstm_kernel,
        out_shape=jax.ShapeDtypeStruct((B, O), jnp.float32),
        in_specs=[smem, hbm, vmem, vmem, vmem, vmem, smem],
        out_specs=vmem,
        scratch_shapes=[
            pltpu.VMEM((S * B, I), jnp.float32),      # gathered activations
            pltpu.SemaphoreType.DMA((S * B,)),        # one sem per gathered row
        ],
    )(ids_flat, p["embed"], p["w_ih_t"], p["w_hh_t"], p["b_lstm"],
      p["w_fc_row"], p["b_fc"])
    return out


# -----------------------------------------------------------------------------
# Pure-JAX reference (same bf16 matmul operands / f32 accumulation) for a
# correctness sanity check.
# -----------------------------------------------------------------------------
def ref_forward(input_ids, attention_mask, p):
    del attention_mask
    x = jnp.take(p["embed"], input_ids, axis=0)                 # (B, S, I) f32
    B, S, I = x.shape
    H = p["w_hh_t"].shape[0]

    def step(carry, x_t):
        h, c = carry
        gates = (jnp.dot(x_t.astype(jnp.bfloat16), p["w_ih_t"],
                         preferred_element_type=jnp.float32)
                 + p["b_lstm"]
                 + jnp.dot(h.astype(jnp.bfloat16), p["w_hh_t"],
                           preferred_element_type=jnp.float32))
        i_g = jax.nn.sigmoid(gates[:, 0 * H:1 * H])
        f_g = jax.nn.sigmoid(gates[:, 1 * H:2 * H])
        g_g = jnp.tanh(gates[:, 2 * H:3 * H])
        o_g = jax.nn.sigmoid(gates[:, 3 * H:4 * H])
        c_new = f_g * c + i_g * g_g
        h_new = o_g * jnp.tanh(c_new)
        return (h_new, c_new), None

    h0 = jnp.zeros((B, H), jnp.float32)
    c0 = jnp.zeros((B, H), jnp.float32)
    (h_last, _), _ = lax.scan(step, (h0, c0), jnp.transpose(x, (1, 0, 2)))
    return (jnp.sum(h_last * p["w_fc_row"], axis=-1, keepdims=True)
            + p["b_fc"][0])


if __name__ == "__main__":
    # BERT_LSTM_Model: bert hidden 768 -> LSTM hidden 128 -> Linear(128, 1)
    batch, seq = 2, 8
    input_dim, hidden, out_dim, vocab = 768, 128, 1, 1000

    key = jax.random.PRNGKey(0)
    kids, kp = jax.random.split(key)
    input_ids = jax.random.randint(kids, (batch, seq), 0, vocab, dtype=jnp.int32)
    attention_mask = jnp.ones((batch, seq), jnp.int32)
    params = make_params(kp, input_dim, hidden, out_dim, vocab)

    logits = jax.jit(bert_lstm_forward)(input_ids, attention_mask, params)
    jax.block_until_ready(logits)

    logits_ref = ref_forward(input_ids, attention_mask, params)
    assert logits.shape == (batch, out_dim)
    assert jnp.allclose(logits, logits_ref, atol=2e-3, rtol=2e-3), (logits, logits_ref)

    print("KERNEL_OK")
</pallas_src>

<mosaic_0001>
module attributes {stable_mosaic.version = 11 : i64} {
  func.func @bert_lstm_kernel(%arg0: memref<16xi32, #tpu.memory_space<smem>>, %arg1: memref<1000x768xf32, #tpu.memory_space<any>>, %arg2: memref<768x512xbf16, #tpu.memory_space<vmem>>, %arg3: memref<128x512xbf16, #tpu.memory_space<vmem>>, %arg4: memref<1x512xf32, #tpu.memory_space<vmem>>, %arg5: memref<1x128xf32, #tpu.memory_space<vmem>>, %arg6: memref<1xf32, #tpu.memory_space<smem>>, %arg7: memref<2x1xf32, #tpu.memory_space<vmem>>, %arg8: memref<16x768xf32, #tpu.memory_space<vmem>>, %arg9: memref<16x!tpu.dma_semaphore, #tpu.memory_space<semaphore_mem>>) attributes {dimension_semantics = [], scalar_prefetch = 0 : i64, scratch_operands = 2 : i64, tpu.core_type = #tpu.core_type<tc>} {
    %c0 = arith.constant 0 : index
    %0 = memref.load %arg0[%c0] : memref<16xi32, #tpu.memory_space<smem>>
    %c0_i32 = arith.constant 0 : i32
    %c0_i32_0 = arith.constant 0 : i32
    %1 = tpu.memref_slice %arg1[%0, %c0_i32_0] : memref<1000x768xf32, #tpu.memory_space<any>> -> memref<1x768xf32, #tpu.memory_space<any>>
    %c0_i32_1 = arith.constant 0 : i32
    %c0_i32_2 = arith.constant 0 : i32
    %2 = tpu.memref_slice %arg8[%c0_i32_1, %c0_i32_2] : memref<16x768xf32, #tpu.memory_space<vmem>> -> memref<1x768xf32, #tpu.memory_space<vmem>>
    %3 = tpu.memref_slice %arg9[%c0_i32] : memref<16x!tpu.dma_semaphore, #tpu.memory_space<semaphore_mem>> -> memref<1x!tpu.dma_semaphore, #tpu.memory_space<semaphore_mem>>
    %4 = tpu.memref_squeeze %3 : memref<1x!tpu.dma_semaphore, #tpu.memory_space<semaphore_mem>> -> memref<!tpu.dma_semaphore, #tpu.memory_space<semaphore_mem>>
    tpu.enqueue_dma source(%1 : memref<1x768xf32, #tpu.memory_space<any>>) target(%2 : memref<1x768xf32, #tpu.memory_space<vmem>>) target_semaphore(%4 : memref<!tpu.dma_semaphore, #tpu.memory_space<semaphore_mem>>)
    %c1 = arith.constant 1 : index
    %5 = memref.load %arg0[%c1] : memref<16xi32, #tpu.memory_space<smem>>
    %c1_i32 = arith.constant 1 : i32
    %c0_i32_3 = arith.constant 0 : i32
    %6 = tpu.memref_slice %arg1[%5, %c0_i32_3] : memref<1000x768xf32, #tpu.memory_space<any>> -> memref<1x768xf32, #tpu.memory_space<any>>
    %c1_i32_4 = arith.constant 1 : i32
    %c0_i32_5 = arith.constant 0 : i32
    %7 = tpu.memref_slice %arg8[%c1_i32_4, %c0_i32_5] : memref<16x768xf32, #tpu.memory_space<vmem>> -> memref<1x768xf32, #tpu.memory_space<vmem>>
    %8 = tpu.memref_slice %arg9[%c1_i32] : memref<16x!tpu.dma_semaphore, #tpu.memory_space<semaphore_mem>> -> memref<1x!tpu.dma_semaphore, #tpu.memory_space<semaphore_mem>>
    %9 = tpu.memref_squeeze %8 : memref<1x!tpu.dma_semaphore, #tpu.memory_space<semaphore_mem>> -> memref<!tpu.dma_semaphore, #tpu.memory_space<semaphore_mem>>
    tpu.enqueue_dma source(%6 : memref<1x768xf32, #tpu.memory_space<any>>) target(%7 : memref<1x768xf32, #tpu.memory_space<vmem>>) target_semaphore(%9 : memref<!tpu.dma_semaphore, #tpu.memory_space<semaphore_mem>>)
    %c2 = arith.constant 2 : index
    %10 = memref.load %arg0[%c2] : memref<16xi32, #tpu.memory_space<smem>>
    %c2_i32 = arith.constant 2 : i32
    %c0_i32_6 = arith.constant 0 : i32
    %11 = tpu.memref_slice %arg1[%10, %c0_i32_6] : memref<1000x768xf32, #tpu.memory_space<any>> -> memref<1x768xf32, #tpu.memory_space<any>>
    %c2_i32_7 = arith.constant 2 : i32
    %c0_i32_8 = arith.constant 0 : i32
    %12 = tpu.memref_slice %arg8[%c2_i32_7, %c0_i32_8] : memref<16x768xf32, #tpu.memory_space<vmem>> -> memref<1x768xf32, #tpu.memory_space<vmem>>
    %13 = tpu.memref_slice %arg9[%c2_i32] : memref<16x!tpu.dma_semaphore, #tpu.memory_space<semaphore_mem>> -> memref<1x!tpu.dma_semaphore, #tpu.memory_space<semaphore_mem>>
    %14 = tpu.memref_squeeze %13 : memref<1x!tpu.dma_semaphore, #tpu.memory_space<semaphore_mem>> -> memref<!tpu.dma_semaphore, #tpu.memory_space<semaphore_mem>>
    tpu.enqueue_dma source(%11 : memref<1x768xf32, #tpu.memory_space<any>>) target(%12 : memref<1x768xf32, #tpu.memory_space<vmem>>) target_semaphore(%14 : memref<!tpu.dma_semaphore, #tpu.memory_space<semaphore_mem>>)
    %c3 = arith.constant 3 : index
    %15 = memref.load %arg0[%c3] : memref<16xi32, #tpu.memory_space<smem>>
    %c3_i32 = arith.constant 3 : i32
    %c0_i32_9 = arith.constant 0 : i32
    %16 = tpu.memref_slice %arg1[%15, %c0_i32_9] : memref<1000x768xf32, #tpu.memory_space<any>> -> memref<1x768xf32, #tpu.memory_space<any>>
    %c3_i32_10 = arith.constant 3 : i32
    %c0_i32_11 = arith.constant 0 : i32
    %17 = tpu.memref_slice %arg8[%c3_i32_10, %c0_i32_11] : memref<16x768xf32, #tpu.memory_space<vmem>> -> memref<1x768xf32, #tpu.memory_space<vmem>>
    %18 = tpu.memref_slice %arg9[%c3_i32] : memref<16x!tpu.dma_semaphore, #tpu.memory_space<semaphore_mem>> -> memref<1x!tpu.dma_semaphore, #tpu.memory_space<semaphore_mem>>
    %19 = tpu.memref_squeeze %18 : memref<1x!tpu.dma_semaphore, #tpu.memory_space<semaphore_mem>> -> memref<!tpu.dma_semaphore, #tpu.memory_space<semaphore_mem>>
    tpu.enqueue_dma source(%16 : memref<1x768xf32, #tpu.memory_space<any>>) target(%17 : memref<1x768xf32, #tpu.memory_space<vmem>>) target_semaphore(%19 : memref<!tpu.dma_semaphore, #tpu.memory_space<semaphore_mem>>)
    %c4 = arith.constant 4 : index
    %20 = memref.load %arg0[%c4] : memref<16xi32, #tpu.memory_space<smem>>
    %c4_i32 = arith.constant 4 : i32
    %c0_i32_12 = arith.constant 0 : i32
    %21 = tpu.memref_slice %arg1[%20, %c0_i32_12] : memref<1000x768xf32, #tpu.memory_space<any>> -> memref<1x768xf32, #tpu.memory_space<any>>
    %c4_i32_13 = arith.constant 4 : i32
    %c0_i32_14 = arith.constant 0 : i32
    %22 = tpu.memref_slice %arg8[%c4_i32_13, %c0_i32_14] : memref<16x768xf32, #tpu.memory_space<vmem>> -> memref<1x768xf32, #tpu.memory_space<vmem>>
    %23 = tpu.memref_slice %arg9[%c4_i32] : memref<16x!tpu.dma_semaphore, #tpu.memory_space<semaphore_mem>> -> memref<1x!tpu.dma_semaphore, #tpu.memory_space<semaphore_mem>>
    %24 = tpu.memref_squeeze %23 : memref<1x!tpu.dma_semaphore, #tpu.memory_space<semaphore_mem>> -> memref<!tpu.dma_semaphore, #tpu.memory_space<semaphore_mem>>
    tpu.enqueue_dma source(%21 : memref<1x768xf32, #tpu.memory_space<any>>) target(%22 : memref<1x768xf32, #tpu.memory_space<vmem>>) target_semaphore(%24 : memref<!tpu.dma_semaphore, #tpu.memory_space<semaphore_mem>>)
    %c5 = arith.constant 5 : index
    %25 = memref.load %arg0[%c5] : memref<16xi32, #tpu.memory_space<smem>>
    %c5_i32 = arith.constant 5 : i32
    %c0_i32_15 = arith.constant 0 : i32
    %26 = tpu.memref_slice %arg1[%25, %c0_i32_15] : memref<1000x768xf32, #tpu.memory_space<any>> -> memref<1x768xf32, #tpu.memory_space<any>>
    %c5_i32_16 = arith.constant 5 : i32
    %c0_i32_17 = arith.constant 0 : i32
    %27 = tpu.memref_slice %arg8[%c5_i32_16, %c0_i32_17] : memref<16x768xf32, #tpu.memory_space<vmem>> -> memref<1x768xf32, #tpu.memory_space<vmem>>
    %28 = tpu.memref_slice %arg9[%c5_i32] : memref<16x!tpu.dma_semaphore, #tpu.memory_space<semaphore_mem>> -> memref<1x!tpu.dma_semaphore, #tpu.memory_space<semaphore_mem>>
    %29 = tpu.memref_squeeze %28 : memref<1x!tpu.dma_semaphore, #tpu.memory_space<semaphore_mem>> -> memref<!tpu.dma_semaphore, #tpu.memory_space<semaphore_mem>>
    tpu.enqueue_dma source(%26 : memref<1x768xf32, #tpu.memory_space<any>>) target(%27 : memref<1x768xf32, #tpu.memory_space<vmem>>) target_semaphore(%29 : memref<!tpu.dma_semaphore, #tpu.memory_space<semaphore_mem>>)
    %c6 = arith.constant 6 : index
    %30 = memref.load %arg0[%c6] : memref<16xi32, #tpu.memory_space<smem>>
    %c6_i32 = arith.constant 6 : i32
    %c0_i32_18 = arith.constant 0 : i32
    %31 = tpu.memref_slice %arg1[%30, %c0_i32_18] : memref<1000x768xf32, #tpu.memory_space<any>> -> memref<1x768xf32, #tpu.memory_space<any>>
    %c6_i32_19 = arith.constant 6 : i32
    %c0_i32_20 = arith.constant 0 : i32
    %32 = tpu.memref_slice %arg8[%c6_i32_19, %c0_i32_20] : memref<16x768xf32, #tpu.memory_space<vmem>> -> memref<1x768xf32, #tpu.memory_space<vmem>>
    %33 = tpu.memref_slice %arg9[%c6_i32] : memref<16x!tpu.dma_semaphore, #tpu.memory_space<semaphore_mem>> -> memref<1x!tpu.dma_semaphore, #tpu.memory_space<semaphore_mem>>
    %34 = tpu.memref_squeeze %33 : memref<1x!tpu.dma_semaphore, #tpu.memory_space<semaphore_mem>> -> memref<!tpu.dma_semaphore, #tpu.memory_space<semaphore_mem>>
    tpu.enqueue_dma source(%31 : memref<1x768xf32, #tpu.memory_space<any>>) target(%32 : memref<1x768xf32, #tpu.memory_space<vmem>>) target_semaphore(%34 : memref<!tpu.dma_semaphore, #tpu.memory_space<semaphore_mem>>)
    %c7 = arith.constant 7 : index
    %35 = memref.load %arg0[%c7] : memref<16xi32, #tpu.memory_space<smem>>
    %c7_i32 = arith.constant 7 : i32
    %c0_i32_21 = arith.constant 0 : i32
    %36 = tpu.memref_slice %arg1[%35, %c0_i32_21] : memref<1000x768xf32, #tpu.memory_space<any>> -> memref<1x768xf32, #tpu.memory_space<any>>
    %c7_i32_22 = arith.constant 7 : i32
    %c0_i32_23 = arith.constant 0 : i32
    %37 = tpu.memref_slice %arg8[%c7_i32_22, %c0_i32_23] : memref<16x768xf32, #tpu.memory_space<vmem>> -> memref<1x768xf32, #tpu.memory_space<vmem>>
    %38 = tpu.memref_slice %arg9[%c7_i32] : memref<16x!tpu.dma_semaphore, #tpu.memory_space<semaphore_mem>> -> memref<1x!tpu.dma_semaphore, #tpu.memory_space<semaphore_mem>>
    %39 = tpu.memref_squeeze %38 : memref<1x!tpu.dma_semaphore, #tpu.memory_space<semaphore_mem>> -> memref<!tpu.dma_semaphore, #tpu.memory_space<semaphore_mem>>
    tpu.enqueue_dma source(%36 : memref<1x768xf32, #tpu.memory_space<any>>) target(%37 : memref<1x768xf32, #tpu.memory_space<vmem>>) target_semaphore(%39 : memref<!tpu.dma_semaphore, #tpu.memory_space<semaphore_mem>>)
    %c8 = arith.constant 8 : index
    %40 = memref.load %arg0[%c8] : memref<16xi32, #tpu.memory_space<smem>>
    %c8_i32 = arith.constant 8 : i32
    %c0_i32_24 = arith.constant 0 : i32
    %41 = tpu.memref_slice %arg1[%40, %c0_i32_24] : memref<1000x768xf32, #tpu.memory_space<any>> -> memref<1x768xf32, #tpu.memory_space<any>>
    %c8_i32_25 = arith.constant 8 : i32
    %c0_i32_26 = arith.constant 0 : i32
    %42 = tpu.memref_slice %arg8[%c8_i32_25, %c0_i32_26] : memref<16x768xf32, #tpu.memory_space<vmem>> -> memref<1x768xf32, #tpu.memory_space<vmem>>
    %43 = tpu.memref_slice %arg9[%c8_i32] : memref<16x!tpu.dma_semaphore, #tpu.memory_space<semaphore_mem>> -> memref<1x!tpu.dma_semaphore, #tpu.memory_space<semaphore_mem>>
    %44 = tpu.memref_squeeze %43 : memref<1x!tpu.dma_semaphore, #tpu.memory_space<semaphore_mem>> -> memref<!tpu.dma_semaphore, #tpu.memory_space<semaphore_mem>>
    tpu.enqueue_dma source(%41 : memref<1x768xf32, #tpu.memory_space<any>>) target(%42 : memref<1x768xf32, #tpu.memory_space<vmem>>) target_semaphore(%44 : memref<!tpu.dma_semaphore, #tpu.memory_space<semaphore_mem>>)
    %c9 = arith.constant 9 : index
    %45 = memref.load %arg0[%c9] : memref<16xi32, #tpu.memory_space<smem>>
    %c9_i32 = arith.constant 9 : i32
    %c0_i32_27 = arith.constant 0 : i32
    %46 = tpu.memref_slice %arg1[%45, %c0_i32_27] : memref<1000x768xf32, #tpu.memory_space<any>> -> memref<1x768xf32, #tpu.memory_space<any>>
    %c9_i32_28 = arith.constant 9 : i32
    %c0_i32_29 = arith.constant 0 : i32
    %47 = tpu.memref_slice %arg8[%c9_i32_28, %c0_i32_29] : memref<16x768xf32, #tpu.memory_space<vmem>> -> memref<1x768xf32, #tpu.memory_space<vmem>>
    %48 = tpu.memref_slice %arg9[%c9_i32] : memref<16x!tpu.dma_semaphore, #tpu.memory_space<semaphore_mem>> -> memref<1x!tpu.dma_semaphore, #tpu.memory_space<semaphore_mem>>
    %49 = tpu.memref_squeeze %48 : memref<1x!tpu.dma_semaphore, #tpu.memory_space<semaphore_mem>> -> memref<!tpu.dma_semaphore, #tpu.memory_space<semaphore_mem>>
    tpu.enqueue_dma source(%46 : memref<1x768xf32, #tpu.memory_space<any>>) target(%47 : memref<1x768xf32, #tpu.memory_space<vmem>>) target_semaphore(%49 : memref<!tpu.dma_semaphore, #tpu.memory_space<semaphore_mem>>)
    %c10 = arith.constant 10 : index
    %50 = memref.load %arg0[%c10] : memref<16xi32, #tpu.memory_space<smem>>
    %c10_i32 = arith.constant 10 : i32
    %c0_i32_30 = arith.constant 0 : i32
    %51 = tpu.memref_slice %arg1[%50, %c0_i32_30] : memref<1000x768xf32, #tpu.memory_space<any>> -> memref<1x768xf32, #tpu.memory_space<any>>
    %c10_i32_31 = arith.constant 10 : i32
    %c0_i32_32 = arith.constant 0 : i32
    %52 = tpu.memref_slice %arg8[%c10_i32_31, %c0_i32_32] : memref<16x768xf32, #tpu.memory_space<vmem>> -> memref<1x768xf32, #tpu.memory_space<vmem>>
    %53 = tpu.memref_slice %arg9[%c10_i32] : memref<16x!tpu.dma_semaphore, #tpu.memory_space<semaphore_mem>> -> memref<1x!tpu.dma_semaphore, #tpu.memory_space<semaphore_mem>>
    %54 = tpu.memref_squeeze %53 : memref<1x!tpu.dma_semaphore, #tpu.memory_space<semaphore_mem>> -> memref<!tpu.dma_semaphore, #tpu.memory_space<semaphore_mem>>
    tpu.enqueue_dma source(%51 : memref<1x768xf32, #tpu.memory_space<any>>) target(%52 : memref<1x768xf32, #tpu.memory_space<vmem>>) target_semaphore(%54 : memref<!tpu.dma_semaphore, #tpu.memory_space<semaphore_mem>>)
    %c11 = arith.constant 11 : index
    %55 = memref.load %arg0[%c11] : memref<16xi32, #tpu.memory_space<smem>>
    %c11_i32 = arith.constant 11 : i32
    %c0_i32_33 = arith.constant 0 : i32
    %56 = tpu.memref_slice %arg1[%55, %c0_i32_33] : memref<1000x768xf32, #tpu.memory_space<any>> -> memref<1x768xf32, #tpu.memory_space<any>>
    %c11_i32_34 = arith.constant 11 : i32
    %c0_i32_35 = arith.constant 0 : i32
    %57 = tpu.memref_slice %arg8[%c11_i32_34, %c0_i32_35] : memref<16x768xf32, #tpu.memory_space<vmem>> -> memref<1x768xf32, #tpu.memory_space<vmem>>
    %58 = tpu.memref_slice %arg9[%c11_i32] : memref<16x!tpu.dma_semaphore, #tpu.memory_space<semaphore_mem>> -> memref<1x!tpu.dma_semaphore, #tpu.memory_space<semaphore_mem>>
    %59 = tpu.memref_squeeze %58 : memref<1x!tpu.dma_semaphore, #tpu.memory_space<semaphore_mem>> -> memref<!tpu.dma_semaphore, #tpu.memory_space<semaphore_mem>>
    tpu.enqueue_dma source(%56 : memref<1x768xf32, #tpu.memory_space<any>>) target(%57 : memref<1x768xf32, #tpu.memory_space<vmem>>) target_semaphore(%59 : memref<!tpu.dma_semaphore, #tpu.memory_space<semaphore_mem>>)
    %c12 = arith.constant 12 : index
    %60 = memref.load %arg0[%c12] : memref<16xi32, #tpu.memory_space<smem>>
    %c12_i32 = arith.constant 12 : i32
    %c0_i32_36 = arith.constant 0 : i32
    %61 = tpu.memref_slice %arg1[%60, %c0_i32_36] : memref<1000x768xf32, #tpu.memory_space<any>> -> memref<1x768xf32, #tpu.memory_space<any>>
    %c12_i32_37 = arith.constant 12 : i32
    %c0_i32_38 = arith.constant 0 : i32
    %62 = tpu.memref_slice %arg8[%c12_i32_37, %c0_i32_38] : memref<16x768xf32, #tpu.memory_space<vmem>> -> memref<1x768xf32, #tpu.memory_space<vmem>>
    %63 = tpu.memref_slice %arg9[%c12_i32] : memref<16x!tpu.dma_semaphore, #tpu.memory_space<semaphore_mem>> -> memref<1x!tpu.dma_semaphore, #tpu.memory_space<semaphore_mem>>
    %64 = tpu.memref_squeeze %63 : memref<1x!tpu.dma_semaphore, #tpu.memory_space<semaphore_mem>> -> memref<!tpu.dma_semaphore, #tpu.memory_space<semaphore_mem>>
    tpu.enqueue_dma source(%61 : memref<1x768xf32, #tpu.memory_space<any>>) target(%62 : memref<1x768xf32, #tpu.memory_space<vmem>>) target_semaphore(%64 : memref<!tpu.dma_semaphore, #tpu.memory_space<semaphore_mem>>)
    %c13 = arith.constant 13 : index
    %65 = memref.load %arg0[%c13] : memref<16xi32, #tpu.memory_space<smem>>
    %c13_i32 = arith.constant 13 : i32
    %c0_i32_39 = arith.constant 0 : i32
    %66 = tpu.memref_slice %arg1[%65, %c0_i32_39] : memref<1000x768xf32, #tpu.memory_space<any>> -> memref<1x768xf32, #tpu.memory_space<any>>
    %c13_i32_40 = arith.constant 13 : i32
    %c0_i32_41 = arith.constant 0 : i32
    %67 = tpu.memref_slice %arg8[%c13_i32_40, %c0_i32_41] : memref<16x768xf32, #tpu.memory_space<vmem>> -> memref<1x768xf32, #tpu.memory_space<vmem>>
    %68 = tpu.memref_slice %arg9[%c13_i32] : memref<16x!tpu.dma_semaphore, #tpu.memory_space<semaphore_mem>> -> memref<1x!tpu.dma_semaphore, #tpu.memory_space<semaphore_mem>>
    %69 = tpu.memref_squeeze %68 : memref<1x!tpu.dma_semaphore, #tpu.memory_space<semaphore_mem>> -> memref<!tpu.dma_semaphore, #tpu.memory_space<semaphore_mem>>
    tpu.enqueue_dma source(%66 : memref<1x768xf32, #tpu.memory_space<any>>) target(%67 : memref<1x768xf32, #tpu.memory_space<vmem>>) target_semaphore(%69 : memref<!tpu.dma_semaphore, #tpu.memory_space<semaphore_mem>>)
    %c14 = arith.constant 14 : index
    %70 = memref.load %arg0[%c14] : memref<16xi32, #tpu.memory_space<smem>>
    %c14_i32 = arith.constant 14 : i32
    %c0_i32_42 = arith.constant 0 : i32
    %71 = tpu.memref_slice %arg1[%70, %c0_i32_42] : memref<1000x768xf32, #tpu.memory_space<any>> -> memref<1x768xf32, #tpu.memory_space<any>>
    %c14_i32_43 = arith.constant 14 : i32
    %c0_i32_44 = arith.constant 0 : i32
    %72 = tpu.memref_slice %arg8[%c14_i32_43, %c0_i32_44] : memref<16x768xf32, #tpu.memory_space<vmem>> -> memref<1x768xf32, #tpu.memory_space<vmem>>
    %73 = tpu.memref_slice %arg9[%c14_i32] : memref<16x!tpu.dma_semaphore, #tpu.memory_space<semaphore_mem>> -> memref<1x!tpu.dma_semaphore, #tpu.memory_space<semaphore_mem>>
    %74 = tpu.memref_squeeze %73 : memref<1x!tpu.dma_semaphore, #tpu.memory_space<semaphore_mem>> -> memref<!tpu.dma_semaphore, #tpu.memory_space<semaphore_mem>>
    tpu.enqueue_dma source(%71 : memref<1x768xf32, #tpu.memory_space<any>>) target(%72 : memref<1x768xf32, #tpu.memory_space<vmem>>) target_semaphore(%74 : memref<!tpu.dma_semaphore, #tpu.memory_space<semaphore_mem>>)
    %c15 = arith.constant 15 : index
    %75 = memref.load %arg0[%c15] : memref<16xi32, #tpu.memory_space<smem>>
    %c15_i32 = arith.constant 15 : i32
    %c0_i32_45 = arith.constant 0 : i32
    %76 = tpu.memref_slice %arg1[%75, %c0_i32_45] : memref<1000x768xf32, #tpu.memory_space<any>> -> memref<1x768xf32, #tpu.memory_space<any>>
    %c15_i32_46 = arith.constant 15 : i32
    %c0_i32_47 = arith.constant 0 : i32
    %77 = tpu.memref_slice %arg8[%c15_i32_46, %c0_i32_47] : memref<16x768xf32, #tpu.memory_space<vmem>> -> memref<1x768xf32, #tpu.memory_space<vmem>>
    %78 = tpu.memref_slice %arg9[%c15_i32] : memref<16x!tpu.dma_semaphore, #tpu.memory_space<semaphore_mem>> -> memref<1x!tpu.dma_semaphore, #tpu.memory_space<semaphore_mem>>
    %79 = tpu.memref_squeeze %78 : memref<1x!tpu.dma_semaphore, #tpu.memory_space<semaphore_mem>> -> memref<!tpu.dma_semaphore, #tpu.memory_space<semaphore_mem>>
    tpu.enqueue_dma source(%76 : memref<1x768xf32, #tpu.memory_space<any>>) target(%77 : memref<1x768xf32, #tpu.memory_space<vmem>>) target_semaphore(%79 : memref<!tpu.dma_semaphore, #tpu.memory_space<semaphore_mem>>)
    %c0_i32_48 = arith.constant 0 : i32
    %c0_i32_49 = arith.constant 0 : i32
    %80 = tpu.memref_slice %arg1[%0, %c0_i32_49] : memref<1000x768xf32, #tpu.memory_space<any>> -> memref<1x768xf32, #tpu.memory_space<any>>
    %c0_i32_50 = arith.constant 0 : i32
    %c0_i32_51 = arith.constant 0 : i32
    %81 = tpu.memref_slice %arg8[%c0_i32_50, %c0_i32_51] : memref<16x768xf32, #tpu.memory_space<vmem>> -> memref<1x768xf32, #tpu.memory_space<vmem>>
    %82 = tpu.memref_slice %arg9[%c0_i32_48] : memref<16x!tpu.dma_semaphore, #tpu.memory_space<semaphore_mem>> -> memref<1x!tpu.dma_semaphore, #tpu.memory_space<semaphore_mem>>
    %83 = tpu.memref_squeeze %82 : memref<1x!tpu.dma_semaphore, #tpu.memory_space<semaphore_mem>> -> memref<!tpu.dma_semaphore, #tpu.memory_space<semaphore_mem>>
    tpu.wait_dma2 semaphore(%83 : memref<!tpu.dma_semaphore, #tpu.memory_space<semaphore_mem>>) src(%80 : memref<1x768xf32, #tpu.memory_space<any>>) dst(%81 : memref<1x768xf32, #tpu.memory_space<vmem>>)
    %c1_i32_52 = arith.constant 1 : i32
    %c0_i32_53 = arith.constant 0 : i32
    %84 = tpu.memref_slice %arg1[%5, %c0_i32_53] : memref<1000x768xf32, #tpu.memory_space<any>> -> memref<1x768xf32, #tpu.memory_space<any>>
    %c1_i32_54 = arith.constant 1 : i32
    %c0_i32_55 = arith.constant 0 : i32
    %85 = tpu.memref_slice %arg8[%c1_i32_54, %c0_i32_55] : memref<16x768xf32, #tpu.memory_space<vmem>> -> memref<1x768xf32, #tpu.memory_space<vmem>>
    %86 = tpu.memref_slice %arg9[%c1_i32_52] : memref<16x!tpu.dma_semaphore, #tpu.memory_space<semaphore_mem>> -> memref<1x!tpu.dma_semaphore, #tpu.memory_space<semaphore_mem>>
    %87 = tpu.memref_squeeze %86 : memref<1x!tpu.dma_semaphore, #tpu.memory_space<semaphore_mem>> -> memref<!tpu.dma_semaphore, #tpu.memory_space<semaphore_mem>>
    tpu.wait_dma2 semaphore(%87 : memref<!tpu.dma_semaphore, #tpu.memory_space<semaphore_mem>>) src(%84 : memref<1x768xf32, #tpu.memory_space<any>>) dst(%85 : memref<1x768xf32, #tpu.memory_space<vmem>>)
    %c2_i32_56 = arith.constant 2 : i32
    %c0_i32_57 = arith.constant 0 : i32
    %88 = tpu.memref_slice %arg1[%10, %c0_i32_57] : memref<1000x768xf32, #tpu.memory_space<any>> -> memref<1x768xf32, #tpu.memory_space<any>>
    %c2_i32_58 = arith.constant 2 : i32
    %c0_i32_59 = arith.constant 0 : i32
    %89 = tpu.memref_slice %arg8[%c2_i32_58, %c0_i32_59] : memref<16x768xf32, #tpu.memory_space<vmem>> -> memref<1x768xf32, #tpu.memory_space<vmem>>
    %90 = tpu.memref_slice %arg9[%c2_i32_56] : memref<16x!tpu.dma_semaphore, #tpu.memory_space<semaphore_mem>> -> memref<1x!tpu.dma_semaphore, #tpu.memory_space<semaphore_mem>>
    %91 = tpu.memref_squeeze %90 : memref<1x!tpu.dma_semaphore, #tpu.memory_space<semaphore_mem>> -> memref<!tpu.dma_semaphore, #tpu.memory_space<semaphore_mem>>
    tpu.wait_dma2 semaphore(%91 : memref<!tpu.dma_semaphore, #tpu.memory_space<semaphore_mem>>) src(%88 : memref<1x768xf32, #tpu.memory_space<any>>) dst(%89 : memref<1x768xf32, #tpu.memory_space<vmem>>)
    %c3_i32_60 = arith.constant 3 : i32
    %c0_i32_61 = arith.constant 0 : i32
    %92 = tpu.memref_slice %arg1[%15, %c0_i32_61] : memref<1000x768xf32, #tpu.memory_space<any>> -> memref<1x768xf32, #tpu.memory_space<any>>
    %c3_i32_62 = arith.constant 3 : i32
    %c0_i32_63 = arith.constant 0 : i32
    %93 = tpu.memref_slice %arg8[%c3_i32_62, %c0_i32_63] : memref<16x768xf32, #tpu.memory_space<vmem>> -> memref<1x768xf32, #tpu.memory_space<vmem>>
    %94 = tpu.memref_slice %arg9[%c3_i32_60] : memref<16x!tpu.dma_semaphore, #tpu.memory_space<semaphore_mem>> -> memref<1x!tpu.dma_semaphore, #tpu.memory_space<semaphore_mem>>
    %95 = tpu.memref_squeeze %94 : memref<1x!tpu.dma_semaphore, #tpu.memory_space<semaphore_mem>> -> memref<!tpu.dma_semaphore, #tpu.memory_space<semaphore_mem>>
    tpu.wait_dma2 semaphore(%95 : memref<!tpu.dma_semaphore, #tpu.memory_space<semaphore_mem>>) src(%92 : memref<1x768xf32, #tpu.memory_space<any>>) dst(%93 : memref<1x768xf32, #tpu.memory_space<vmem>>)
    %c4_i32_64 = arith.constant 4 : i32
    %c0_i32_65 = arith.constant 0 : i32
    %96 = tpu.memref_slice %arg1[%20, %c0_i32_65] : memref<1000x768xf32, #tpu.memory_space<any>> -> memref<1x768xf32, #tpu.memory_space<any>>
    %c4_i32_66 = arith.constant 4 : i32
    %c0_i32_67 = arith.constant 0 : i32
    %97 = tpu.memref_slice %arg8[%c4_i32_66, %c0_i32_67] : memref<16x768xf32, #tpu.memory_space<vmem>> -> memref<1x768xf32, #tpu.memory_space<vmem>>
    %98 = tpu.memref_slice %arg9[%c4_i32_64] : memref<16x!tpu.dma_semaphore, #tpu.memory_space<semaphore_mem>> -> memref<1x!tpu.dma_semaphore, #tpu.memory_space<semaphore_mem>>
    %99 = tpu.memref_squeeze %98 : memref<1x!tpu.dma_semaphore, #tpu.memory_space<semaphore_mem>> -> memref<!tpu.dma_semaphore, #tpu.memory_space<semaphore_mem>>
    tpu.wait_dma2 semaphore(%99 : memref<!tpu.dma_semaphore, #tpu.memory_space<semaphore_mem>>) src(%96 : memref<1x768xf32, #tpu.memory_space<any>>) dst(%97 : memref<1x768xf32, #tpu.memory_space<vmem>>)
    %c5_i32_68 = arith.constant 5 : i32
    %c0_i32_69 = arith.constant 0 : i32
    %100 = tpu.memref_slice %arg1[%25, %c0_i32_69] : memref<1000x768xf32, #tpu.memory_space<any>> -> memref<1x768xf32, #tpu.memory_space<any>>
    %c5_i32_70 = arith.constant 5 : i32
    %c0_i32_71 = arith.constant 0 : i32
    %101 = tpu.memref_slice %arg8[%c5_i32_70, %c0_i32_71] : memref<16x768xf32, #tpu.memory_space<vmem>> -> memref<1x768xf32, #tpu.memory_space<vmem>>
    %102 = tpu.memref_slice %arg9[%c5_i32_68] : memref<16x!tpu.dma_semaphore, #tpu.memory_space<semaphore_mem>> -> memref<1x!tpu.dma_semaphore, #tpu.memory_space<semaphore_mem>>
    %103 = tpu.memref_squeeze %102 : memref<1x!tpu.dma_semaphore, #tpu.memory_space<semaphore_mem>> -> memref<!tpu.dma_semaphore, #tpu.memory_space<semaphore_mem>>
    tpu.wait_dma2 semaphore(%103 : memref<!tpu.dma_semaphore, #tpu.memory_space<semaphore_mem>>) src(%100 : memref<1x768xf32, #tpu.memory_space<any>>) dst(%101 : memref<1x768xf32, #tpu.memory_space<vmem>>)
    %c6_i32_72 = arith.constant 6 : i32
    %c0_i32_73 = arith.constant 0 : i32
    %104 = tpu.memref_slice %arg1[%30, %c0_i32_73] : memref<1000x768xf32, #tpu.memory_space<any>> -> memref<1x768xf32, #tpu.memory_space<any>>
    %c6_i32_74 = arith.constant 6 : i32
    %c0_i32_75 = arith.constant 0 : i32
    %105 = tpu.memref_slice %arg8[%c6_i32_74, %c0_i32_75] : memref<16x768xf32, #tpu.memory_space<vmem>> -> memref<1x768xf32, #tpu.memory_space<vmem>>
    %106 = tpu.memref_slice %arg9[%c6_i32_72] : memref<16x!tpu.dma_semaphore, #tpu.memory_space<semaphore_mem>> -> memref<1x!tpu.dma_semaphore, #tpu.memory_space<semaphore_mem>>
    %107 = tpu.memref_squeeze %106 : memref<1x!tpu.dma_semaphore, #tpu.memory_space<semaphore_mem>> -> memref<!tpu.dma_semaphore, #tpu.memory_space<semaphore_mem>>
    tpu.wait_dma2 semaphore(%107 : memref<!tpu.dma_semaphore, #tpu.memory_space<semaphore_mem>>) src(%104 : memref<1x768xf32, #tpu.memory_space<any>>) dst(%105 : memref<1x768xf32, #tpu.memory_space<vmem>>)
    %c7_i32_76 = arith.constant 7 : i32
    %c0_i32_77 = arith.constant 0 : i32
    %108 = tpu.memref_slice %arg1[%35, %c0_i32_77] : memref<1000x768xf32, #tpu.memory_space<any>> -> memref<1x768xf32, #tpu.memory_space<any>>
    %c7_i32_78 = arith.constant 7 : i32
    %c0_i32_79 = arith.constant 0 : i32
    %109 = tpu.memref_slice %arg8[%c7_i32_78, %c0_i32_79] : memref<16x768xf32, #tpu.memory_space<vmem>> -> memref<1x768xf32, #tpu.memory_space<vmem>>
    %110 = tpu.memref_slice %arg9[%c7_i32_76] : memref<16x!tpu.dma_semaphore, #tpu.memory_space<semaphore_mem>> -> memref<1x!tpu.dma_semaphore, #tpu.memory_space<semaphore_mem>>
    %111 = tpu.memref_squeeze %110 : memref<1x!tpu.dma_semaphore, #tpu.memory_space<semaphore_mem>> -> memref<!tpu.dma_semaphore, #tpu.memory_space<semaphore_mem>>
    tpu.wait_dma2 semaphore(%111 : memref<!tpu.dma_semaphore, #tpu.memory_space<semaphore_mem>>) src(%108 : memref<1x768xf32, #tpu.memory_space<any>>) dst(%109 : memref<1x768xf32, #tpu.memory_space<vmem>>)
    %c8_i32_80 = arith.constant 8 : i32
    %c0_i32_81 = arith.constant 0 : i32
    %112 = tpu.memref_slice %arg1[%40, %c0_i32_81] : memref<1000x768xf32, #tpu.memory_space<any>> -> memref<1x768xf32, #tpu.memory_space<any>>
    %c8_i32_82 = arith.constant 8 : i32
    %c0_i32_83 = arith.constant 0 : i32
    %113 = tpu.memref_slice %arg8[%c8_i32_82, %c0_i32_83] : memref<16x768xf32, #tpu.memory_space<vmem>> -> memref<1x768xf32, #tpu.memory_space<vmem>>
    %114 = tpu.memref_slice %arg9[%c8_i32_80] : memref<16x!tpu.dma_semaphore, #tpu.memory_space<semaphore_mem>> -> memref<1x!tpu.dma_semaphore, #tpu.memory_space<semaphore_mem>>
    %115 = tpu.memref_squeeze %114 : memref<1x!tpu.dma_semaphore, #tpu.memory_space<semaphore_mem>> -> memref<!tpu.dma_semaphore, #tpu.memory_space<semaphore_mem>>
    tpu.wait_dma2 semaphore(%115 : memref<!tpu.dma_semaphore, #tpu.memory_space<semaphore_mem>>) src(%112 : memref<1x768xf32, #tpu.memory_space<any>>) dst(%113 : memref<1x768xf32, #tpu.memory_space<vmem>>)
    %c9_i32_84 = arith.constant 9 : i32
    %c0_i32_85 = arith.constant 0 : i32
    %116 = tpu.memref_slice %arg1[%45, %c0_i32_85] : memref<1000x768xf32, #tpu.memory_space<any>> -> memref<1x768xf32, #tpu.memory_space<any>>
    %c9_i32_86 = arith.constant 9 : i32
    %c0_i32_87 = arith.constant 0 : i32
    %117 = tpu.memref_slice %arg8[%c9_i32_86, %c0_i32_87] : memref<16x768xf32, #tpu.memory_space<vmem>> -> memref<1x768xf32, #tpu.memory_space<vmem>>
    %118 = tpu.memref_slice %arg9[%c9_i32_84] : memref<16x!tpu.dma_semaphore, #tpu.memory_space<semaphore_mem>> -> memref<1x!tpu.dma_semaphore, #tpu.memory_space<semaphore_mem>>
    %119 = tpu.memref_squeeze %118 : memref<1x!tpu.dma_semaphore, #tpu.memory_space<semaphore_mem>> -> memref<!tpu.dma_semaphore, #tpu.memory_space<semaphore_mem>>
    tpu.wait_dma2 semaphore(%119 : memref<!tpu.dma_semaphore, #tpu.memory_space<semaphore_mem>>) src(%116 : memref<1x768xf32, #tpu.memory_space<any>>) dst(%117 : memref<1x768xf32, #tpu.memory_space<vmem>>)
    %c10_i32_88 = arith.constant 10 : i32
    %c0_i32_89 = arith.constant 0 : i32
    %120 = tpu.memref_slice %arg1[%50, %c0_i32_89] : memref<1000x768xf32, #tpu.memory_space<any>> -> memref<1x768xf32, #tpu.memory_space<any>>
    %c10_i32_90 = arith.constant 10 : i32
    %c0_i32_91 = arith.constant 0 : i32
    %121 = tpu.memref_slice %arg8[%c10_i32_90, %c0_i32_91] : memref<16x768xf32, #tpu.memory_space<vmem>> -> memref<1x768xf32, #tpu.memory_space<vmem>>
    %122 = tpu.memref_slice %arg9[%c10_i32_88] : memref<16x!tpu.dma_semaphore, #tpu.memory_space<semaphore_mem>> -> memref<1x!tpu.dma_semaphore, #tpu.memory_space<semaphore_mem>>
    %123 = tpu.memref_squeeze %122 : memref<1x!tpu.dma_semaphore, #tpu.memory_space<semaphore_mem>> -> memref<!tpu.dma_semaphore, #tpu.memory_space<semaphore_mem>>
    tpu.wait_dma2 semaphore(%123 : memref<!tpu.dma_semaphore, #tpu.memory_space<semaphore_mem>>) src(%120 : memref<1x768xf32, #tpu.memory_space<any>>) dst(%121 : memref<1x768xf32, #tpu.memory_space<vmem>>)
    %c11_i32_92 = arith.constant 11 : i32
    %c0_i32_93 = arith.constant 0 : i32
    %124 = tpu.memref_slice %arg1[%55, %c0_i32_93] : memref<1000x768xf32, #tpu.memory_space<any>> -> memref<1x768xf32, #tpu.memory_space<any>>
    %c11_i32_94 = arith.constant 11 : i32
    %c0_i32_95 = arith.constant 0 : i32
    %125 = tpu.memref_slice %arg8[%c11_i32_94, %c0_i32_95] : memref<16x768xf32, #tpu.memory_space<vmem>> -> memref<1x768xf32, #tpu.memory_space<vmem>>
    %126 = tpu.memref_slice %arg9[%c11_i32_92] : memref<16x!tpu.dma_semaphore, #tpu.memory_space<semaphore_mem>> -> memref<1x!tpu.dma_semaphore, #tpu.memory_space<semaphore_mem>>
    %127 = tpu.memref_squeeze %126 : memref<1x!tpu.dma_semaphore, #tpu.memory_space<semaphore_mem>> -> memref<!tpu.dma_semaphore, #tpu.memory_space<semaphore_mem>>
    tpu.wait_dma2 semaphore(%127 : memref<!tpu.dma_semaphore, #tpu.memory_space<semaphore_mem>>) src(%124 : memref<1x768xf32, #tpu.memory_space<any>>) dst(%125 : memref<1x768xf32, #tpu.memory_space<vmem>>)
    %c12_i32_96 = arith.constant 12 : i32
    %c0_i32_97 = arith.constant 0 : i32
    %128 = tpu.memref_slice %arg1[%60, %c0_i32_97] : memref<1000x768xf32, #tpu.memory_space<any>> -> memref<1x768xf32, #tpu.memory_space<any>>
    %c12_i32_98 = arith.constant 12 : i32
    %c0_i32_99 = arith.constant 0 : i32
    %129 = tpu.memref_slice %arg8[%c12_i32_98, %c0_i32_99] : memref<16x768xf32, #tpu.memory_space<vmem>> -> memref<1x768xf32, #tpu.memory_space<vmem>>
    %130 = tpu.memref_slice %arg9[%c12_i32_96] : memref<16x!tpu.dma_semaphore, #tpu.memory_space<semaphore_mem>> -> memref<1x!tpu.dma_semaphore, #tpu.memory_space<semaphore_mem>>
    %131 = tpu.memref_squeeze %130 : memref<1x!tpu.dma_semaphore, #tpu.memory_space<semaphore_mem>> -> memref<!tpu.dma_semaphore, #tpu.memory_space<semaphore_mem>>
    tpu.wait_dma2 semaphore(%131 : memref<!tpu.dma_semaphore, #tpu.memory_space<semaphore_mem>>) src(%128 : memref<1x768xf32, #tpu.memory_space<any>>) dst(%129 : memref<1x768xf32, #tpu.memory_space<vmem>>)
    %c13_i32_100 = arith.constant 13 : i32
    %c0_i32_101 = arith.constant 0 : i32
    %132 = tpu.memref_slice %arg1[%65, %c0_i32_101] : memref<1000x768xf32, #tpu.memory_space<any>> -> memref<1x768xf32, #tpu.memory_space<any>>
    %c13_i32_102 = arith.constant 13 : i32
    %c0_i32_103 = arith.constant 0 : i32
    %133 = tpu.memref_slice %arg8[%c13_i32_102, %c0_i32_103] : memref<16x768xf32, #tpu.memory_space<vmem>> -> memref<1x768xf32, #tpu.memory_space<vmem>>
    %134 = tpu.memref_slice %arg9[%c13_i32_100] : memref<16x!tpu.dma_semaphore, #tpu.memory_space<semaphore_mem>> -> memref<1x!tpu.dma_semaphore, #tpu.memory_space<semaphore_mem>>
    %135 = tpu.memref_squeeze %134 : memref<1x!tpu.dma_semaphore, #tpu.memory_space<semaphore_mem>> -> memref<!tpu.dma_semaphore, #tpu.memory_space<semaphore_mem>>
    tpu.wait_dma2 semaphore(%135 : memref<!tpu.dma_semaphore, #tpu.memory_space<semaphore_mem>>) src(%132 : memref<1x768xf32, #tpu.memory_space<any>>) dst(%133 : memref<1x768xf32, #tpu.memory_space<vmem>>)
    %c14_i32_104 = arith.constant 14 : i32
    %c0_i32_105 = arith.constant 0 : i32
    %136 = tpu.memref_slice %arg1[%70, %c0_i32_105] : memref<1000x768xf32, #tpu.memory_space<any>> -> memref<1x768xf32, #tpu.memory_space<any>>
    %c14_i32_106 = arith.constant 14 : i32
    %c0_i32_107 = arith.constant 0 : i32
    %137 = tpu.memref_slice %arg8[%c14_i32_106, %c0_i32_107] : memref<16x768xf32, #tpu.memory_space<vmem>> -> memref<1x768xf32, #tpu.memory_space<vmem>>
    %138 = tpu.memref_slice %arg9[%c14_i32_104] : memref<16x!tpu.dma_semaphore, #tpu.memory_space<semaphore_mem>> -> memref<1x!tpu.dma_semaphore, #tpu.memory_space<semaphore_mem>>
    %139 = tpu.memref_squeeze %138 : memref<1x!tpu.dma_semaphore, #tpu.memory_space<semaphore_mem>> -> memref<!tpu.dma_semaphore, #tpu.memory_space<semaphore_mem>>
    tpu.wait_dma2 semaphore(%139 : memref<!tpu.dma_semaphore, #tpu.memory_space<semaphore_mem>>) src(%136 : memref<1x768xf32, #tpu.memory_space<any>>) dst(%137 : memref<1x768xf32, #tpu.memory_space<vmem>>)
    %c15_i32_108 = arith.constant 15 : i32
    %c0_i32_109 = arith.constant 0 : i32
    %140 = tpu.memref_slice %arg1[%75, %c0_i32_109] : memref<1000x768xf32, #tpu.memory_space<any>> -> memref<1x768xf32, #tpu.memory_space<any>>
    %c15_i32_110 = arith.constant 15 : i32
    %c0_i32_111 = arith.constant 0 : i32
    %141 = tpu.memref_slice %arg8[%c15_i32_110, %c0_i32_111] : memref<16x768xf32, #tpu.memory_space<vmem>> -> memref<1x768xf32, #tpu.memory_space<vmem>>
    %142 = tpu.memref_slice %arg9[%c15_i32_108] : memref<16x!tpu.dma_semaphore, #tpu.memory_space<semaphore_mem>> -> memref<1x!tpu.dma_semaphore, #tpu.memory_space<semaphore_mem>>
    %143 = tpu.memref_squeeze %142 : memref<1x!tpu.dma_semaphore, #tpu.memory_space<semaphore_mem>> -> memref<!tpu.dma_semaphore, #tpu.memory_space<semaphore_mem>>
    tpu.wait_dma2 semaphore(%143 : memref<!tpu.dma_semaphore, #tpu.memory_space<semaphore_mem>>) src(%140 : memref<1x768xf32, #tpu.memory_space<any>>) dst(%141 : memref<1x768xf32, #tpu.memory_space<vmem>>)
    %c0_112 = arith.constant 0 : index
    %c0_113 = arith.constant 0 : index
    %144 = vector.load %arg8[%c0_112, %c0_113] : memref<16x768xf32, #tpu.memory_space<vmem>>, vector<16x768xf32>
    %145 = arith.truncf %144 : vector<16x768xf32> to vector<16x768xbf16>
    %c0_114 = arith.constant 0 : index
    %c0_115 = arith.constant 0 : index
    %146 = vector.load %arg2[%c0_114, %c0_115] : memref<768x512xbf16, #tpu.memory_space<vmem>>, vector<768x512xbf16>
    %cst = arith.constant dense<0.000000e+00> : vector<16x512xf32>
    %147 = tpu.matmul %145, %146, %cst {dimension_numbers = #tpu.dot_dimension_numbers<[1], [0], [0], [1], [0, 0, 1, 1], [], []>} : vector<16x768xbf16>, vector<768x512xbf16>, vector<16x512xf32> -> vector<16x512xf32>
    %c0_116 = arith.constant 0 : index
    %c0_117 = arith.constant 0 : index
    %148 = vector.load %arg4[%c0_116, %c0_117] : memref<1x512xf32, #tpu.memory_space<vmem>>, vector<1x512xf32>
    %149 = vector.broadcast %148 : vector<1x512xf32> to vector<16x512xf32>
    %150 = arith.addf %147, %149 : vector<16x512xf32>
    %cst_118 = arith.constant 0.000000e+00 : f32
    %151 = vector.broadcast %cst_118 : f32 to vector<2x128xf32>
    %cst_119 = arith.constant 0.000000e+00 : f32
    %152 = vector.broadcast %cst_119 : f32 to vector<2x128xf32>
    %153 = vector.extract_strided_slice %150 {offsets = [0, 0], sizes = [2, 512], strides = [1, 1]} : vector<16x512xf32> to vector<2x512xf32>
    %154 = arith.truncf %151 : vector<2x128xf32> to vector<2x128xbf16>
    %c0_120 = arith.constant 0 : index
    %c0_121 = arith.constant 0 : index
    %155 = vector.load %arg3[%c0_120, %c0_121] : memref<128x512xbf16, #tpu.memory_space<vmem>>, vector<128x512xbf16>
    %cst_122 = arith.constant dense<0.000000e+00> : vector<2x512xf32>
    %156 = tpu.matmul %154, %155, %cst_122 {dimension_numbers = #tpu.dot_dimension_numbers<[1], [0], [0], [1], [0, 0, 1, 1], [], []>} : vector<2x128xbf16>, vector<128x512xbf16>, vector<2x512xf32> -> vector<2x512xf32>
    %157 = arith.addf %153, %156 : vector<2x512xf32>
    %158 = vector.extract_strided_slice %157 {offsets = [0, 0], sizes = [2, 128], strides = [1, 1]} : vector<2x512xf32> to vector<2x128xf32>
    %159 = arith.negf %158 : vector<2x128xf32>
    %160 = math.exp %159 : vector<2x128xf32>
    %cst_123 = arith.constant 1.000000e+00 : f32
    %161 = vector.broadcast %cst_123 : f32 to vector<2x128xf32>
    %162 = arith.addf %161, %160 : vector<2x128xf32>
    %163 = arith.divf %161, %162 : vector<2x128xf32>
    %164 = vector.extract_strided_slice %157 {offsets = [0, 128], sizes = [2, 128], strides = [1, 1]} : vector<2x512xf32> to vector<2x128xf32>
    %165 = arith.negf %164 : vector<2x128xf32>
    %166 = math.exp %165 : vector<2x128xf32>
    %cst_124 = arith.constant 1.000000e+00 : f32
    %167 = vector.broadcast %cst_124 : f32 to vector<2x128xf32>
    %168 = arith.addf %167, %166 : vector<2x128xf32>
    %169 = arith.divf %167, %168 : vector<2x128xf32>
    %170 = vector.extract_strided_slice %157 {offsets = [0, 256], sizes = [2, 128], strides = [1, 1]} : vector<2x512xf32> to vector<2x128xf32>
    %171 = math.tanh %170 : vector<2x128xf32>
    %172 = vector.extract_strided_slice %157 {offsets = [0, 384], sizes = [2, 128], strides = [1, 1]} : vector<2x512xf32> to vector<2x128xf32>
    %173 = arith.negf %172 : vector<2x128xf32>
    %174 = math.exp %173 : vector<2x128xf32>
    %cst_125 = arith.constant 1.000000e+00 : f32
    %175 = vector.broadcast %cst_125 : f32 to vector<2x128xf32>
    %176 = arith.addf %175, %174 : vector<2x128xf32>
    %177 = arith.divf %175, %176 : vector<2x128xf32>
    %178 = arith.mulf %169, %152 : vector<2x128xf32>
    %179 = arith.mulf %163, %171 : vector<2x128xf32>
    %180 = arith.addf %178, %179 : vector<2x128xf32>
    %181 = math.tanh %180 : vector<2x128xf32>
    %182 = arith.mulf %177, %181 : vector<2x128xf32>
    %183 = vector.extract_strided_slice %150 {offsets = [2, 0], sizes = [2, 512], strides = [1, 1]} : vector<16x512xf32> to vector<2x512xf32>
    %184 = arith.truncf %182 : vector<2x128xf32> to vector<2x128xbf16>
    %c0_126 = arith.constant 0 : index
    %c0_127 = arith.constant 0 : index
    %185 = vector.load %arg3[%c0_126, %c0_127] : memref<128x512xbf16, #tpu.memory_space<vmem>>, vector<128x512xbf16>
    %cst_128 = arith.constant dense<0.000000e+00> : vector<2x512xf32>
    %186 = tpu.matmul %184, %185, %cst_128 {dimension_numbers = #tpu.dot_dimension_numbers<[1], [0], [0], [1], [0, 0, 1, 1], [], []>} : vector<2x128xbf16>, vector<128x512xbf16>, vector<2x512xf32> -> vector<2x512xf32>
    %187 = arith.addf %183, %186 : vector<2x512xf32>
    %188 = vector.extract_strided_slice %187 {offsets = [0, 0], sizes = [2, 128], strides = [1, 1]} : vector<2x512xf32> to vector<2x128xf32>
    %189 = arith.negf %188 : vector<2x128xf32>
    %190 = math.exp %189 : vector<2x128xf32>
    %cst_129 = arith.constant 1.000000e+00 : f32
    %191 = vector.broadcast %cst_129 : f32 to vector<2x128xf32>
    %192 = arith.addf %191, %190 : vector<2x128xf32>
    %193 = arith.divf %191, %192 : vector<2x128xf32>
    %194 = vector.extract_strided_slice %187 {offsets = [0, 128], sizes = [2, 128], strides = [1, 1]} : vector<2x512xf32> to vector<2x128xf32>
    %195 = arith.negf %194 : vector<2x128xf32>
    %196 = math.exp %195 : vector<2x128xf32>
    %cst_130 = arith.constant 1.000000e+00 : f32
    %197 = vector.broadcast %cst_130 : f32 to vector<2x128xf32>
    %198 = arith.addf %197, %196 : vector<2x128xf32>
    %199 = arith.divf %197, %198 : vector<2x128xf32>
    %200 = vector.extract_strided_slice %187 {offsets = [0, 256], sizes = [2, 128], strides = [1, 1]} : vector<2x512xf32> to vector<2x128xf32>
    %201 = math.tanh %200 : vector<2x128xf32>
    %202 = vector.extract_strided_slice %187 {offsets = [0, 384], sizes = [2, 128], strides = [1, 1]} : vector<2x512xf32> to vector<2x128xf32>
    %203 = arith.negf %202 : vector<2x128xf32>
    %204 = math.exp %203 : vector<2x128xf32>
    %cst_131 = arith.constant 1.000000e+00 : f32
    %205 = vector.broadcast %cst_131 : f32 to vector<2x128xf32>
    %206 = arith.addf %205, %204 : vector<2x128xf32>
    %207 = arith.divf %205, %206 : vector<2x128xf32>
    %208 = arith.mulf %199, %180 : vector<2x128xf32>
    %209 = arith.mulf %193, %201 : vector<2x128xf32>
    %210 = arith.addf %208, %209 : vector<2x128xf32>
    %211 = math.tanh %210 : vector<2x128xf32>
    %212 = arith.mulf %207, %211 : vector<2x128xf32>
    %213 = vector.extract_strided_slice %150 {offsets = [4, 0], sizes = [2, 512], strides = [1, 1]} : vector<16x512xf32> to vector<2x512xf32>
    %214 = arith.truncf %212 : vector<2x128xf32> to vector<2x128xbf16>
    %c0_132 = arith.constant 0 : index
    %c0_133 = arith.constant 0 : index
    %215 = vector.load %arg3[%c0_132, %c0_133] : memref<128x512xbf16, #tpu.memory_space<vmem>>, vector<128x512xbf16>
    %cst_134 = arith.constant dense<0.000000e+00> : vector<2x512xf32>
    %216 = tpu.matmul %214, %215, %cst_134 {dimension_numbers = #tpu.dot_dimension_numbers<[1], [0], [0], [1], [0, 0, 1, 1], [], []>} : vector<2x128xbf16>, vector<128x512xbf16>, vector<2x512xf32> -> vector<2x512xf32>
    %217 = arith.addf %213, %216 : vector<2x512xf32>
    %218 = vector.extract_strided_slice %217 {offsets = [0, 0], sizes = [2, 128], strides = [1, 1]} : vector<2x512xf32> to vector<2x128xf32>
    %219 = arith.negf %218 : vector<2x128xf32>
    %220 = math.exp %219 : vector<2x128xf32>
    %cst_135 = arith.constant 1.000000e+00 : f32
    %221 = vector.broadcast %cst_135 : f32 to vector<2x128xf32>
    %222 = arith.addf %221, %220 : vector<2x128xf32>
    %223 = arith.divf %221, %222 : vector<2x128xf32>
    %224 = vector.extract_strided_slice %217 {offsets = [0, 128], sizes = [2, 128], strides = [1, 1]} : vector<2x512xf32> to vector<2x128xf32>
    %225 = arith.negf %224 : vector<2x128xf32>
    %226 = math.exp %225 : vector<2x128xf32>
    %cst_136 = arith.constant 1.000000e+00 : f32
    %227 = vector.broadcast %cst_136 : f32 to vector<2x128xf32>
    %228 = arith.addf %227, %226 : vector<2x128xf32>
    %229 = arith.divf %227, %228 : vector<2x128xf32>
    %230 = vector.extract_strided_slice %217 {offsets = [0, 256], sizes = [2, 128], strides = [1, 1]} : vector<2x512xf32> to vector<2x128xf32>
    %231 = math.tanh %230 : vector<2x128xf32>
    %232 = vector.extract_strided_slice %217 {offsets = [0, 384], sizes = [2, 128], strides = [1, 1]} : vector<2x512xf32> to vector<2x128xf32>
    %233 = arith.negf %232 : vector<2x128xf32>
    %234 = math.exp %233 : vector<2x128xf32>
    %cst_137 = arith.constant 1.000000e+00 : f32
    %235 = vector.broadcast %cst_137 : f32 to vector<2x128xf32>
    %236 = arith.addf %235, %234 : vector<2x128xf32>
    %237 = arith.divf %235, %236 : vector<2x128xf32>
    %238 = arith.mulf %229, %210 : vector<2x128xf32>
    %239 = arith.mulf %223, %231 : vector<2x128xf32>
    %240 = arith.addf %238, %239 : vector<2x128xf32>
    %241 = math.tanh %240 : vector<2x128xf32>
    %242 = arith.mulf %237, %241 : vector<2x128xf32>
    %243 = vector.extract_strided_slice %150 {offsets = [6, 0], sizes = [2, 512], strides = [1, 1]} : vector<16x512xf32> to vector<2x512xf32>
    %244 = arith.truncf %242 : vector<2x128xf32> to vector<2x128xbf16>
    %c0_138 = arith.constant 0 : index
    %c0_139 = arith.constant 0 : index
    %245 = vector.load %arg3[%c0_138, %c0_139] : memref<128x512xbf16, #tpu.memory_space<vmem>>, vector<128x512xbf16>
    %cst_140 = arith.constant dense<0.000000e+00> : vector<2x512xf32>
    %246 = tpu.matmul %244, %245, %cst_140 {dimension_numbers = #tpu.dot_dimension_numbers<[1], [0], [0], [1], [0, 0, 1, 1], [], []>} : vector<2x128xbf16>, vector<128x512xbf16>, vector<2x512xf32> -> vector<2x512xf32>
    %247 = arith.addf %243, %246 : vector<2x512xf32>
    %248 = vector.extract_strided_slice %247 {offsets = [0, 0], sizes = [2, 128], strides = [1, 1]} : vector<2x512xf32> to vector<2x128xf32>
    %249 = arith.negf %248 : vector<2x128xf32>
    %250 = math.exp %249 : vector<2x128xf32>
    %cst_141 = arith.constant 1.000000e+00 : f32
    %251 = vector.broadcast %cst_141 : f32 to vector<2x128xf32>
    %252 = arith.addf %251, %250 : vector<2x128xf32>
    %253 = arith.divf %251, %252 : vector<2x128xf32>
    %254 = vector.extract_strided_slice %247 {offsets = [0, 128], sizes = [2, 128], strides = [1, 1]} : vector<2x512xf32> to vector<2x128xf32>
    %255 = arith.negf %254 : vector<2x128xf32>
    %256 = math.exp %255 : vector<2x128xf32>
    %cst_142 = arith.constant 1.000000e+00 : f32
    %257 = vector.broadcast %cst_142 : f32 to vector<2x128xf32>
    %258 = arith.addf %257, %256 : vector<2x128xf32>
    %259 = arith.divf %257, %258 : vector<2x128xf32>
    %260 = vector.extract_strided_slice %247 {offsets = [0, 256], sizes = [2, 128], strides = [1, 1]} : vector<2x512xf32> to vector<2x128xf32>
    %261 = math.tanh %260 : vector<2x128xf32>
    %262 = vector.extract_strided_slice %247 {offsets = [0, 384], sizes = [2, 128], strides = [1, 1]} : vector<2x512xf32> to vector<2x128xf32>
    %263 = arith.negf %262 : vector<2x128xf32>
    %264 = math.exp %263 : vector<2x128xf32>
    %cst_143 = arith.constant 1.000000e+00 : f32
    %265 = vector.broadcast %cst_143 : f32 to vector<2x128xf32>
    %266 = arith.addf %265, %264 : vector<2x128xf32>
    %267 = arith.divf %265, %266 : vector<2x128xf32>
    %268 = arith.mulf %259, %240 : vector<2x128xf32>
    %269 = arith.mulf %253, %261 : vector<2x128xf32>
    %270 = arith.addf %268, %269 : vector<2x128xf32>
    %271 = math.tanh %270 : vector<2x128xf32>
    %272 = arith.mulf %267, %271 : vector<2x128xf32>
    %273 = vector.extract_strided_slice %150 {offsets = [8, 0], sizes = [2, 512], strides = [1, 1]} : vector<16x512xf32> to vector<2x512xf32>
    %274 = arith.truncf %272 : vector<2x128xf32> to vector<2x128xbf16>
    %c0_144 = arith.constant 0 : index
    %c0_145 = arith.constant 0 : index
    %275 = vector.load %arg3[%c0_144, %c0_145] : memref<128x512xbf16, #tpu.memory_space<vmem>>, vector<128x512xbf16>
    %cst_146 = arith.constant dense<0.000000e+00> : vector<2x512xf32>
    %276 = tpu.matmul %274, %275, %cst_146 {dimension_numbers = #tpu.dot_dimension_numbers<[1], [0], [0], [1], [0, 0, 1, 1], [], []>} : vector<2x128xbf16>, vector<128x512xbf16>, vector<2x512xf32> -> vector<2x512xf32>
    %277 = arith.addf %273, %276 : vector<2x512xf32>
    %278 = vector.extract_strided_slice %277 {offsets = [0, 0], sizes = [2, 128], strides = [1, 1]} : vector<2x512xf32> to vector<2x128xf32>
    %279 = arith.negf %278 : vector<2x128xf32>
    %280 = math.exp %279 : vector<2x128xf32>
    %cst_147 = arith.constant 1.000000e+00 : f32
    %281 = vector.broadcast %cst_147 : f32 to vector<2x128xf32>
    %282 = arith.addf %281, %280 : vector<2x128xf32>
    %283 = arith.divf %281, %282 : vector<2x128xf32>
    %284 = vector.extract_strided_slice %277 {offsets = [0, 128], sizes = [2, 128], strides = [1, 1]} : vector<2x512xf32> to vector<2x128xf32>
    %285 = arith.negf %284 : vector<2x128xf32>
    %286 = math.exp %285 : vector<2x128xf32>
    %cst_148 = arith.constant 1.000000e+00 : f32
    %287 = vector.broadcast %cst_148 : f32 to vector<2x128xf32>
    %288 = arith.addf %287, %286 : vector<2x128xf32>
    %289 = arith.divf %287, %288 : vector<2x128xf32>
    %290 = vector.extract_strided_slice %277 {offsets = [0, 256], sizes = [2, 128], strides = [1, 1]} : vector<2x512xf32> to vector<2x128xf32>
    %291 = math.tanh %290 : vector<2x128xf32>
    %292 = vector.extract_strided_slice %277 {offsets = [0, 384], sizes = [2, 128], strides = [1, 1]} : vector<2x512xf32> to vector<2x128xf32>
    %293 = arith.negf %292 : vector<2x128xf32>
    %294 = math.exp %293 : vector<2x128xf32>
    %cst_149 = arith.constant 1.000000e+00 : f32
    %295 = vector.broadcast %cst_149 : f32 to vector<2x128xf32>
    %296 = arith.addf %295, %294 : vector<2x128xf32>
    %297 = arith.divf %295, %296 : vector<2x128xf32>
    %298 = arith.mulf %289, %270 : vector<2x128xf32>
    %299 = arith.mulf %283, %291 : vector<2x128xf32>
    %300 = arith.addf %298, %299 : vector<2x128xf32>
    %301 = math.tanh %300 : vector<2x128xf32>
    %302 = arith.mulf %297, %301 : vector<2x128xf32>
    %303 = vector.extract_strided_slice %150 {offsets = [10, 0], sizes = [2, 512], strides = [1, 1]} : vector<16x512xf32> to vector<2x512xf32>
    %304 = arith.truncf %302 : vector<2x128xf32> to vector<2x128xbf16>
    %c0_150 = arith.constant 0 : index
    %c0_151 = arith.constant 0 : index
    %305 = vector.load %arg3[%c0_150, %c0_151] : memref<128x512xbf16, #tpu.memory_space<vmem>>, vector<128x512xbf16>
    %cst_152 = arith.constant dense<0.000000e+00> : vector<2x512xf32>
    %306 = tpu.matmul %304, %305, %cst_152 {dimension_numbers = #tpu.dot_dimension_numbers<[1], [0], [0], [1], [0, 0, 1, 1], [], []>} : vector<2x128xbf16>, vector<128x512xbf16>, vector<2x512xf32> -> vector<2x512xf32>
    %307 = arith.addf %303, %306 : vector<2x512xf32>
    %308 = vector.extract_strided_slice %307 {offsets = [0, 0], sizes = [2, 128], strides = [1, 1]} : vector<2x512xf32> to vector<2x128xf32>
    %309 = arith.negf %308 : vector<2x128xf32>
    %310 = math.exp %309 : vector<2x128xf32>
    %cst_153 = arith.constant 1.000000e+00 : f32
    %311 = vector.broadcast %cst_153 : f32 to vector<2x128xf32>
    %312 = arith.addf %311, %310 : vector<2x128xf32>
    %313 = arith.divf %311, %312 : vector<2x128xf32>
    %314 = vector.extract_strided_slice %307 {offsets = [0, 128], sizes = [2, 128], strides = [1, 1]} : vector<2x512xf32> to vector<2x128xf32>
    %315 = arith.negf %314 : vector<2x128xf32>
    %316 = math.exp %315 : vector<2x128xf32>
    %cst_154 = arith.constant 1.000000e+00 : f32
    %317 = vector.broadcast %cst_154 : f32 to vector<2x128xf32>
    %318 = arith.addf %317, %316 : vector<2x128xf32>
    %319 = arith.divf %317, %318 : vector<2x128xf32>
    %320 = vector.extract_strided_slice %307 {offsets = [0, 256], sizes = [2, 128], strides = [1, 1]} : vector<2x512xf32> to vector<2x128xf32>
    %321 = math.tanh %320 : vector<2x128xf32>
    %322 = vector.extract_strided_slice %307 {offsets = [0, 384], sizes = [2, 128], strides = [1, 1]} : vector<2x512xf32> to vector<2x128xf32>
    %323 = arith.negf %322 : vector<2x128xf32>
    %324 = math.exp %323 : vector<2x128xf32>
    %cst_155 = arith.constant 1.000000e+00 : f32
    %325 = vector.broadcast %cst_155 : f32 to vector<2x128xf32>
    %326 = arith.addf %325, %324 : vector<2x128xf32>
    %327 = arith.divf %325, %326 : vector<2x128xf32>
    %328 = arith.mulf %319, %300 : vector<2x128xf32>
    %329 = arith.mulf %313, %321 : vector<2x128xf32>
    %330 = arith.addf %328, %329 : vector<2x128xf32>
    %331 = math.tanh %330 : vector<2x128xf32>
    %332 = arith.mulf %327, %331 : vector<2x128xf32>
    %333 = vector.extract_strided_slice %150 {offsets = [12, 0], sizes = [2, 512], strides = [1, 1]} : vector<16x512xf32> to vector<2x512xf32>
    %334 = arith.truncf %332 : vector<2x128xf32> to vector<2x128xbf16>
    %c0_156 = arith.constant 0 : index
    %c0_157 = arith.constant 0 : index
    %335 = vector.load %arg3[%c0_156, %c0_157] : memref<128x512xbf16, #tpu.memory_space<vmem>>, vector<128x512xbf16>
    %cst_158 = arith.constant dense<0.000000e+00> : vector<2x512xf32>
    %336 = tpu.matmul %334, %335, %cst_158 {dimension_numbers = #tpu.dot_dimension_numbers<[1], [0], [0], [1], [0, 0, 1, 1], [], []>} : vector<2x128xbf16>, vector<128x512xbf16>, vector<2x512xf32> -> vector<2x512xf32>
    %337 = arith.addf %333, %336 : vector<2x512xf32>
    %338 = vector.extract_strided_slice %337 {offsets = [0, 0], sizes = [2, 128], strides = [1, 1]} : vector<2x512xf32> to vector<2x128xf32>
    %339 = arith.negf %338 : vector<2x128xf32>
    %340 = math.exp %339 : vector<2x128xf32>
    %cst_159 = arith.constant 1.000000e+00 : f32
    %341 = vector.broadcast %cst_159 : f32 to vector<2x128xf32>
    %342 = arith.addf %341, %340 : vector<2x128xf32>
    %343 = arith.divf %341, %342 : vector<2x128xf32>
    %344 = vector.extract_strided_slice %337 {offsets = [0, 128], sizes = [2, 128], strides = [1, 1]} : vector<2x512xf32> to vector<2x128xf32>
    %345 = arith.negf %344 : vector<2x128xf32>
    %346 = math.exp %345 : vector<2x128xf32>
    %cst_160 = arith.constant 1.000000e+00 : f32
    %347 = vector.broadcast %cst_160 : f32 to vector<2x128xf32>
    %348 = arith.addf %347, %346 : vector<2x128xf32>
    %349 = arith.divf %347, %348 : vector<2x128xf32>
    %350 = vector.extract_strided_slice %337 {offsets = [0, 256], sizes = [2, 128], strides = [1, 1]} : vector<2x512xf32> to vector<2x128xf32>
    %351 = math.tanh %350 : vector<2x128xf32>
    %352 = vector.extract_strided_slice %337 {offsets = [0, 384], sizes = [2, 128], strides = [1, 1]} : vector<2x512xf32> to vector<2x128xf32>
    %353 = arith.negf %352 : vector<2x128xf32>
    %354 = math.exp %353 : vector<2x128xf32>
    %cst_161 = arith.constant 1.000000e+00 : f32
    %355 = vector.broadcast %cst_161 : f32 to vector<2x128xf32>
    %356 = arith.addf %355, %354 : vector<2x128xf32>
    %357 = arith.divf %355, %356 : vector<2x128xf32>
    %358 = arith.mulf %349, %330 : vector<2x128xf32>
    %359 = arith.mulf %343, %351 : vector<2x128xf32>
    %360 = arith.addf %358, %359 : vector<2x128xf32>
    %361 = math.tanh %360 : vector<2x128xf32>
    %362 = arith.mulf %357, %361 : vector<2x128xf32>
    %363 = vector.extract_strided_slice %150 {offsets = [14, 0], sizes = [2, 512], strides = [1, 1]} : vector<16x512xf32> to vector<2x512xf32>
    %364 = arith.truncf %362 : vector<2x128xf32> to vector<2x128xbf16>
    %c0_162 = arith.constant 0 : index
    %c0_163 = arith.constant 0 : index
    %365 = vector.load %arg3[%c0_162, %c0_163] : memref<128x512xbf16, #tpu.memory_space<vmem>>, vector<128x512xbf16>
    %cst_164 = arith.constant dense<0.000000e+00> : vector<2x512xf32>
    %366 = tpu.matmul %364, %365, %cst_164 {dimension_numbers = #tpu.dot_dimension_numbers<[1], [0], [0], [1], [0, 0, 1, 1], [], []>} : vector<2x128xbf16>, vector<128x512xbf16>, vector<2x512xf32> -> vector<2x512xf32>
    %367 = arith.addf %363, %366 : vector<2x512xf32>
    %368 = vector.extract_strided_slice %367 {offsets = [0, 0], sizes = [2, 128], strides = [1, 1]} : vector<2x512xf32> to vector<2x128xf32>
    %369 = arith.negf %368 : vector<2x128xf32>
    %370 = math.exp %369 : vector<2x128xf32>
    %cst_165 = arith.constant 1.000000e+00 : f32
    %371 = vector.broadcast %cst_165 : f32 to vector<2x128xf32>
    %372 = arith.addf %371, %370 : vector<2x128xf32>
    %373 = arith.divf %371, %372 : vector<2x128xf32>
    %374 = vector.extract_strided_slice %367 {offsets = [0, 128], sizes = [2, 128], strides = [1, 1]} : vector<2x512xf32> to vector<2x128xf32>
    %375 = arith.negf %374 : vector<2x128xf32>
    %376 = math.exp %375 : vector<2x128xf32>
    %cst_166 = arith.constant 1.000000e+00 : f32
    %377 = vector.broadcast %cst_166 : f32 to vector<2x128xf32>
    %378 = arith.addf %377, %376 : vector<2x128xf32>
    %379 = arith.divf %377, %378 : vector<2x128xf32>
    %380 = vector.extract_strided_slice %367 {offsets = [0, 256], sizes = [2, 128], strides = [1, 1]} : vector<2x512xf32> to vector<2x128xf32>
    %381 = math.tanh %380 : vector<2x128xf32>
    %382 = vector.extract_strided_slice %367 {offsets = [0, 384], sizes = [2, 128], strides = [1, 1]} : vector<2x512xf32> to vector<2x128xf32>
    %383 = arith.negf %382 : vector<2x128xf32>
    %384 = math.exp %383 : vector<2x128xf32>
    %cst_167 = arith.constant 1.000000e+00 : f32
    %385 = vector.broadcast %cst_167 : f32 to vector<2x128xf32>
    %386 = arith.addf %385, %384 : vector<2x128xf32>
    %387 = arith.divf %385, %386 : vector<2x128xf32>
    %388 = arith.mulf %379, %360 : vector<2x128xf32>
    %389 = arith.mulf %373, %381 : vector<2x128xf32>
    %390 = arith.addf %388, %389 : vector<2x128xf32>
    %391 = math.tanh %390 : vector<2x128xf32>
    %392 = arith.mulf %387, %391 : vector<2x128xf32>
    %c0_168 = arith.constant 0 : index
    %c0_169 = arith.constant 0 : index
    %393 = vector.load %arg5[%c0_168, %c0_169] : memref<1x128xf32, #tpu.memory_space<vmem>>, vector<1x128xf32>
    %394 = vector.broadcast %393 : vector<1x128xf32> to vector<2x128xf32>
    %395 = arith.mulf %392, %394 : vector<2x128xf32>
    %cst_170 = arith.constant dense<0.000000e+00> : vector<2xf32>
    %396 = vector.multi_reduction <add>, %395, %cst_170 [1] : vector<2x128xf32> to vector<2xf32>
    %397 = vector.shape_cast %396 : vector<2xf32> to vector<2x1xf32>
    %c0_171 = arith.constant 0 : index
    %398 = memref.load %arg6[%c0_171] : memref<1xf32, #tpu.memory_space<smem>>
    %399 = vector.broadcast %398 : f32 to vector<2x1xf32>
    %400 = arith.addf %397, %399 : vector<2x1xf32>
    %c0_172 = arith.constant 0 : index
    %c0_173 = arith.constant 0 : index
    %401 = vector.load %arg7[%c0_172, %c0_173] : memref<2x1xf32, #tpu.memory_space<vmem>>, vector<2x1xf32>
    tpu.vector_store %arg7[%c0_172, %c0_173], %400 {strides = array<i32>} : memref<2x1xf32, #tpu.memory_space<vmem>>, vector<2x1xf32>,
    return
  }
}

</mosaic_0001>

<llo_original>
// kernel: bert_lstm_forward.1
$region0: #{bert_lstm_forward.1}
  #allocation0 [shape = 'u32[]', space=smem, size = 0x4, offset = 0x4, fixed_abs, tag = 'smem constant byte address 0x4 - core index']
  #allocation1 [shape = 'u32[144,128]{1,0:T(1,128)}', space=vmem, size = 0x12000, scoped, tag = 'internal scratch']
  #allocation2 [shape = 'f32[16,768]{1,0:T(8,128)}', space=vmem, size = 0xc000, scoped, tag = 'scratch operand']
  #allocation3 [shape = 's32[16]{0}', space=sflag, size = 0x40, scoped, tag = 'scratch operand']
  #allocation4 [shape = 'f32[1]{0:T(128)S(6)}', space=smem, size = 0x200, scoped, tag = 'scoped memory for bert_lstm_forward.1']
  #allocation14 [shape = 's32[]', space=sflag, size = 0x4, offset = 0, fixed_abs, tag = 'sflag constant byte address 0x0 - dummy sync flag']
  #allocation15 [shape = 's32[]', space=sflag, size = 0x4, offset = 0, fixed_abs, tag = 'sflag constant byte address 0x0 - dummy sync flag']
  #allocation16 [shape = 's32[]', space=sflag, size = 0x4, offset = 0, fixed_abs, tag = 'sflag constant byte address 0x0 - dummy sync flag']
  #allocation17 [shape = 's32[]', space=sflag, size = 0x4, offset = 0, fixed_abs, tag = 'sflag constant byte address 0x0 - dummy sync flag']
  #allocation18 [shape = 's32[]', space=sflag, size = 0x4, offset = 0, fixed_abs, tag = 'sflag constant byte address 0x0 - dummy sync flag']
  #allocation19 [shape = 's32[]', space=sflag, size = 0x4, offset = 0, fixed_abs, tag = 'sflag constant byte address 0x0 - dummy sync flag']
  #allocation20 [shape = 's32[]', space=sflag, size = 0x4, offset = 0, fixed_abs, tag = 'sflag constant byte address 0x0 - dummy sync flag']
  #allocation21 [shape = 's32[]', space=sflag, size = 0x4, offset = 0, fixed_abs, tag = 'sflag constant byte address 0x0 - dummy sync flag']
  #allocation22 [shape = 's32[]', space=sflag, size = 0x4, offset = 0, fixed_abs, tag = 'sflag constant byte address 0x0 - dummy sync flag']
  #allocation23 [shape = 's32[]', space=sflag, size = 0x4, offset = 0, fixed_abs, tag = 'sflag constant byte address 0x0 - dummy sync flag']
  #allocation24 [shape = 's32[]', space=sflag, size = 0x4, offset = 0, fixed_abs, tag = 'sflag constant byte address 0x0 - dummy sync flag']
  #allocation25 [shape = 's32[]', space=sflag, size = 0x4, offset = 0, fixed_abs, tag = 'sflag constant byte address 0x0 - dummy sync flag']
  #allocation26 [shape = 's32[]', space=sflag, size = 0x4, offset = 0, fixed_abs, tag = 'sflag constant byte address 0x0 - dummy sync flag']
  #allocation27 [shape = 's32[]', space=sflag, size = 0x4, offset = 0, fixed_abs, tag = 'sflag constant byte address 0x0 - dummy sync flag']
  #allocation28 [shape = 's32[]', space=sflag, size = 0x4, offset = 0, fixed_abs, tag = 'sflag constant byte address 0x0 - dummy sync flag']
  #allocation29 [shape = 's32[]', space=sflag, size = 0x4, offset = 0, fixed_abs, tag = 'sflag constant byte address 0x0 - dummy sync flag']
  %s0 = inlined_call_operand.vmem [shape: s32[16], index: 0, kind: input, shape index: {}]
  %s1 = inlined_call_operand.hbm [shape: f32[1000,768], index: 1, kind: input, shape index: {}]
  %s2 = inlined_call_operand.hbm [shape: bf16[768,512], index: 2, kind: input, shape index: {}]
  %s3 = inlined_call_operand.hbm [shape: bf16[128,512], index: 3, kind: input, shape index: {}]
  %s4 = inlined_call_operand.hbm [shape: f32[1,512], index: 4, kind: input, shape index: {}]
  %s5 = inlined_call_operand.hbm [shape: f32[1,128], index: 5, kind: input, shape index: {}]
  %s6 = inlined_call_operand.<no memory space> [shape: f32[1], index: 6, kind: input, shape index: {}]
  %s7 = inlined_call_operand.vmem [shape: f32[2,1], index: 7, kind: output, shape index: {}]
  %s8 = sld [smem:[#allocation0]]
  $region54: #{bert_lstm_forward.1} parent=0
    _
  %s10 = ssub.s32 1, %s8
  %s11 = scalar_select 0, %s10, %s8
  %12 = sst [smem:[#allocation4]] %s6
  $region1: #{bert_lstm_forward.1} parent=0
    #allocation5 [shape = 'u8[512]{0}', space=smem, size = 0x200, scoped, tag = 'input window, operand 0, single buffered']
    #allocation6 [shape = 's32[1]{0}', space=sflag, size = 0x4, scoped, tag = 'scoped memory for bert_lstm_forward.1']
    #allocation7 [shape = 's32[1]{0}', space=sflag, size = 0x4, scoped, tag = 'scoped memory for bert_lstm_forward.1']
    #allocation8 [shape = 'u8[786432]{0}', space=vmem, size = 0xc0000, scoped, tag = 'input window, operand 2, single buffered']
    #allocation9 [shape = 'u8[131072]{0}', space=vmem, size = 0x20000, scoped, tag = 'input window, operand 3, single buffered']
    #allocation10 [shape = 's32[1]{0}', space=sflag, size = 0x4, scoped, tag = 'scoped memory for bert_lstm_forward.1']
    #allocation11 [shape = 'u8[2048]{0}', space=vmem, size = 0x800, scoped, tag = 'input window, operand 4, single buffered']
    #allocation12 [shape = 'u8[512]{0}', space=vmem, size = 0x400, scoped, tag = 'input window, operand 5, single buffered']
    #allocation13 [shape = 's32[1]{0}', space=sflag, size = 0x4, scoped, tag = 'scoped memory for bert_lstm_forward.1']
    %13 = vsyncpa [#allocation7], 0
    %14 = vsyncpa [#allocation6], 0
    %15 = vsyncpa [#allocation10], 0
    %16 = vsyncpa [#allocation13], 0
    // Predicated region
    $region2: #{bert_lstm_forward.1} parent=1 // pred_check
      _
    $region3: #{bert_lstm_forward.1} parent=1 // pred_check_branch
      %18 = sbr.rel (0) target = $region5
    $region4: #{bert_lstm_forward.1} parent=1 // pred_region
      %s20 = ssub.s32 16, 16
      %21 = vsyncadd [#allocation7], %s20
      %s23 = sshll.u32 %s0, 4
      %s24 = int_to_ptr.vmem [resolvable:$true] %s23
      %26 = dma.vmem_to_smem %s24, 16, [#allocation5], [#allocation7]
    $region5: #{bert_lstm_forward.1} parent=1 // pred_fallthru
      _
    // Predicated region
    $region6: #{bert_lstm_forward.1} parent=1 // pred_check
      _
    $region7: #{bert_lstm_forward.1} parent=1 // pred_check_branch
      %28 = sbr.rel (0) target = $region9
    $region8: #{bert_lstm_forward.1} parent=1 // pred_region
      %s30 = ssub.s32 24576, 24576
      %31 = vsyncadd [#allocation6], %s30
      %s32 = sshll.u32 [#allocation8], 4
      %s33 = int_to_ptr.vmem [resolvable:$true] %s32
      %38 = dma.hbm_to_vmem [thread:$0]  %s2, 24576, %s33, [#allocation6], 256, 256, 16
    $region9: #{bert_lstm_forward.1} parent=1 // pred_fallthru
      _
    // Predicated region
    $region10: #{bert_lstm_forward.1} parent=1 // pred_check
      _
    $region11: #{bert_lstm_forward.1} parent=1 // pred_check_branch
      %40 = sbr.rel (0) target = $region13
    $region12: #{bert_lstm_forward.1} parent=1 // pred_region
      %s42 = ssub.s32 4096, 4096
      %43 = vsyncadd [#allocation10], %s42
      %s44 = sshll.u32 [#allocation9], 4
      %s45 = int_to_ptr.vmem [resolvable:$true] %s44
      %50 = dma.hbm_to_vmem [thread:$0]  %s3, 4096, %s45, [#allocation10], 256, 256, 16
    $region13: #{bert_lstm_forward.1} parent=1 // pred_fallthru
      _
    // Predicated region
    $region14: #{bert_lstm_forward.1} parent=1 // pred_check
      _
    $region15: #{bert_lstm_forward.1} parent=1 // pred_check_branch
      %52 = sbr.rel (0) target = $region17
    $region16: #{bert_lstm_forward.1} parent=1 // pred_region
      %s54 = ssub.s32 64, 64
      %55 = vsyncadd [#allocation10], %s54
      %s57 = sshll.u32 [#allocation11], 4
      %s58 = int_to_ptr.vmem [resolvable:$true] %s57
      %60 = dma.hbm_to_vmem [thread:$0]  %s4, 64, %s58, [#allocation10]
    $region17: #{bert_lstm_forward.1} parent=1 // pred_fallthru
      _
    // Predicated region
    $region18: #{bert_lstm_forward.1} parent=1 // pred_check
      _
    $region19: #{bert_lstm_forward.1} parent=1 // pred_check_branch
      %62 = sbr.rel (0) target = $region21
    $region20: #{bert_lstm_forward.1} parent=1 // pred_region
      %s64 = ssub.s32 16, 16
      %65 = vsyncadd [#allocation13], %s64
      %s67 = sshll.u32 [#allocation12], 4
      %s68 = int_to_ptr.vmem [resolvable:$true] %s67
      %70 = dma.hbm_to_vmem [thread:$0]  %s5, 16, %s68, [#allocation13]
    $region21: #{bert_lstm_forward.1} parent=1 // pred_fallthru
      _
    // Predicated region
    $region22: #{bert_lstm_forward.1} parent=1 // pred_check
      _
    $region23: #{bert_lstm_forward.1} parent=1 // pred_check_branch
      %72 = sbr.rel (0) target = $region25
    $region24: #{bert_lstm_forward.1} parent=1 // pred_region
      _
    $region25: #{bert_lstm_forward.1} parent=1 // pred_fallthru
      _
    // Predicated region
    $region26: #{bert_lstm_forward.1} parent=1 // pred_check
      _
    $region27: #{bert_lstm_forward.1} parent=1 // pred_check_branch
      %74 = sbr.rel (0) target = $region29
    $region28: #{bert_lstm_forward.1} parent=1 // pred_region
      %75 = dma.done [#allocation7], 16
    $region29: #{bert_lstm_forward.1} parent=1 // pred_fallthru
      _
    // Predicated region
    $region30: #{bert_lstm_forward.1} parent=1 // pred_check
      _
    $region31: #{bert_lstm_forward.1} parent=1 // pred_check_branch
      %77 = sbr.rel (0) target = $region33
    $region32: #{bert_lstm_forward.1} parent=1 // pred_region
      %78 = dma.done [#allocation6], 24576
    $region33: #{bert_lstm_forward.1} parent=1 // pred_fallthru
      _
    // Predicated region
    $region34: #{bert_lstm_forward.1} parent=1 // pred_check
      _
    $region35: #{bert_lstm_forward.1} parent=1 // pred_check_branch
      %80 = sbr.rel (0) target = $region37
    $region36: #{bert_lstm_forward.1} parent=1 // pred_region
      %81 = dma.done [#allocation10], 4096
    $region37: #{bert_lstm_forward.1} parent=1 // pred_fallthru
      _
    // Predicated region
    $region38: #{bert_lstm_forward.1} parent=1 // pred_check
      _
    $region39: #{bert_lstm_forward.1} parent=1 // pred_check_branch
      %83 = sbr.rel (0) target = $region41
    $region40: #{bert_lstm_forward.1} parent=1 // pred_region
      %84 = dma.done [#allocation10], 64
    $region41: #{bert_lstm_forward.1} parent=1 // pred_fallthru
      _
    // Predicated region
    $region42: #{bert_lstm_forward.1} parent=1 // pred_check
      _
    $region43: #{bert_lstm_forward.1} parent=1 // pred_check_branch
      %86 = sbr.rel (0) target = $region45
    $region44: #{bert_lstm_forward.1} parent=1 // pred_region
      %87 = dma.done [#allocation13], 16
    $region45: #{bert_lstm_forward.1} parent=1 // pred_fallthru
      _
    %88 = sfence
    %s90 = sld [smem:[#allocation5]]
    %s91 = sshrl.u32 %s90, 3
    %s92 = sand.u32 %s90, 7
    %s93 = smul.u32 %s91, 48
    %s94 = sadd.s32 %s92, %s93
    %s95 = smul.addr %s94, 16
    %s96 = scalar_lea.hbm %s1, %s95
    %s98 = sshll.u32 [#allocation2], 4
    %s99 = int_to_ptr.vmem [resolvable:$true] %s98
    %101 = dma.hbm_to_vmem [thread:$0]  %s96, 96, %s99, [#allocation3], 128, 128, 1
    %s102 = sld [smem:[#allocation5 + $0x1]]
    %s103 = sshrl.u32 %s102, 3
    %s104 = sand.u32 %s102, 7
    %s105 = smul.u32 %s103, 48
    %s106 = sadd.s32 %s104, %s105
    %s107 = smul.addr %s106, 16
    %s108 = scalar_lea.hbm %s1, %s107
    %s109 = scalar_lea.vmem [#allocation2], 1
    %s110 = scalar_lea.sflag [#allocation3], 1
    %s112 = sshll.u32 %s109, 4
    %s113 = int_to_ptr.vmem [resolvable:$true] %s112
    %115 = dma.hbm_to_vmem [thread:$0]  %s108, 96, %s113, %s110, 128, 128, 1
    %s116 = sld [smem:[#allocation5 + $0x2]]
    %s117 = sshrl.u32 %s116, 3
    %s118 = sand.u32 %s116, 7
    %s119 = smul.u32 %s117, 48
    %s120 = sadd.s32 %s118, %s119
    %s121 = smul.addr %s120, 16
    %s122 = scalar_lea.hbm %s1, %s121
    %s123 = scalar_lea.vmem [#allocation2], 2
    %s124 = scalar_lea.sflag [#allocation3], 2
    %s126 = sshll.u32 %s123, 4
    %s127 = int_to_ptr.vmem [resolvable:$true] %s126
    %129 = dma.hbm_to_vmem [thread:$0]  %s122, 96, %s127, %s124, 128, 128, 1
    %s130 = sld [smem:[#allocation5 + $0x3]]
    %s131 = sshrl.u32 %s130, 3
    %s132 = sand.u32 %s130, 7
    %s133 = smul.u32 %s131, 48
    %s134 = sadd.s32 %s132, %s133
    %s135 = smul.addr %s134, 16
    %s136 = scalar_lea.hbm %s1, %s135
    %s137 = scalar_lea.vmem [#allocation2], 3
    %s138 = scalar_lea.sflag [#allocation3], 3
    %s140 = sshll.u32 %s137, 4
    %s141 = int_to_ptr.vmem [resolvable:$true] %s140
    %143 = dma.hbm_to_vmem [thread:$0]  %s136, 96, %s141, %s138, 128, 128, 1
    %s144 = sld [smem:[#allocation5 + $0x4]]
    %s145 = sshrl.u32 %s144, 3
    %s146 = sand.u32 %s144, 7
    %s147 = smul.u32 %s145, 48
    %s148 = sadd.s32 %s146, %s147
    %s149 = smul.addr %s148, 16
    %s150 = scalar_lea.hbm %s1, %s149
    %s151 = scalar_lea.vmem [#allocation2], 4
    %s152 = scalar_lea.sflag [#allocation3], 4
    %s154 = sshll.u32 %s151, 4
    %s155 = int_to_ptr.vmem [resolvable:$true] %s154
    %157 = dma.hbm_to_vmem [thread:$0]  %s150, 96, %s155, %s152, 128, 128, 1
    %s158 = sld [smem:[#allocation5 + $0x5]]
    %s159 = sshrl.u32 %s158, 3
    %s160 = sand.u32 %s158, 7
    %s161 = smul.u32 %s159, 48
    %s162 = sadd.s32 %s160, %s161
    %s163 = smul.addr %s162, 16
    %s164 = scalar_lea.hbm %s1, %s163
    %s165 = scalar_lea.vmem [#allocation2], 5
    %s166 = scalar_lea.sflag [#allocation3], 5
    %s168 = sshll.u32 %s165, 4
    %s169 = int_to_ptr.vmem [resolvable:$true] %s168
    %171 = dma.hbm_to_vmem [thread:$0]  %s164, 96, %s169, %s166, 128, 128, 1
    %s172 = sld [smem:[#allocation5 + $0x6]]
    %s173 = sshrl.u32 %s172, 3
    %s174 = sand.u32 %s172, 7
    %s175 = smul.u32 %s173, 48
    %s176 = sadd.s32 %s174, %s175
    %s177 = smul.addr %s176, 16
    %s178 = scalar_lea.hbm %s1, %s177
    %s179 = scalar_lea.vmem [#allocation2], 6
    %s180 = scalar_lea.sflag [#allocation3], 6
    %s182 = sshll.u32 %s179, 4
    %s183 = int_to_ptr.vmem [resolvable:$true] %s182
    %185 = dma.hbm_to_vmem [thread:$0]  %s178, 96, %s183, %s180, 128, 128, 1
    %s186 = sld [smem:[#allocation5 + $0x7]]
    %s187 = sshrl.u32 %s186, 3
    %s188 = sand.u32 %s186, 7
    %s189 = smul.u32 %s187, 48
    %s190 = sadd.s32 %s188, %s189
    %s191 = smul.addr %s190, 16
    %s192 = scalar_lea.hbm %s1, %s191
    %s193 = scalar_lea.vmem [#allocation2], 7
    %s194 = scalar_lea.sflag [#allocation3], 7
    %s196 = sshll.u32 %s193, 4
    %s197 = int_to_ptr.vmem [resolvable:$true] %s196
    %199 = dma.hbm_to_vmem [thread:$0]  %s192, 96, %s197, %s194, 128, 128, 1
    %s200 = sld [smem:[#allocation5 + $0x8]]
    %s201 = sshrl.u32 %s200, 3
    %s202 = sand.u32 %s200, 7
    %s203 = smul.u32 %s201, 48
    %s204 = sadd.s32 %s202, %s203
    %s205 = smul.addr %s204, 16
    %s206 = scalar_lea.hbm %s1, %s205
    %s207 = scalar_lea.vmem [#allocation2], 48
    %s208 = scalar_lea.sflag [#allocation3], 8
    %s210 = sshll.u32 %s207, 4
    %s211 = int_to_ptr.vmem [resolvable:$true] %s210
    %213 = dma.hbm_to_vmem [thread:$0]  %s206, 96, %s211, %s208, 128, 128, 1
    %s214 = sld [smem:[#allocation5 + $0x9]]
    %s215 = sshrl.u32 %s214, 3
    %s216 = sand.u32 %s214, 7
    %s217 = smul.u32 %s215, 48
    %s218 = sadd.s32 %s216, %s217
    %s219 = smul.addr %s218, 16
    %s220 = scalar_lea.hbm %s1, %s219
    %s221 = scalar_lea.vmem [#allocation2], 49
    %s222 = scalar_lea.sflag [#allocation3], 9
    %s224 = sshll.u32 %s221, 4
    %s225 = int_to_ptr.vmem [resolvable:$true] %s224
    %227 = dma.hbm_to_vmem [thread:$0]  %s220, 96, %s225, %s222, 128, 128, 1
    %s228 = sld [smem:[#allocation5 + $0xa]]
    %s229 = sshrl.u32 %s228, 3
    %s230 = sand.u32 %s228, 7
    %s231 = smul.u32 %s229, 48
    %s232 = sadd.s32 %s230, %s231
    %s233 = smul.addr %s232, 16
    %s234 = scalar_lea.hbm %s1, %s233
    %s235 = scalar_lea.vmem [#allocation2], 50
    %s236 = scalar_lea.sflag [#allocation3], 10
    %s238 = sshll.u32 %s235, 4
    %s239 = int_to_ptr.vmem [resolvable:$true] %s238
    %241 = dma.hbm_to_vmem [thread:$0]  %s234, 96, %s239, %s236, 128, 128, 1
    %s242 = sld [smem:[#allocation5 + $0xb]]
    %s243 = sshrl.u32 %s242, 3
    %s244 = sand.u32 %s242, 7
    %s245 = smul.u32 %s243, 48
    %s246 = sadd.s32 %s244, %s245
    %s247 = smul.addr %s246, 16
    %s248 = scalar_lea.hbm %s1, %s247
    %s249 = scalar_lea.vmem [#allocation2], 51
    %s250 = scalar_lea.sflag [#allocation3], 11
    %s252 = sshll.u32 %s249, 4
    %s253 = int_to_ptr.vmem [resolvable:$true] %s252
    %255 = dma.hbm_to_vmem [thread:$0]  %s248, 96, %s253, %s250, 128, 128, 1
    %s256 = sld [smem:[#allocation5 + $0xc]]
    %s257 = sshrl.u32 %s256, 3
    %s258 = sand.u32 %s256, 7
    %s259 = smul.u32 %s257, 48
    %s260 = sadd.s32 %s258, %s259
    %s261 = smul.addr %s260, 16
    %s262 = scalar_lea.hbm %s1, %s261
    %s263 = scalar_lea.vmem [#allocation2], 52
    %s264 = scalar_lea.sflag [#allocation3], 12
    %s266 = sshll.u32 %s263, 4
    %s267 = int_to_ptr.vmem [resolvable:$true] %s266
    %269 = dma.hbm_to_vmem [thread:$0]  %s262, 96, %s267, %s264, 128, 128, 1
    %s270 = sld [smem:[#allocation5 + $0xd]]
    %s271 = sshrl.u32 %s270, 3
    %s272 = sand.u32 %s270, 7
    %s273 = smul.u32 %s271, 48
    %s274 = sadd.s32 %s272, %s273
    %s275 = smul.addr %s274, 16
    %s276 = scalar_lea.hbm %s1, %s275
    %s277 = scalar_lea.vmem [#allocation2], 53
    %s278 = scalar_lea.sflag [#allocation3], 13
    %s280 = sshll.u32 %s277, 4
    %s281 = int_to_ptr.vmem [resolvable:$true] %s280
    %283 = dma.hbm_to_vmem [thread:$0]  %s276, 96, %s281, %s278, 128, 128, 1
    %s284 = sld [smem:[#allocation5 + $0xe]]
    %s285 = sshrl.u32 %s284, 3
    %s286 = sand.u32 %s284, 7
    %s287 = smul.u32 %s285, 48
    %s288 = sadd.s32 %s286, %s287
    %s289 = smul.addr %s288, 16
    %s290 = scalar_lea.hbm %s1, %s289
    %s291 = scalar_lea.vmem [#allocation2], 54
    %s292 = scalar_lea.sflag [#allocation3], 14
    %s294 = sshll.u32 %s291, 4
    %s295 = int_to_ptr.vmem [resolvable:$true] %s294
    %297 = dma.hbm_to_vmem [thread:$0]  %s290, 96, %s295, %s292, 128, 128, 1
    %s298 = sld [smem:[#allocation5 + $0xf]]
    %s299 = sshrl.u32 %s298, 3
    %s300 = sand.u32 %s298, 7
    %s301 = smul.u32 %s299, 48
    %s302 = sadd.s32 %s300, %s301
    %s303 = smul.addr %s302, 16
    %s304 = scalar_lea.hbm %s1, %s303
    %s305 = scalar_lea.vmem [#allocation2], 55
    %s306 = scalar_lea.sflag [#allocation3], 15
    %s308 = sshll.u32 %s305, 4
    %s309 = int_to_ptr.vmem [resolvable:$true] %s308
    %311 = dma.hbm_to_vmem [thread:$0]  %s304, 96, %s309, %s306, 128, 128, 1
    %s312 = smul.u32 1, 6
    %s313 = sshll.u32 %s312, 4
    %314 = dma.done [#allocation3], %s313
    %s315 = sshll.u32 %s312, 4
    %316 = dma.done %s110, %s315
    %s317 = sshll.u32 %s312, 4
    %318 = dma.done %s124, %s317
    %s319 = sshll.u32 %s312, 4
    %320 = dma.done %s138, %s319
    %s321 = sshll.u32 %s312, 4
    %322 = dma.done %s152, %s321
    %s323 = sshll.u32 %s312, 4
    %324 = dma.done %s166, %s323
    %s325 = sshll.u32 %s312, 4
    %326 = dma.done %s180, %s325
    %s327 = sshll.u32 %s312, 4
    %328 = dma.done %s194, %s327
    %s329 = sshll.u32 %s312, 4
    %330 = dma.done %s208, %s329
    %s331 = sshll.u32 %s312, 4
    %332 = dma.done %s222, %s331
    %s333 = sshll.u32 %s312, 4
    %334 = dma.done %s236, %s333
    %s335 = sshll.u32 %s312, 4
    %336 = dma.done %s250, %s335
    %s337 = sshll.u32 %s312, 4
    %338 = dma.done %s264, %s337
    %s339 = sshll.u32 %s312, 4
    %340 = dma.done %s278, %s339
    %s341 = sshll.u32 %s312, 4
    %342 = dma.done %s292, %s341
    %s343 = sshll.u32 %s312, 4
    %344 = dma.done %s306, %s343
    %v345 = vld [vmem:[#allocation2] sm:$0xff]
    %v346 = vld [vmem:[#allocation2 + $0x8] sm:$0xff]
    %v347 = vld [vmem:[#allocation2 + $0x10] sm:$0xff]
    %v348 = vld [vmem:[#allocation2 + $0x18] sm:$0xff]
    %v349 = vld [vmem:[#allocation2 + $0x20] sm:$0xff]
    %v350 = vld [vmem:[#allocation2 + $0x28] sm:$0xff]
    %v351 = vld [vmem:[#allocation2 + $0x30] sm:$0xff]
    %v352 = vld [vmem:[#allocation2 + $0x38] sm:$0xff]
    %v353 = vld [vmem:[#allocation2 + $0x40] sm:$0xff]
    %v354 = vld [vmem:[#allocation2 + $0x48] sm:$0xff]
    %v355 = vld [vmem:[#allocation2 + $0x50] sm:$0xff]
    %v356 = vld [vmem:[#allocation2 + $0x58] sm:$0xff]
    %v357 = vpack.c.bf16 %v351, %v345
    %v358 = vpack.c.bf16 %v352, %v346
    %v359 = vpack.c.bf16 %v353, %v347
    %v360 = vpack.c.bf16 %v354, %v348
    %v361 = vpack.c.bf16 %v355, %v349
    %v362 = vpack.c.bf16 %v356, %v350
    %v363 = vld [vmem:[#allocation8] sm:$0xff]
    %v364 = vld [vmem:[#allocation8 + $0x8] sm:$0xff]
    %v365 = vld [vmem:[#allocation8 + $0x10] sm:$0xff]
    %v366 = vld [vmem:[#allocation8 + $0x18] sm:$0xff]
    %v367 = vld [vmem:[#allocation8 + $0x20] sm:$0xff]
    %v368 = vld [vmem:[#allocation8 + $0x28] sm:$0xff]
    %v369 = vld [vmem:[#allocation8 + $0x30] sm:$0xff]
    %v370 = vld [vmem:[#allocation8 + $0x38] sm:$0xff]
    %v371 = vld [vmem:[#allocation8 + $0x40] sm:$0xff]
    %v372 = vld [vmem:[#allocation8 + $0x48] sm:$0xff]
    %v373 = vld [vmem:[#allocation8 + $0x50] sm:$0xff]
    %v374 = vld [vmem:[#allocation8 + $0x58] sm:$0xff]
    %v375 = vld [vmem:[#allocation8 + $0x60] sm:$0xff]
    %v376 = vld [vmem:[#allocation8 + $0x68] sm:$0xff]
    %v377 = vld [vmem:[#allocation8 + $0x70] sm:$0xff]
    %v378 = vld [vmem:[#allocation8 + $0x78] sm:$0xff]
    %v379 = vld [vmem:[#allocation8 + $0x80] sm:$0xff]
    %v380 = vld [vmem:[#allocation8 + $0x88] sm:$0xff]
    %v381 = vld [vmem:[#allocation8 + $0x90] sm:$0xff]
    %v382 = vld [vmem:[#allocation8 + $0x98] sm:$0xff]
    %v383 = vld [vmem:[#allocation8 + $0xa0] sm:$0xff]
    %v384 = vld [vmem:[#allocation8 + $0xa8] sm:$0xff]
    %v385 = vld [vmem:[#allocation8 + $0xb0] sm:$0xff]
    %v386 = vld [vmem:[#allocation8 + $0xb8] sm:$0xff]
    %v387 = vld [vmem:[#allocation8 + $0xc0] sm:$0xff]
    %v388 = vld [vmem:[#allocation8 + $0xc8] sm:$0xff]
    %v389 = vld [vmem:[#allocation8 + $0xd0] sm:$0xff]
    %v390 = vld [vmem:[#allocation8 + $0xd8] sm:$0xff]
    %v391 = vld [vmem:[#allocation8 + $0xe0] sm:$0xff]
    %v392 = vld [vmem:[#allocation8 + $0xe8] sm:$0xff]
    %v393 = vld [vmem:[#allocation8 + $0xf0] sm:$0xff]
    %v394 = vld [vmem:[#allocation8 + $0xf8] sm:$0xff]
    %v395 = vld [vmem:[#allocation8 + $0x100] sm:$0xff]
    %v396 = vld [vmem:[#allocation8 + $0x108] sm:$0xff]
    %v397 = vld [vmem:[#allocation8 + $0x110] sm:$0xff]
    %v398 = vld [vmem:[#allocation8 + $0x118] sm:$0xff]
    %v399 = vld [vmem:[#allocation8 + $0x120] sm:$0xff]
    %v400 = vld [vmem:[#allocation8 + $0x128] sm:$0xff]
    %v401 = vld [vmem:[#allocation8 + $0x130] sm:$0xff]
    %v402 = vld [vmem:[#allocation8 + $0x138] sm:$0xff]
    %v403 = vld [vmem:[#allocation8 + $0x140] sm:$0xff]
    %v404 = vld [vmem:[#allocation8 + $0x148] sm:$0xff]
    %v405 = vld [vmem:[#allocation8 + $0x150] sm:$0xff]
    %v406 = vld [vmem:[#allocation8 + $0x158] sm:$0xff]
    %v407 = vld [vmem:[#allocation8 + $0x160] sm:$0xff]
    %v408 = vld [vmem:[#allocation8 + $0x168] sm:$0xff]
    %v409 = vld [vmem:[#allocation8 + $0x170] sm:$0xff]
    %v410 = vld [vmem:[#allocation8 + $0x178] sm:$0xff]
    %v411 = vld [vmem:[#allocation8 + $0x180] sm:$0xff]
    %v412 = vld [vmem:[#allocation8 + $0x188] sm:$0xff]
    %v413 = vld [vmem:[#allocation8 + $0x190] sm:$0xff]
    %v414 = vld [vmem:[#allocation8 + $0x198] sm:$0xff]
    %v415 = vld [vmem:[#allocation8 + $0x1a0] sm:$0xff]
    %v416 = vld [vmem:[#allocation8 + $0x1a8] sm:$0xff]
    %v417 = vld [vmem:[#allocation8 + $0x1b0] sm:$0xff]
    %v418 = vld [vmem:[#allocation8 + $0x1b8] sm:$0xff]
    %v419 = vld [vmem:[#allocation8 + $0x1c0] sm:$0xff]
    %v420 = vld [vmem:[#allocation8 + $0x1c8] sm:$0xff]
    %v421 = vld [vmem:[#allocation8 + $0x1d0] sm:$0xff]
    %v422 = vld [vmem:[#allocation8 + $0x1d8] sm:$0xff]
    %v423 = vld [vmem:[#allocation8 + $0x1e0] sm:$0xff]
    %v424 = vld [vmem:[#allocation8 + $0x1e8] sm:$0xff]
    %v425 = vld [vmem:[#allocation8 + $0x1f0] sm:$0xff]
    %v426 = vld [vmem:[#allocation8 + $0x1f8] sm:$0xff]
    %v427 = vld [vmem:[#allocation8 + $0x200] sm:$0xff]
    %v428 = vld [vmem:[#allocation8 + $0x208] sm:$0xff]
    %v429 = vld [vmem:[#allocation8 + $0x210] sm:$0xff]
    %v430 = vld [vmem:[#allocation8 + $0x218] sm:$0xff]
    %v431 = vld [vmem:[#allocation8 + $0x220] sm:$0xff]
    %v432 = vld [vmem:[#allocation8 + $0x228] sm:$0xff]
    %v433 = vld [vmem:[#allocation8 + $0x230] sm:$0xff]
    %v434 = vld [vmem:[#allocation8 + $0x238] sm:$0xff]
    %v435 = vld [vmem:[#allocation8 + $0x240] sm:$0xff]
    %v436 = vld [vmem:[#allocation8 + $0x248] sm:$0xff]
    %v437 = vld [vmem:[#allocation8 + $0x250] sm:$0xff]
    %v438 = vld [vmem:[#allocation8 + $0x258] sm:$0xff]
    %v439 = vld [vmem:[#allocation8 + $0x260] sm:$0xff]
    %v440 = vld [vmem:[#allocation8 + $0x268] sm:$0xff]
    %v441 = vld [vmem:[#allocation8 + $0x270] sm:$0xff]
    %v442 = vld [vmem:[#allocation8 + $0x278] sm:$0xff]
    %v443 = vld [vmem:[#allocation8 + $0x280] sm:$0xff]
    %v444 = vld [vmem:[#allocation8 + $0x288] sm:$0xff]
    %v445 = vld [vmem:[#allocation8 + $0x290] sm:$0xff]
    %v446 = vld [vmem:[#allocation8 + $0x298] sm:$0xff]
    %v447 = vld [vmem:[#allocation8 + $0x2a0] sm:$0xff]
    %v448 = vld [vmem:[#allocation8 + $0x2a8] sm:$0xff]
    %v449 = vld [vmem:[#allocation8 + $0x2b0] sm:$0xff]
    %v450 = vld [vmem:[#allocation8 + $0x2b8] sm:$0xff]
    %v451 = vld [vmem:[#allocation8 + $0x2c0] sm:$0xff]
    %v452 = vld [vmem:[#allocation8 + $0x2c8] sm:$0xff]
    %v453 = vld [vmem:[#allocation8 + $0x2d0] sm:$0xff]
    %v454 = vld [vmem:[#allocation8 + $0x2d8] sm:$0xff]
    %v455 = vld [vmem:[#allocation8 + $0x2e0] sm:$0xff]
    %v456 = vld [vmem:[#allocation8 + $0x2e8] sm:$0xff]
    %v457 = vld [vmem:[#allocation8 + $0x2f0] sm:$0xff]
    %v458 = vld [vmem:[#allocation8 + $0x2f8] sm:$0xff]
    %v459 = vld [vmem:[#allocation8 + $0x300] sm:$0xff]
    %v460 = vld [vmem:[#allocation8 + $0x308] sm:$0xff]
    %v461 = vld [vmem:[#allocation8 + $0x310] sm:$0xff]
    %v462 = vld [vmem:[#allocation8 + $0x318] sm:$0xff]
    %v463 = vld [vmem:[#allocation8 + $0x320] sm:$0xff]
    %v464 = vld [vmem:[#allocation8 + $0x328] sm:$0xff]
    %v465 = vld [vmem:[#allocation8 + $0x330] sm:$0xff]
    %v466 = vld [vmem:[#allocation8 + $0x338] sm:$0xff]
    %v467 = vld [vmem:[#allocation8 + $0x340] sm:$0xff]
    %v468 = vld [vmem:[#allocation8 + $0x348] sm:$0xff]
    %v469 = vld [vmem:[#allocation8 + $0x350] sm:$0xff]
    %v470 = vld [vmem:[#allocation8 + $0x358] sm:$0xff]
    %v471 = vld [vmem:[#allocation8 + $0x360] sm:$0xff]
    %v472 = vld [vmem:[#allocation8 + $0x368] sm:$0xff]
    %v473 = vld [vmem:[#allocation8 + $0x370] sm:$0xff]
    %v474 = vld [vmem:[#allocation8 + $0x378] sm:$0xff]
    %v475 = vld [vmem:[#allocation8 + $0x380] sm:$0xff]
    %v476 = vld [vmem:[#allocation8 + $0x388] sm:$0xff]
    %v477 = vld [vmem:[#allocation8 + $0x390] sm:$0xff]
    %v478 = vld [vmem:[#allocation8 + $0x398] sm:$0xff]
    %v479 = vld [vmem:[#allocation8 + $0x3a0] sm:$0xff]
    %v480 = vld [vmem:[#allocation8 + $0x3a8] sm:$0xff]
    %v481 = vld [vmem:[#allocation8 + $0x3b0] sm:$0xff]
    %v482 = vld [vmem:[#allocation8 + $0x3b8] sm:$0xff]
    %v483 = vld [vmem:[#allocation8 + $0x3c0] sm:$0xff]
    %v484 = vld [vmem:[#allocation8 + $0x3c8] sm:$0xff]
    %v485 = vld [vmem:[#allocation8 + $0x3d0] sm:$0xff]
    %v486 = vld [vmem:[#allocation8 + $0x3d8] sm:$0xff]
    %v487 = vld [vmem:[#allocation8 + $0x3e0] sm:$0xff]
    %v488 = vld [vmem:[#allocation8 + $0x3e8] sm:$0xff]
    %v489 = vld [vmem:[#allocation8 + $0x3f0] sm:$0xff]
    %v490 = vld [vmem:[#allocation8 + $0x3f8] sm:$0xff]
    %v491 = vld [vmem:[#allocation8 + $0x400] sm:$0xff]
    %v492 = vld [vmem:[#allocation8 + $0x408] sm:$0xff]
    %v493 = vld [vmem:[#allocation8 + $0x410] sm:$0xff]
    %v494 = vld [vmem:[#allocation8 + $0x418] sm:$0xff]
    %v495 = vld [vmem:[#allocation8 + $0x420] sm:$0xff]
    %v496 = vld [vmem:[#allocation8 + $0x428] sm:$0xff]
    %v497 = vld [vmem:[#allocation8 + $0x430] sm:$0xff]
    %v498 = vld [vmem:[#allocation8 + $0x438] sm:$0xff]
    %v499 = vld [vmem:[#allocation8 + $0x440] sm:$0xff]
    %v500 = vld [vmem:[#allocation8 + $0x448] sm:$0xff]
    %v501 = vld [vmem:[#allocation8 + $0x450] sm:$0xff]
    %v502 = vld [vmem:[#allocation8 + $0x458] sm:$0xff]
    %v503 = vld [vmem:[#allocation8 + $0x460] sm:$0xff]
    %v504 = vld [vmem:[#allocation8 + $0x468] sm:$0xff]
    %v505 = vld [vmem:[#allocation8 + $0x470] sm:$0xff]
    %v506 = vld [vmem:[#allocation8 + $0x478] sm:$0xff]
    %v507 = vld [vmem:[#allocation8 + $0x480] sm:$0xff]
    %v508 = vld [vmem:[#allocation8 + $0x488] sm:$0xff]
    %v509 = vld [vmem:[#allocation8 + $0x490] sm:$0xff]
    %v510 = vld [vmem:[#allocation8 + $0x498] sm:$0xff]
    %v511 = vld [vmem:[#allocation8 + $0x4a0] sm:$0xff]
    %v512 = vld [vmem:[#allocation8 + $0x4a8] sm:$0xff]
    %v513 = vld [vmem:[#allocation8 + $0x4b0] sm:$0xff]
    %v514 = vld [vmem:[#allocation8 + $0x4b8] sm:$0xff]
    %v515 = vld [vmem:[#allocation8 + $0x4c0] sm:$0xff]
    %v516 = vld [vmem:[#allocation8 + $0x4c8] sm:$0xff]
    %v517 = vld [vmem:[#allocation8 + $0x4d0] sm:$0xff]
    %v518 = vld [vmem:[#allocation8 + $0x4d8] sm:$0xff]
    %v519 = vld [vmem:[#allocation8 + $0x4e0] sm:$0xff]
    %v520 = vld [vmem:[#allocation8 + $0x4e8] sm:$0xff]
    %v521 = vld [vmem:[#allocation8 + $0x4f0] sm:$0xff]
    %v522 = vld [vmem:[#allocation8 + $0x4f8] sm:$0xff]
    %v523 = vld [vmem:[#allocation8 + $0x500] sm:$0xff]
    %v524 = vld [vmem:[#allocation8 + $0x508] sm:$0xff]
    %v525 = vld [vmem:[#allocation8 + $0x510] sm:$0xff]
    %v526 = vld [vmem:[#allocation8 + $0x518] sm:$0xff]
    %v527 = vld [vmem:[#allocation8 + $0x520] sm:$0xff]
    %v528 = vld [vmem:[#allocation8 + $0x528] sm:$0xff]
    %v529 = vld [vmem:[#allocation8 + $0x530] sm:$0xff]
    %v530 = vld [vmem:[#allocation8 + $0x538] sm:$0xff]
    %v531 = vld [vmem:[#allocation8 + $0x540] sm:$0xff]
    %v532 = vld [vmem:[#allocation8 + $0x548] sm:$0xff]
    %v533 = vld [vmem:[#allocation8 + $0x550] sm:$0xff]
    %v534 = vld [vmem:[#allocation8 + $0x558] sm:$0xff]
    %v535 = vld [vmem:[#allocation8 + $0x560] sm:$0xff]
    %v536 = vld [vmem:[#allocation8 + $0x568] sm:$0xff]
    %v537 = vld [vmem:[#allocation8 + $0x570] sm:$0xff]
    %v538 = vld [vmem:[#allocation8 + $0x578] sm:$0xff]
    %v539 = vld [vmem:[#allocation8 + $0x580] sm:$0xff]
    %v540 = vld [vmem:[#allocation8 + $0x588] sm:$0xff]
    %v541 = vld [vmem:[#allocation8 + $0x590] sm:$0xff]
    %v542 = vld [vmem:[#allocation8 + $0x598] sm:$0xff]
    %v543 = vld [vmem:[#allocation8 + $0x5a0] sm:$0xff]
    %v544 = vld [vmem:[#allocation8 + $0x5a8] sm:$0xff]
    %v545 = vld [vmem:[#allocation8 + $0x5b0] sm:$0xff]
    %v546 = vld [vmem:[#allocation8 + $0x5b8] sm:$0xff]
    %v547 = vld [vmem:[#allocation8 + $0x5c0] sm:$0xff]
    %v548 = vld [vmem:[#allocation8 + $0x5c8] sm:$0xff]
    %v549 = vld [vmem:[#allocation8 + $0x5d0] sm:$0xff]
    %v550 = vld [vmem:[#allocation8 + $0x5d8] sm:$0xff]
    %v551 = vld [vmem:[#allocation8 + $0x5e0] sm:$0xff]
    %v552 = vld [vmem:[#allocation8 + $0x5e8] sm:$0xff]
    %v553 = vld [vmem:[#allocation8 + $0x5f0] sm:$0xff]
    %v554 = vld [vmem:[#allocation8 + $0x5f8] sm:$0xff]
    %v555 = vld [vmem:[#allocation11] sm:$0xf]
    %v557 = vlaneseq
    %v558 = vshrl.u32 %v557, 7
    %v559 = vsub.s32 0, %v558
    %v560 = vrot.slane %v555, %v559
    %v561 = vlaneseq
    %v562 = vshrl.u32 %v561, 7
    %v563 = vsub.s32 1, %v562
    %v564 = vrot.slane %v555, %v563
    %v565 = vlaneseq
    %v566 = vshrl.u32 %v565, 7
    %v567 = vsub.s32 2, %v566
    %v568 = vrot.slane %v555, %v567
    %v569 = vlaneseq
    %v570 = vshrl.u32 %v569, 7
    %v571 = vsub.s32 3, %v570
    %v572 = vrot.slane %v555, %v571
    %v769 = vunpack.c.l.b16 %v363
    %v770 = vunpack.c.h.b16 %v363
    %v771 = vunpack.c.l.b16 %v364
    %v772 = vunpack.c.h.b16 %v364
    %v773 = vunpack.c.l.b16 %v365
    %v774 = vunpack.c.h.b16 %v365
    %v775 = vunpack.c.l.b16 %v366
    %v776 = vunpack.c.h.b16 %v366
    %v777 = vunpack.c.l.b16 %v367
    %v778 = vunpack.c.h.b16 %v367
    %v779 = vunpack.c.l.b16 %v368
    %v780 = vunpack.c.h.b16 %v368
    %v781 = vunpack.c.l.b16 %v369
    %v782 = vunpack.c.h.b16 %v369
    %v783 = vunpack.c.l.b16 %v370
    %v784 = vunpack.c.h.b16 %v370
    %v785 = vunpack.c.l.b16 %v371
    %v786 = vunpack.c.h.b16 %v371
    %v787 = vunpack.c.l.b16 %v372
    %v788 = vunpack.c.h.b16 %v372
    %v789 = vunpack.c.l.b16 %v373
    %v790 = vunpack.c.h.b16 %v373
    %v791 = vunpack.c.l.b16 %v374
    %v792 = vunpack.c.h.b16 %v374
    %v793 = vunpack.c.l.b16 %v375
    %v794 = vunpack.c.h.b16 %v375
    %v795 = vunpack.c.l.b16 %v376
    %v796 = vunpack.c.h.b16 %v376
    %v797 = vunpack.c.l.b16 %v377
    %v798 = vunpack.c.h.b16 %v377
    %v799 = vunpack.c.l.b16 %v378
    %v800 = vunpack.c.h.b16 %v378
    %v801 = vunpack.c.l.b16 %v379
    %v802 = vunpack.c.h.b16 %v379
    %v803 = vunpack.c.l.b16 %v380
    %v804 = vunpack.c.h.b16 %v380
    %v805 = vunpack.c.l.b16 %v381
    %v806 = vunpack.c.h.b16 %v381
    %v807 = vunpack.c.l.b16 %v382
    %v808 = vunpack.c.h.b16 %v382
    %v809 = vunpack.c.l.b16 %v383
    %v810 = vunpack.c.h.b16 %v383
    %v811 = vunpack.c.l.b16 %v384
    %v812 = vunpack.c.h.b16 %v384
    %v813 = vunpack.c.l.b16 %v385
    %v814 = vunpack.c.h.b16 %v385
    %v815 = vunpack.c.l.b16 %v386
    %v816 = vunpack.c.h.b16 %v386
    %v817 = vunpack.c.l.b16 %v387
    %v818 = vunpack.c.h.b16 %v387
    %v819 = vunpack.c.l.b16 %v388
    %v820 = vunpack.c.h.b16 %v388
    %v821 = vunpack.c.l.b16 %v389
    %v822 = vunpack.c.h.b16 %v389
    %v823 = vunpack.c.l.b16 %v390
    %v824 = vunpack.c.h.b16 %v390
    %v825 = vunpack.c.l.b16 %v391
    %v826 = vunpack.c.h.b16 %v391
    %v827 = vunpack.c.l.b16 %v392
    %v828 = vunpack.c.h.b16 %v392
    %v829 = vunpack.c.l.b16 %v393
    %v830 = vunpack.c.h.b16 %v393
    %v831 = vunpack.c.l.b16 %v394
    %v832 = vunpack.c.h.b16 %v394
    %v833 = vunpack.c.l.b16 %v395
    %v834 = vunpack.c.h.b16 %v395
    %v835 = vunpack.c.l.b16 %v396
    %v836 = vunpack.c.h.b16 %v396
    %v837 = vunpack.c.l.b16 %v397
    %v838 = vunpack.c.h.b16 %v397
    %v839 = vunpack.c.l.b16 %v398
    %v840 = vunpack.c.h.b16 %v398
    %v841 = vunpack.c.l.b16 %v399
    %v842 = vunpack.c.h.b16 %v399
    %v843 = vunpack.c.l.b16 %v400
    %v844 = vunpack.c.h.b16 %v400
    %v845 = vunpack.c.l.b16 %v401
    %v846 = vunpack.c.h.b16 %v401
    %v847 = vunpack.c.l.b16 %v402
    %v848 = vunpack.c.h.b16 %v402
    %v849 = vunpack.c.l.b16 %v403
    %v850 = vunpack.c.h.b16 %v403
    %v851 = vunpack.c.l.b16 %v404
    %v852 = vunpack.c.h.b16 %v404
    %v853 = vunpack.c.l.b16 %v405
    %v854 = vunpack.c.h.b16 %v405
    %v855 = vunpack.c.l.b16 %v406
    %v856 = vunpack.c.h.b16 %v406
    %v857 = vunpack.c.l.b16 %v407
    %v858 = vunpack.c.h.b16 %v407
    %v859 = vunpack.c.l.b16 %v408
    %v860 = vunpack.c.h.b16 %v408
    %v861 = vunpack.c.l.b16 %v409
    %v862 = vunpack.c.h.b16 %v409
    %v863 = vunpack.c.l.b16 %v410
    %v864 = vunpack.c.h.b16 %v410
    %v865 = vunpack.c.l.b16 %v411
    %v866 = vunpack.c.h.b16 %v411
    %v867 = vunpack.c.l.b16 %v412
    %v868 = vunpack.c.h.b16 %v412
    %v869 = vunpack.c.l.b16 %v413
    %v870 = vunpack.c.h.b16 %v413
    %v871 = vunpack.c.l.b16 %v414
    %v872 = vunpack.c.h.b16 %v414
    %v873 = vunpack.c.l.b16 %v415
    %v874 = vunpack.c.h.b16 %v415
    %v875 = vunpack.c.l.b16 %v416
    %v876 = vunpack.c.h.b16 %v416
    %v877 = vunpack.c.l.b16 %v417
    %v878 = vunpack.c.h.b16 %v417
    %v879 = vunpack.c.l.b16 %v418
    %v880 = vunpack.c.h.b16 %v418
    %v881 = vunpack.c.l.b16 %v419
    %v882 = vunpack.c.h.b16 %v419
    %v883 = vunpack.c.l.b16 %v420
    %v884 = vunpack.c.h.b16 %v420
    %v885 = vunpack.c.l.b16 %v421
    %v886 = vunpack.c.h.b16 %v421
    %v887 = vunpack.c.l.b16 %v422
    %v888 = vunpack.c.h.b16 %v422
    %v889 = vunpack.c.l.b16 %v423
    %v890 = vunpack.c.h.b16 %v423
    %v891 = vunpack.c.l.b16 %v424
    %v892 = vunpack.c.h.b16 %v424
    %v893 = vunpack.c.l.b16 %v425
    %v894 = vunpack.c.h.b16 %v425
    %v895 = vunpack.c.l.b16 %v426
    %v896 = vunpack.c.h.b16 %v426
    %v897 = vunpack.c.l.b16 %v427
    %v898 = vunpack.c.h.b16 %v427
    %v899 = vunpack.c.l.b16 %v428
    %v900 = vunpack.c.h.b16 %v428
    %v901 = vunpack.c.l.b16 %v429
    %v902 = vunpack.c.h.b16 %v429
    %v903 = vunpack.c.l.b16 %v430
    %v904 = vunpack.c.h.b16 %v430
    %v905 = vunpack.c.l.b16 %v431
    %v906 = vunpack.c.h.b16 %v431
    %v907 = vunpack.c.l.b16 %v432
    %v908 = vunpack.c.h.b16 %v432
    %v909 = vunpack.c.l.b16 %v433
    %v910 = vunpack.c.h.b16 %v433
    %v911 = vunpack.c.l.b16 %v434
    %v912 = vunpack.c.h.b16 %v434
    %v913 = vunpack.c.l.b16 %v435
    %v914 = vunpack.c.h.b16 %v435
    %v915 = vunpack.c.l.b16 %v436
    %v916 = vunpack.c.h.b16 %v436
    %v917 = vunpack.c.l.b16 %v437
    %v918 = vunpack.c.h.b16 %v437
    %v919 = vunpack.c.l.b16 %v438
    %v920 = vunpack.c.h.b16 %v438
    %v921 = vunpack.c.l.b16 %v439
    %v922 = vunpack.c.h.b16 %v439
    %v923 = vunpack.c.l.b16 %v440
    %v924 = vunpack.c.h.b16 %v440
    %v925 = vunpack.c.l.b16 %v441
    %v926 = vunpack.c.h.b16 %v441
    %v927 = vunpack.c.l.b16 %v442
    %v928 = vunpack.c.h.b16 %v442
    %v929 = vunpack.c.l.b16 %v443
    %v930 = vunpack.c.h.b16 %v443
    %v931 = vunpack.c.l.b16 %v444
    %v932 = vunpack.c.h.b16 %v444
    %v933 = vunpack.c.l.b16 %v445
    %v934 = vunpack.c.h.b16 %v445
    %v935 = vunpack.c.l.b16 %v446
    %v936 = vunpack.c.h.b16 %v446
    %v937 = vunpack.c.l.b16 %v447
    %v938 = vunpack.c.h.b16 %v447
    %v939 = vunpack.c.l.b16 %v448
    %v940 = vunpack.c.h.b16 %v448
    %v941 = vunpack.c.l.b16 %v449
    %v942 = vunpack.c.h.b16 %v449
    %v943 = vunpack.c.l.b16 %v450
    %v944 = vunpack.c.h.b16 %v450
    %v945 = vunpack.c.l.b16 %v451
    %v946 = vunpack.c.h.b16 %v451
    %v947 = vunpack.c.l.b16 %v452
    %v948 = vunpack.c.h.b16 %v452
    %v949 = vunpack.c.l.b16 %v453
    %v950 = vunpack.c.h.b16 %v453
    %v951 = vunpack.c.l.b16 %v454
    %v952 = vunpack.c.h.b16 %v454
    %v953 = vunpack.c.l.b16 %v455
    %v954 = vunpack.c.h.b16 %v455
    %v955 = vunpack.c.l.b16 %v456
    %v956 = vunpack.c.h.b16 %v456
    %v957 = vunpack.c.l.b16 %v457
    %v958 = vunpack.c.h.b16 %v457
    %v959 = vunpack.c.l.b16 %v458
    %v960 = vunpack.c.h.b16 %v458
    %v961 = vunpack.c.l.b16 %v459
    %v962 = vunpack.c.h.b16 %v459
    %v963 = vunpack.c.l.b16 %v460
    %v964 = vunpack.c.h.b16 %v460
    %v965 = vunpack.c.l.b16 %v461
    %v966 = vunpack.c.h.b16 %v461
    %v967 = vunpack.c.l.b16 %v462
    %v968 = vunpack.c.h.b16 %v462
    %v969 = vunpack.c.l.b16 %v463
    %v970 = vunpack.c.h.b16 %v463
    %v971 = vunpack.c.l.b16 %v464
    %v972 = vunpack.c.h.b16 %v464
    %v973 = vunpack.c.l.b16 %v465
    %v974 = vunpack.c.h.b16 %v465
    %v975 = vunpack.c.l.b16 %v466
    %v976 = vunpack.c.h.b16 %v466
    %v977 = vunpack.c.l.b16 %v467
    %v978 = vunpack.c.h.b16 %v467
    %v979 = vunpack.c.l.b16 %v468
    %v980 = vunpack.c.h.b16 %v468
    %v981 = vunpack.c.l.b16 %v469
    %v982 = vunpack.c.h.b16 %v469
    %v983 = vunpack.c.l.b16 %v470
    %v984 = vunpack.c.h.b16 %v470
    %v985 = vunpack.c.l.b16 %v471
    %v986 = vunpack.c.h.b16 %v471
    %v987 = vunpack.c.l.b16 %v472
    %v988 = vunpack.c.h.b16 %v472
    %v989 = vunpack.c.l.b16 %v473
    %v990 = vunpack.c.h.b16 %v473
    %v991 = vunpack.c.l.b16 %v474
    %v992 = vunpack.c.h.b16 %v474
    %v993 = vunpack.c.l.b16 %v475
    %v994 = vunpack.c.h.b16 %v475
    %v995 = vunpack.c.l.b16 %v476
    %v996 = vunpack.c.h.b16 %v476
    %v997 = vunpack.c.l.b16 %v477
    %v998 = vunpack.c.h.b16 %v477
    %v999 = vunpack.c.l.b16 %v478
    %v1000 = vunpack.c.h.b16 %v478
    %v1001 = vunpack.c.l.b16 %v479
    %v1002 = vunpack.c.h.b16 %v479
    %v1003 = vunpack.c.l.b16 %v480
    %v1004 = vunpack.c.h.b16 %v480
    %v1005 = vunpack.c.l.b16 %v481
    %v1006 = vunpack.c.h.b16 %v481
    %v1007 = vunpack.c.l.b16 %v482
    %v1008 = vunpack.c.h.b16 %v482
    %v1009 = vunpack.c.l.b16 %v483
    %v1010 = vunpack.c.h.b16 %v483
    %v1011 = vunpack.c.l.b16 %v484
    %v1012 = vunpack.c.h.b16 %v484
    %v1013 = vunpack.c.l.b16 %v485
    %v1014 = vunpack.c.h.b16 %v485
    %v1015 = vunpack.c.l.b16 %v486
    %v1016 = vunpack.c.h.b16 %v486
    %v1017 = vunpack.c.l.b16 %v487
    %v1018 = vunpack.c.h.b16 %v487
    %v1019 = vunpack.c.l.b16 %v488
    %v1020 = vunpack.c.h.b16 %v488
    %v1021 = vunpack.c.l.b16 %v489
    %v1022 = vunpack.c.h.b16 %v489
    %v1023 = vunpack.c.l.b16 %v490
    %v1024 = vunpack.c.h.b16 %v490
    %v1025 = vunpack.c.l.b16 %v491
    %v1026 = vunpack.c.h.b16 %v491
    %v1027 = vunpack.c.l.b16 %v492
    %v1028 = vunpack.c.h.b16 %v492
    %v1029 = vunpack.c.l.b16 %v493
    %v1030 = vunpack.c.h.b16 %v493
    %v1031 = vunpack.c.l.b16 %v494
    %v1032 = vunpack.c.h.b16 %v494
    %v1033 = vunpack.c.l.b16 %v495
    %v1034 = vunpack.c.h.b16 %v495
    %v1035 = vunpack.c.l.b16 %v496
    %v1036 = vunpack.c.h.b16 %v496
    %v1037 = vunpack.c.l.b16 %v497
    %v1038 = vunpack.c.h.b16 %v497
    %v1039 = vunpack.c.l.b16 %v498
    %v1040 = vunpack.c.h.b16 %v498
    %v1041 = vunpack.c.l.b16 %v499
    %v1042 = vunpack.c.h.b16 %v499
    %v1043 = vunpack.c.l.b16 %v500
    %v1044 = vunpack.c.h.b16 %v500
    %v1045 = vunpack.c.l.b16 %v501
    %v1046 = vunpack.c.h.b16 %v501
    %v1047 = vunpack.c.l.b16 %v502
    %v1048 = vunpack.c.h.b16 %v502
    %v1049 = vunpack.c.l.b16 %v503
    %v1050 = vunpack.c.h.b16 %v503
    %v1051 = vunpack.c.l.b16 %v504
    %v1052 = vunpack.c.h.b16 %v504
    %v1053 = vunpack.c.l.b16 %v505
    %v1054 = vunpack.c.h.b16 %v505
    %v1055 = vunpack.c.l.b16 %v506
    %v1056 = vunpack.c.h.b16 %v506
    %v1057 = vunpack.c.l.b16 %v507
    %v1058 = vunpack.c.h.b16 %v507
    %v1059 = vunpack.c.l.b16 %v508
    %v1060 = vunpack.c.h.b16 %v508
    %v1061 = vunpack.c.l.b16 %v509
    %v1062 = vunpack.c.h.b16 %v509
    %v1063 = vunpack.c.l.b16 %v510
    %v1064 = vunpack.c.h.b16 %v510
    %v1065 = vunpack.c.l.b16 %v511
    %v1066 = vunpack.c.h.b16 %v511
    %v1067 = vunpack.c.l.b16 %v512
    %v1068 = vunpack.c.h.b16 %v512
    %v1069 = vunpack.c.l.b16 %v513
    %v1070 = vunpack.c.h.b16 %v513
    %v1071 = vunpack.c.l.b16 %v514
    %v1072 = vunpack.c.h.b16 %v514
    %v1073 = vunpack.c.l.b16 %v515
    %v1074 = vunpack.c.h.b16 %v515
    %v1075 = vunpack.c.l.b16 %v516
    %v1076 = vunpack.c.h.b16 %v516
    %v1077 = vunpack.c.l.b16 %v517
    %v1078 = vunpack.c.h.b16 %v517
    %v1079 = vunpack.c.l.b16 %v518
    %v1080 = vunpack.c.h.b16 %v518
    %v1081 = vunpack.c.l.b16 %v519
    %v1082 = vunpack.c.h.b16 %v519
    %v1083 = vunpack.c.l.b16 %v520
    %v1084 = vunpack.c.h.b16 %v520
    %v1085 = vunpack.c.l.b16 %v521
    %v1086 = vunpack.c.h.b16 %v521
    %v1087 = vunpack.c.l.b16 %v522
    %v1088 = vunpack.c.h.b16 %v522
    %v1089 = vunpack.c.l.b16 %v523
    %v1090 = vunpack.c.h.b16 %v523
    %v1091 = vunpack.c.l.b16 %v524
    %v1092 = vunpack.c.h.b16 %v524
    %v1093 = vunpack.c.l.b16 %v525
    %v1094 = vunpack.c.h.b16 %v525
    %v1095 = vunpack.c.l.b16 %v526
    %v1096 = vunpack.c.h.b16 %v526
    %v1097 = vunpack.c.l.b16 %v527
    %v1098 = vunpack.c.h.b16 %v527
    %v1099 = vunpack.c.l.b16 %v528
    %v1100 = vunpack.c.h.b16 %v528
    %v1101 = vunpack.c.l.b16 %v529
    %v1102 = vunpack.c.h.b16 %v529
    %v1103 = vunpack.c.l.b16 %v530
    %v1104 = vunpack.c.h.b16 %v530
    %v1105 = vunpack.c.l.b16 %v531
    %v1106 = vunpack.c.h.b16 %v531
    %v1107 = vunpack.c.l.b16 %v532
    %v1108 = vunpack.c.h.b16 %v532
    %v1109 = vunpack.c.l.b16 %v533
    %v1110 = vunpack.c.h.b16 %v533
    %v1111 = vunpack.c.l.b16 %v534
    %v1112 = vunpack.c.h.b16 %v534
    %v1113 = vunpack.c.l.b16 %v535
    %v1114 = vunpack.c.h.b16 %v535
    %v1115 = vunpack.c.l.b16 %v536
    %v1116 = vunpack.c.h.b16 %v536
    %v1117 = vunpack.c.l.b16 %v537
    %v1118 = vunpack.c.h.b16 %v537
    %v1119 = vunpack.c.l.b16 %v538
    %v1120 = vunpack.c.h.b16 %v538
    %v1121 = vunpack.c.l.b16 %v539
    %v1122 = vunpack.c.h.b16 %v539
    %v1123 = vunpack.c.l.b16 %v540
    %v1124 = vunpack.c.h.b16 %v540
    %v1125 = vunpack.c.l.b16 %v541
    %v1126 = vunpack.c.h.b16 %v541
    %v1127 = vunpack.c.l.b16 %v542
    %v1128 = vunpack.c.h.b16 %v542
    %v1129 = vunpack.c.l.b16 %v543
    %v1130 = vunpack.c.h.b16 %v543
    %v1131 = vunpack.c.l.b16 %v544
    %v1132 = vunpack.c.h.b16 %v544
    %v1133 = vunpack.c.l.b16 %v545
    %v1134 = vunpack.c.h.b16 %v545
    %v1135 = vunpack.c.l.b16 %v546
    %v1136 = vunpack.c.h.b16 %v546
    %v1137 = vunpack.c.l.b16 %v547
    %v1138 = vunpack.c.h.b16 %v547
    %v1139 = vunpack.c.l.b16 %v548
    %v1140 = vunpack.c.h.b16 %v548
    %v1141 = vunpack.c.l.b16 %v549
    %v1142 = vunpack.c.h.b16 %v549
    %v1143 = vunpack.c.l.b16 %v550
    %v1144 = vunpack.c.h.b16 %v550
    %v1145 = vunpack.c.l.b16 %v551
    %v1146 = vunpack.c.h.b16 %v551
    %v1147 = vunpack.c.l.b16 %v552
    %v1148 = vunpack.c.h.b16 %v552
    %v1149 = vunpack.c.l.b16 %v553
    %v1150 = vunpack.c.h.b16 %v553
    %v1151 = vunpack.c.l.b16 %v554
    %v1152 = vunpack.c.h.b16 %v554
    %v1153 = vpack.c.b16 %v773, %v769
    %v1154 = vpack.c.b16 %v774, %v770
    %v1155 = vpack.c.b16 %v775, %v771
    %v1156 = vpack.c.b16 %v776, %v772
    %v1157 = vpack.c.b16 %v781, %v777
    %v1158 = vpack.c.b16 %v782, %v778
    %v1159 = vpack.c.b16 %v783, %v779
    %v1160 = vpack.c.b16 %v784, %v780
    %v1161 = vpack.c.b16 %v789, %v785
    %v1162 = vpack.c.b16 %v790, %v786
    %v1163 = vpack.c.b16 %v791, %v787
    %v1164 = vpack.c.b16 %v792, %v788
    %v1165 = vpack.c.b16 %v797, %v793
    %v1166 = vpack.c.b16 %v798, %v794
    %v1167 = vpack.c.b16 %v799, %v795
    %v1168 = vpack.c.b16 %v800, %v796
    %v1169 = vpack.c.b16 %v805, %v801
    %v1170 = vpack.c.b16 %v806, %v802
    %v1171 = vpack.c.b16 %v807, %v803
    %v1172 = vpack.c.b16 %v808, %v804
    %v1173 = vpack.c.b16 %v813, %v809
    %v1174 = vpack.c.b16 %v814, %v810
    %v1175 = vpack.c.b16 %v815, %v811
    %v1176 = vpack.c.b16 %v816, %v812
    %v1177 = vpack.c.b16 %v821, %v817
    %v1178 = vpack.c.b16 %v822, %v818
    %v1179 = vpack.c.b16 %v823, %v819
    %v1180 = vpack.c.b16 %v824, %v820
    %v1181 = vpack.c.b16 %v829, %v825
    %v1182 = vpack.c.b16 %v830, %v826
    %v1183 = vpack.c.b16 %v831, %v827
    %v1184 = vpack.c.b16 %v832, %v828
    %v1185 = vpack.c.b16 %v837, %v833
    %v1186 = vpack.c.b16 %v838, %v834
    %v1187 = vpack.c.b16 %v839, %v835
    %v1188 = vpack.c.b16 %v840, %v836
    %v1189 = vpack.c.b16 %v845, %v841
    %v1190 = vpack.c.b16 %v846, %v842
    %v1191 = vpack.c.b16 %v847, %v843
    %v1192 = vpack.c.b16 %v848, %v844
    %v1193 = vpack.c.b16 %v853, %v849
    %v1194 = vpack.c.b16 %v854, %v850
    %v1195 = vpack.c.b16 %v855, %v851
    %v1196 = vpack.c.b16 %v856, %v852
    %v1197 = vpack.c.b16 %v861, %v857
    %v1198 = vpack.c.b16 %v862, %v858
    %v1199 = vpack.c.b16 %v863, %v859
    %v1200 = vpack.c.b16 %v864, %v860
    %v1201 = vpack.c.b16 %v869, %v865
    %v1202 = vpack.c.b16 %v870, %v866
    %v1203 = vpack.c.b16 %v871, %v867
    %v1204 = vpack.c.b16 %v872, %v868
    %v1205 = vpack.c.b16 %v877, %v873
    %v1206 = vpack.c.b16 %v878, %v874
    %v1207 = vpack.c.b16 %v879, %v875
    %v1208 = vpack.c.b16 %v880, %v876
    %v1209 = vpack.c.b16 %v885, %v881
    %v1210 = vpack.c.b16 %v886, %v882
    %v1211 = vpack.c.b16 %v887, %v883
    %v1212 = vpack.c.b16 %v888, %v884
    %v1213 = vpack.c.b16 %v893, %v889
    %v1214 = vpack.c.b16 %v894, %v890
    %v1215 = vpack.c.b16 %v895, %v891
    %v1216 = vpack.c.b16 %v896, %v892
    %v1217 = vpack.c.b16 %v901, %v897
    %v1218 = vpack.c.b16 %v902, %v898
    %v1219 = vpack.c.b16 %v903, %v899
    %v1220 = vpack.c.b16 %v904, %v900
    %v1221 = vpack.c.b16 %v909, %v905
    %v1222 = vpack.c.b16 %v910, %v906
    %v1223 = vpack.c.b16 %v911, %v907
    %v1224 = vpack.c.b16 %v912, %v908
    %v1225 = vpack.c.b16 %v917, %v913
    %v1226 = vpack.c.b16 %v918, %v914
    %v1227 = vpack.c.b16 %v919, %v915
    %v1228 = vpack.c.b16 %v920, %v916
    %v1229 = vpack.c.b16 %v925, %v921
    %v1230 = vpack.c.b16 %v926, %v922
    %v1231 = vpack.c.b16 %v927, %v923
    %v1232 = vpack.c.b16 %v928, %v924
    %v1233 = vpack.c.b16 %v933, %v929
    %v1234 = vpack.c.b16 %v934, %v930
    %v1235 = vpack.c.b16 %v935, %v931
    %v1236 = vpack.c.b16 %v936, %v932
    %v1237 = vpack.c.b16 %v941, %v937
    %v1238 = vpack.c.b16 %v942, %v938
    %v1239 = vpack.c.b16 %v943, %v939
    %v1240 = vpack.c.b16 %v944, %v940
    %v1241 = vpack.c.b16 %v949, %v945
    %v1242 = vpack.c.b16 %v950, %v946
    %v1243 = vpack.c.b16 %v951, %v947
    %v1244 = vpack.c.b16 %v952, %v948
    %v1245 = vpack.c.b16 %v957, %v953
    %v1246 = vpack.c.b16 %v958, %v954
    %v1247 = vpack.c.b16 %v959, %v955
    %v1248 = vpack.c.b16 %v960, %v956
    %v1249 = vpack.c.b16 %v965, %v961
    %v1250 = vpack.c.b16 %v966, %v962
    %v1251 = vpack.c.b16 %v967, %v963
    %v1252 = vpack.c.b16 %v968, %v964
    %v1253 = vpack.c.b16 %v973, %v969
    %v1254 = vpack.c.b16 %v974, %v970
    %v1255 = vpack.c.b16 %v975, %v971
    %v1256 = vpack.c.b16 %v976, %v972
    %v1257 = vpack.c.b16 %v981, %v977
    %v1258 = vpack.c.b16 %v982, %v978
    %v1259 = vpack.c.b16 %v983, %v979
    %v1260 = vpack.c.b16 %v984, %v980
    %v1261 = vpack.c.b16 %v989, %v985
    %v1262 = vpack.c.b16 %v990, %v986
    %v1263 = vpack.c.b16 %v991, %v987
    %v1264 = vpack.c.b16 %v992, %v988
    %v1265 = vpack.c.b16 %v997, %v993
    %v1266 = vpack.c.b16 %v998, %v994
    %v1267 = vpack.c.b16 %v999, %v995
    %v1268 = vpack.c.b16 %v1000, %v996
    %v1269 = vpack.c.b16 %v1005, %v1001
    %v1270 = vpack.c.b16 %v1006, %v1002
    %v1271 = vpack.c.b16 %v1007, %v1003
    %v1272 = vpack.c.b16 %v1008, %v1004
    %v1273 = vpack.c.b16 %v1013, %v1009
    %v1274 = vpack.c.b16 %v1014, %v1010
    %v1275 = vpack.c.b16 %v1015, %v1011
    %v1276 = vpack.c.b16 %v1016, %v1012
    %v1277 = vpack.c.b16 %v1021, %v1017
    %v1278 = vpack.c.b16 %v1022, %v1018
    %v1279 = vpack.c.b16 %v1023, %v1019
    %v1280 = vpack.c.b16 %v1024, %v1020
    %v1281 = vpack.c.b16 %v1029, %v1025
    %v1282 = vpack.c.b16 %v1030, %v1026
    %v1283 = vpack.c.b16 %v1031, %v1027
    %v1284 = vpack.c.b16 %v1032, %v1028
    %v1285 = vpack.c.b16 %v1037, %v1033
    %v1286 = vpack.c.b16 %v1038, %v1034
    %v1287 = vpack.c.b16 %v1039, %v1035
    %v1288 = vpack.c.b16 %v1040, %v1036
    %v1289 = vpack.c.b16 %v1045, %v1041
    %v1290 = vpack.c.b16 %v1046, %v1042
    %v1291 = vpack.c.b16 %v1047, %v1043
    %v1292 = vpack.c.b16 %v1048, %v1044
    %v1293 = vpack.c.b16 %v1053, %v1049
    %v1294 = vpack.c.b16 %v1054, %v1050
    %v1295 = vpack.c.b16 %v1055, %v1051
    %v1296 = vpack.c.b16 %v1056, %v1052
    %v1297 = vpack.c.b16 %v1061, %v1057
    %v1298 = vpack.c.b16 %v1062, %v1058
    %v1299 = vpack.c.b16 %v1063, %v1059
    %v1300 = vpack.c.b16 %v1064, %v1060
    %v1301 = vpack.c.b16 %v1069, %v1065
    %v1302 = vpack.c.b16 %v1070, %v1066
    %v1303 = vpack.c.b16 %v1071, %v1067
    %v1304 = vpack.c.b16 %v1072, %v1068
    %v1305 = vpack.c.b16 %v1077, %v1073
    %v1306 = vpack.c.b16 %v1078, %v1074
    %v1307 = vpack.c.b16 %v1079, %v1075
    %v1308 = vpack.c.b16 %v1080, %v1076
    %v1309 = vpack.c.b16 %v1085, %v1081
    %v1310 = vpack.c.b16 %v1086, %v1082
    %v1311 = vpack.c.b16 %v1087, %v1083
    %v1312 = vpack.c.b16 %v1088, %v1084
    %v1313 = vpack.c.b16 %v1093, %v1089
    %v1314 = vpack.c.b16 %v1094, %v1090
    %v1315 = vpack.c.b16 %v1095, %v1091
    %v1316 = vpack.c.b16 %v1096, %v1092
    %v1317 = vpack.c.b16 %v1101, %v1097
    %v1318 = vpack.c.b16 %v1102, %v1098
    %v1319 = vpack.c.b16 %v1103, %v1099
    %v1320 = vpack.c.b16 %v1104, %v1100
    %v1321 = vpack.c.b16 %v1109, %v1105
    %v1322 = vpack.c.b16 %v1110, %v1106
    %v1323 = vpack.c.b16 %v1111, %v1107
    %v1324 = vpack.c.b16 %v1112, %v1108
    %v1325 = vpack.c.b16 %v1117, %v1113
    %v1326 = vpack.c.b16 %v1118, %v1114
    %v1327 = vpack.c.b16 %v1119, %v1115
    %v1328 = vpack.c.b16 %v1120, %v1116
    %v1329 = vpack.c.b16 %v1125, %v1121
    %v1330 = vpack.c.b16 %v1126, %v1122
    %v1331 = vpack.c.b16 %v1127, %v1123
    %v1332 = vpack.c.b16 %v1128, %v1124
    %v1333 = vpack.c.b16 %v1133, %v1129
    %v1334 = vpack.c.b16 %v1134, %v1130
    %v1335 = vpack.c.b16 %v1135, %v1131
    %v1336 = vpack.c.b16 %v1136, %v1132
    %v1337 = vpack.c.b16 %v1141, %v1137
    %v1338 = vpack.c.b16 %v1142, %v1138
    %v1339 = vpack.c.b16 %v1143, %v1139
    %v1340 = vpack.c.b16 %v1144, %v1140
    %v1341 = vpack.c.b16 %v1149, %v1145
    %v1342 = vpack.c.b16 %v1150, %v1146
    %v1343 = vpack.c.b16 %v1151, %v1147
    %v1344 = vpack.c.b16 %v1152, %v1148
    %1537 = vmatprep.subr.bf16.mxu0 %v1154
    %1538 = vmatpush1.bf16.msra.mxu0 %v1153
    %1539 = vmatprep.subr.bf16.mxu0 %v1158
    %1540 = vmatpush1.bf16.msra.mxu0 %v1157
    %1541 = vmatprep.subr.bf16.mxu0 %v1162
    %1542 = vmatpush1.bf16.msra.mxu0 %v1161
    %1543 = vmatprep.subr.bf16.mxu0 %v1166
    %1544 = vmatpush1.bf16.msra.mxu0 %v1165
    %1545 = vmatprep.subr.bf16.mxu0 %v1170
    %1546 = vmatpush1.bf16.msra.mxu0 %v1169
    %1547 = vmatprep.subr.bf16.mxu0 %v1174
    %1548 = vmatpush1.bf16.msra.mxu0 %v1173
    %1549 = vmatprep.subr.bf16.mxu0 %v1178
    %1550 = vmatpush1.bf16.msra.mxu0 %v1177
    %1551 = vmatprep.subr.bf16.mxu0 %v1182
    %1552 = vmatpush1.bf16.msra.mxu0 %v1181
    %1553 = vmatprep.subr.bf16.mxu0 %v1186
    %1554 = vmatpush1.bf16.msra.mxu0 %v1185
    %1555 = vmatprep.subr.bf16.mxu0 %v1190
    %1556 = vmatpush1.bf16.msra.mxu0 %v1189
    %1557 = vmatprep.subr.bf16.mxu0 %v1194
    %1558 = vmatpush1.bf16.msra.mxu0 %v1193
    %1559 = vmatprep.subr.bf16.mxu0 %v1198
    %1560 = vmatpush1.bf16.msra.mxu0 %v1197
    %1561 = vmatprep.subr.bf16.mxu0 %v1202
    %1562 = vmatpush1.bf16.msra.mxu0 %v1201
    %1563 = vmatprep.subr.bf16.mxu0 %v1206
    %1564 = vmatpush1.bf16.msra.mxu0 %v1205
    %1565 = vmatprep.subr.bf16.mxu0 %v1210
    %1566 = vmatpush1.bf16.msra.mxu0 %v1209
    %1567 = vmatprep.subr.bf16.mxu0 %v1214
    %1568 = vmatpush1.bf16.msra.mxu0 %v1213
    %1569 = vmatprep.mubr.bf16.mxu0 %v358
    %1570 = vmatmul.mubr.bf16.gmra.mrb[0].mxu0 %v357
    %v1571 = vpop.f32.mrb[0].mxu0
    %v1572 = vadd.f32 %v560, %v1571
    %v1573 = vpop.f32.mrb[0].mxu0
    %v1574 = vadd.f32 %v564, %v1573
    %v1575 = vpop.f32.mrb[0].mxu0
    %v1576 = vadd.f32 %v560, %v1575
    %v1577 = vpop.f32.mrb[0].mxu0
    %v1578 = vadd.f32 %v564, %v1577
    %1579 = vdwg.mxu0
    %1580 = vmatprep.subr.bf16.mxu0 %v1218
    %1581 = vmatpush1.bf16.msra.mxu0 %v1217
    %1582 = vmatprep.subr.bf16.mxu0 %v1222
    %1583 = vmatpush1.bf16.msra.mxu0 %v1221
    %1584 = vmatprep.subr.bf16.mxu0 %v1226
    %1585 = vmatpush1.bf16.msra.mxu0 %v1225
    %1586 = vmatprep.subr.bf16.mxu0 %v1230
    %1587 = vmatpush1.bf16.msra.mxu0 %v1229
    %1588 = vmatprep.subr.bf16.mxu0 %v1234
    %1589 = vmatpush1.bf16.msra.mxu0 %v1233
    %1590 = vmatprep.subr.bf16.mxu0 %v1238
    %1591 = vmatpush1.bf16.msra.mxu0 %v1237
    %1592 = vmatprep.subr.bf16.mxu0 %v1242
    %1593 = vmatpush1.bf16.msra.mxu0 %v1241
    %1594 = vmatprep.subr.bf16.mxu0 %v1246
    %1595 = vmatpush1.bf16.msra.mxu0 %v1245
    %1596 = vmatprep.subr.bf16.mxu0 %v1250
    %1597 = vmatpush1.bf16.msra.mxu0 %v1249
    %1598 = vmatprep.subr.bf16.mxu0 %v1254
    %1599 = vmatpush1.bf16.msra.mxu0 %v1253
    %1600 = vmatprep.subr.bf16.mxu0 %v1258
    %1601 = vmatpush1.bf16.msra.mxu0 %v1257
    %1602 = vmatprep.subr.bf16.mxu0 %v1262
    %1603 = vmatpush1.bf16.msra.mxu0 %v1261
    %1604 = vmatprep.subr.bf16.mxu0 %v1266
    %1605 = vmatpush1.bf16.msra.mxu0 %v1265
    %1606 = vmatprep.subr.bf16.mxu0 %v1270
    %1607 = vmatpush1.bf16.msra.mxu0 %v1269
    %1608 = vmatprep.subr.bf16.mxu0 %v1274
    %1609 = vmatpush1.bf16.msra.mxu0 %v1273
    %1610 = vmatprep.subr.bf16.mxu0 %v1278
    %1611 = vmatpush1.bf16.msra.mxu0 %v1277
    %1612 = vmatprep.mubr.bf16.mxu0 %v360
    %1613 = vmatmul.mubr.bf16.gmra.mrb[0].mxu0 %v359
    %v1614 = vpop.f32.mrb[0].mxu0
    %v1615 = vadd.f32 %v1572, %v1614
    %v1616 = vpop.f32.mrb[0].mxu0
    %v1617 = vadd.f32 %v1574, %v1616
    %v1618 = vpop.f32.mrb[0].mxu0
    %v1619 = vadd.f32 %v1576, %v1618
    %v1620 = vpop.f32.mrb[0].mxu0
    %v1621 = vadd.f32 %v1578, %v1620
    %1622 = vdwg.mxu0
    %1623 = vmatprep.subr.bf16.mxu0 %v1282
    %1624 = vmatpush1.bf16.msra.mxu0 %v1281
    %1625 = vmatprep.subr.bf16.mxu0 %v1286
    %1626 = vmatpush1.bf16.msra.mxu0 %v1285
    %1627 = vmatprep.subr.bf16.mxu0 %v1290
    %1628 = vmatpush1.bf16.msra.mxu0 %v1289
    %1629 = vmatprep.subr.bf16.mxu0 %v1294
    %1630 = vmatpush1.bf16.msra.mxu0 %v1293
    %1631 = vmatprep.subr.bf16.mxu0 %v1298
    %1632 = vmatpush1.bf16.msra.mxu0 %v1297
    %1633 = vmatprep.subr.bf16.mxu0 %v1302
    %1634 = vmatpush1.bf16.msra.mxu0 %v1301
    %1635 = vmatprep.subr.bf16.mxu0 %v1306
    %1636 = vmatpush1.bf16.msra.mxu0 %v1305
    %1637 = vmatprep.subr.bf16.mxu0 %v1310
    %1638 = vmatpush1.bf16.msra.mxu0 %v1309
    %1639 = vmatprep.subr.bf16.mxu0 %v1314
    %1640 = vmatpush1.bf16.msra.mxu0 %v1313
    %1641 = vmatprep.subr.bf16.mxu0 %v1318
    %1642 = vmatpush1.bf16.msra.mxu0 %v1317
    %1643 = vmatprep.subr.bf16.mxu0 %v1322
    %1644 = vmatpush1.bf16.msra.mxu0 %v1321
    %1645 = vmatprep.subr.bf16.mxu0 %v1326
    %1646 = vmatpush1.bf16.msra.mxu0 %v1325
    %1647 = vmatprep.subr.bf16.mxu0 %v1330
    %1648 = vmatpush1.bf16.msra.mxu0 %v1329
    %1649 = vmatprep.subr.bf16.mxu0 %v1334
    %1650 = vmatpush1.bf16.msra.mxu0 %v1333
    %1651 = vmatprep.subr.bf16.mxu0 %v1338
    %1652 = vmatpush1.bf16.msra.mxu0 %v1337
    %1653 = vmatprep.subr.bf16.mxu0 %v1342
    %1654 = vmatpush1.bf16.msra.mxu0 %v1341
    %1655 = vmatprep.mubr.bf16.mxu0 %v362
    %1656 = vmatmul.mubr.bf16.gmra.mrb[0].mxu0 %v361
    %v1657 = vpop.f32.mrb[0].mxu0
    %v1658 = vadd.f32 %v1615, %v1657
    %v1659 = vpop.f32.mrb[0].mxu0
    %v1660 = vadd.f32 %v1617, %v1659
    %v1661 = vpop.f32.mrb[0].mxu0
    %v1662 = vadd.f32 %v1619, %v1661
    %v1663 = vpop.f32.mrb[0].mxu0
    %v1664 = vadd.f32 %v1621, %v1663
    %1665 = vdwg.mxu0
    %1666 = vmatprep.subr.bf16.mxu0 %v1156
    %1667 = vmatpush1.bf16.msra.mxu0 %v1155
    %1668 = vmatprep.subr.bf16.mxu0 %v1160
    %1669 = vmatpush1.bf16.msra.mxu0 %v1159
    %1670 = vmatprep.subr.bf16.mxu0 %v1164
    %1671 = vmatpush1.bf16.msra.mxu0 %v1163
    %1672 = vmatprep.subr.bf16.mxu0 %v1168
    %1673 = vmatpush1.bf16.msra.mxu0 %v1167
    %1674 = vmatprep.subr.bf16.mxu0 %v1172
    %1675 = vmatpush1.bf16.msra.mxu0 %v1171
    %1676 = vmatprep.subr.bf16.mxu0 %v1176
    %1677 = vmatpush1.bf16.msra.mxu0 %v1175
    %1678 = vmatprep.subr.bf16.mxu0 %v1180
    %1679 = vmatpush1.bf16.msra.mxu0 %v1179
    %1680 = vmatprep.subr.bf16.mxu0 %v1184
    %1681 = vmatpush1.bf16.msra.mxu0 %v1183
    %1682 = vmatprep.subr.bf16.mxu0 %v1188
    %1683 = vmatpush1.bf16.msra.mxu0 %v1187
    %1684 = vmatprep.subr.bf16.mxu0 %v1192
    %1685 = vmatpush1.bf16.msra.mxu0 %v1191
    %1686 = vmatprep.subr.bf16.mxu0 %v1196
    %1687 = vmatpush1.bf16.msra.mxu0 %v1195
    %1688 = vmatprep.subr.bf16.mxu0 %v1200
    %1689 = vmatpush1.bf16.msra.mxu0 %v1199
    %1690 = vmatprep.subr.bf16.mxu0 %v1204
    %1691 = vmatpush1.bf16.msra.mxu0 %v1203
    %1692 = vmatprep.subr.bf16.mxu0 %v1208
    %1693 = vmatpush1.bf16.msra.mxu0 %v1207
    %1694 = vmatprep.subr.bf16.mxu0 %v1212
    %1695 = vmatpush1.bf16.msra.mxu0 %v1211
    %1696 = vmatprep.subr.bf16.mxu0 %v1216
    %1697 = vmatpush1.bf16.msra.mxu0 %v1215
    %1698 = vmatprep.mubr.bf16.mxu0 %v358
    %1699 = vmatmul.mubr.bf16.gmra.mrb[0].mxu0 %v357
    %v1700 = vpop.f32.mrb[0].mxu0
    %v1701 = vadd.f32 %v568, %v1700
    %v1702 = vpop.f32.mrb[0].mxu0
    %v1703 = vadd.f32 %v572, %v1702
    %v1704 = vpop.f32.mrb[0].mxu0
    %v1705 = vadd.f32 %v568, %v1704
    %v1706 = vpop.f32.mrb[0].mxu0
    %v1707 = vadd.f32 %v572, %v1706
    %1708 = vdwg.mxu0
    %1709 = vmatprep.subr.bf16.mxu0 %v1220
    %1710 = vmatpush1.bf16.msra.mxu0 %v1219
    %1711 = vmatprep.subr.bf16.mxu0 %v1224
    %1712 = vmatpush1.bf16.msra.mxu0 %v1223
    %1713 = vmatprep.subr.bf16.mxu0 %v1228
    %1714 = vmatpush1.bf16.msra.mxu0 %v1227
    %1715 = vmatprep.subr.bf16.mxu0 %v1232
    %1716 = vmatpush1.bf16.msra.mxu0 %v1231
    %1717 = vmatprep.subr.bf16.mxu0 %v1236
    %1718 = vmatpush1.bf16.msra.mxu0 %v1235
    %1719 = vmatprep.subr.bf16.mxu0 %v1240
    %1720 = vmatpush1.bf16.msra.mxu0 %v1239
    %1721 = vmatprep.subr.bf16.mxu0 %v1244
    %1722 = vmatpush1.bf16.msra.mxu0 %v1243
    %1723 = vmatprep.subr.bf16.mxu0 %v1248
    %1724 = vmatpush1.bf16.msra.mxu0 %v1247
    %1725 = vmatprep.subr.bf16.mxu0 %v1252
    %1726 = vmatpush1.bf16.msra.mxu0 %v1251
    %1727 = vmatprep.subr.bf16.mxu0 %v1256
    %1728 = vmatpush1.bf16.msra.mxu0 %v1255
    %1729 = vmatprep.subr.bf16.mxu0 %v1260
    %1730 = vmatpush1.bf16.msra.mxu0 %v1259
    %1731 = vmatprep.subr.bf16.mxu0 %v1264
    %1732 = vmatpush1.bf16.msra.mxu0 %v1263
    %1733 = vmatprep.subr.bf16.mxu0 %v1268
    %1734 = vmatpush1.bf16.msra.mxu0 %v1267
    %1735 = vmatprep.subr.bf16.mxu0 %v1272
    %1736 = vmatpush1.bf16.msra.mxu0 %v1271
    %1737 = vmatprep.subr.bf16.mxu0 %v1276
    %1738 = vmatpush1.bf16.msra.mxu0 %v1275
    %1739 = vmatprep.subr.bf16.mxu0 %v1280
    %1740 = vmatpush1.bf16.msra.mxu0 %v1279
    %1741 = vmatprep.mubr.bf16.mxu0 %v360
    %1742 = vmatmul.mubr.bf16.gmra.mrb[0].mxu0 %v359
    %v1743 = vpop.f32.mrb[0].mxu0
    %v1744 = vadd.f32 %v1701, %v1743
    %v1745 = vpop.f32.mrb[0].mxu0
    %v1746 = vadd.f32 %v1703, %v1745
    %v1747 = vpop.f32.mrb[0].mxu0
    %v1748 = vadd.f32 %v1705, %v1747
    %v1749 = vpop.f32.mrb[0].mxu0
    %v1750 = vadd.f32 %v1707, %v1749
    %1751 = vdwg.mxu0
    %1752 = vmatprep.subr.bf16.mxu0 %v1284
    %1753 = vmatpush1.bf16.msra.mxu0 %v1283
    %1754 = vmatprep.subr.bf16.mxu0 %v1288
    %1755 = vmatpush1.bf16.msra.mxu0 %v1287
    %1756 = vmatprep.subr.bf16.mxu0 %v1292
    %1757 = vmatpush1.bf16.msra.mxu0 %v1291
    %1758 = vmatprep.subr.bf16.mxu0 %v1296
    %1759 = vmatpush1.bf16.msra.mxu0 %v1295
    %1760 = vmatprep.subr.bf16.mxu0 %v1300
    %1761 = vmatpush1.bf16.msra.mxu0 %v1299
    %1762 = vmatprep.subr.bf16.mxu0 %v1304
    %1763 = vmatpush1.bf16.msra.mxu0 %v1303
    %1764 = vmatprep.subr.bf16.mxu0 %v1308
    %1765 = vmatpush1.bf16.msra.mxu0 %v1307
    %1766 = vmatprep.subr.bf16.mxu0 %v1312
    %1767 = vmatpush1.bf16.msra.mxu0 %v1311
    %1768 = vmatprep.subr.bf16.mxu0 %v1316
    %1769 = vmatpush1.bf16.msra.mxu0 %v1315
    %1770 = vmatprep.subr.bf16.mxu0 %v1320
    %1771 = vmatpush1.bf16.msra.mxu0 %v1319
    %1772 = vmatprep.subr.bf16.mxu0 %v1324
    %1773 = vmatpush1.bf16.msra.mxu0 %v1323
    %1774 = vmatprep.subr.bf16.mxu0 %v1328
    %1775 = vmatpush1.bf16.msra.mxu0 %v1327
    %1776 = vmatprep.subr.bf16.mxu0 %v1332
    %1777 = vmatpush1.bf16.msra.mxu0 %v1331
    %1778 = vmatprep.subr.bf16.mxu0 %v1336
    %1779 = vmatpush1.bf16.msra.mxu0 %v1335
    %1780 = vmatprep.subr.bf16.mxu0 %v1340
    %1781 = vmatpush1.bf16.msra.mxu0 %v1339
    %1782 = vmatprep.subr.bf16.mxu0 %v1344
    %1783 = vmatpush1.bf16.msra.mxu0 %v1343
    %1784 = vmatprep.mubr.bf16.mxu0 %v362
    %1785 = vmatmul.mubr.bf16.gmra.mrb[0].mxu0 %v361
    %v1786 = vpop.f32.mrb[0].mxu0
    %v1787 = vadd.f32 %v1744, %v1786
    %v1788 = vpop.f32.mrb[0].mxu0
    %v1789 = vadd.f32 %v1746, %v1788
    %v1790 = vpop.f32.mrb[0].mxu0
    %v1791 = vadd.f32 %v1748, %v1790
    %v1792 = vpop.f32.mrb[0].mxu0
    %v1793 = vadd.f32 %v1750, %v1792
    %1794 = vdwg.mxu0
    %v1795 = vld [vmem:[#allocation9] sm:$0xff]
    %v1796 = vld [vmem:[#allocation9 + $0x8] sm:$0xff]
    %v1797 = vld [vmem:[#allocation9 + $0x10] sm:$0xff]
    %v1798 = vld [vmem:[#allocation9 + $0x18] sm:$0xff]
    %v1799 = vld [vmem:[#allocation9 + $0x20] sm:$0xff]
    %v1800 = vld [vmem:[#allocation9 + $0x28] sm:$0xff]
    %v1801 = vld [vmem:[#allocation9 + $0x30] sm:$0xff]
    %v1802 = vld [vmem:[#allocation9 + $0x38] sm:$0xff]
    %v1803 = vld [vmem:[#allocation9 + $0x40] sm:$0xff]
    %v1804 = vld [vmem:[#allocation9 + $0x48] sm:$0xff]
    %v1805 = vld [vmem:[#allocation9 + $0x50] sm:$0xff]
    %v1806 = vld [vmem:[#allocation9 + $0x58] sm:$0xff]
    %v1807 = vld [vmem:[#allocation9 + $0x60] sm:$0xff]
    %v1808 = vld [vmem:[#allocation9 + $0x68] sm:$0xff]
    %v1809 = vld [vmem:[#allocation9 + $0x70] sm:$0xff]
    %v1810 = vld [vmem:[#allocation9 + $0x78] sm:$0xff]
    %v1811 = vld [vmem:[#allocation9 + $0x80] sm:$0xff]
    %v1812 = vld [vmem:[#allocation9 + $0x88] sm:$0xff]
    %v1813 = vld [vmem:[#allocation9 + $0x90] sm:$0xff]
    %v1814 = vld [vmem:[#allocation9 + $0x98] sm:$0xff]
    %v1815 = vld [vmem:[#allocation9 + $0xa0] sm:$0xff]
    %v1816 = vld [vmem:[#allocation9 + $0xa8] sm:$0xff]
    %v1817 = vld [vmem:[#allocation9 + $0xb0] sm:$0xff]
    %v1818 = vld [vmem:[#allocation9 + $0xb8] sm:$0xff]
    %v1819 = vld [vmem:[#allocation9 + $0xc0] sm:$0xff]
    %v1820 = vld [vmem:[#allocation9 + $0xc8] sm:$0xff]
    %v1821 = vld [vmem:[#allocation9 + $0xd0] sm:$0xff]
    %v1822 = vld [vmem:[#allocation9 + $0xd8] sm:$0xff]
    %v1823 = vld [vmem:[#allocation9 + $0xe0] sm:$0xff]
    %v1824 = vld [vmem:[#allocation9 + $0xe8] sm:$0xff]
    %v1825 = vld [vmem:[#allocation9 + $0xf0] sm:$0xff]
    %v1826 = vld [vmem:[#allocation9 + $0xf8] sm:$0xff]
    %v1859 = vunpack.c.l.b16 %v1795
    %v1860 = vunpack.c.h.b16 %v1795
    %v1861 = vunpack.c.l.b16 %v1796
    %v1862 = vunpack.c.h.b16 %v1796
    %v1863 = vunpack.c.l.b16 %v1797
    %v1864 = vunpack.c.h.b16 %v1797
    %v1865 = vunpack.c.l.b16 %v1798
    %v1866 = vunpack.c.h.b16 %v1798
    %v1867 = vunpack.c.l.b16 %v1799
    %v1868 = vunpack.c.h.b16 %v1799
    %v1869 = vunpack.c.l.b16 %v1800
    %v1870 = vunpack.c.h.b16 %v1800
    %v1871 = vunpack.c.l.b16 %v1801
    %v1872 = vunpack.c.h.b16 %v1801
    %v1873 = vunpack.c.l.b16 %v1802
    %v1874 = vunpack.c.h.b16 %v1802
    %v1875 = vunpack.c.l.b16 %v1803
    %v1876 = vunpack.c.h.b16 %v1803
    %v1877 = vunpack.c.l.b16 %v1804
    %v1878 = vunpack.c.h.b16 %v1804
    %v1879 = vunpack.c.l.b16 %v1805
    %v1880 = vunpack.c.h.b16 %v1805
    %v1881 = vunpack.c.l.b16 %v1806
    %v1882 = vunpack.c.h.b16 %v1806
    %v1883 = vunpack.c.l.b16 %v1807
    %v1884 = vunpack.c.h.b16 %v1807
    %v1885 = vunpack.c.l.b16 %v1808
    %v1886 = vunpack.c.h.b16 %v1808
    %v1887 = vunpack.c.l.b16 %v1809
    %v1888 = vunpack.c.h.b16 %v1809
    %v1889 = vunpack.c.l.b16 %v1810
    %v1890 = vunpack.c.h.b16 %v1810
    %v1891 = vunpack.c.l.b16 %v1811
    %v1892 = vunpack.c.h.b16 %v1811
    %v1893 = vunpack.c.l.b16 %v1812
    %v1894 = vunpack.c.h.b16 %v1812
    %v1895 = vunpack.c.l.b16 %v1813
    %v1896 = vunpack.c.h.b16 %v1813
    %v1897 = vunpack.c.l.b16 %v1814
    %v1898 = vunpack.c.h.b16 %v1814
    %v1899 = vunpack.c.l.b16 %v1815
    %v1900 = vunpack.c.h.b16 %v1815
    %v1901 = vunpack.c.l.b16 %v1816
    %v1902 = vunpack.c.h.b16 %v1816
    %v1903 = vunpack.c.l.b16 %v1817
    %v1904 = vunpack.c.h.b16 %v1817
    %v1905 = vunpack.c.l.b16 %v1818
    %v1906 = vunpack.c.h.b16 %v1818
    %v1907 = vunpack.c.l.b16 %v1819
    %v1908 = vunpack.c.h.b16 %v1819
    %v1909 = vunpack.c.l.b16 %v1820
    %v1910 = vunpack.c.h.b16 %v1820
    %v1911 = vunpack.c.l.b16 %v1821
    %v1912 = vunpack.c.h.b16 %v1821
    %v1913 = vunpack.c.l.b16 %v1822
    %v1914 = vunpack.c.h.b16 %v1822
    %v1915 = vunpack.c.l.b16 %v1823
    %v1916 = vunpack.c.h.b16 %v1823
    %v1917 = vunpack.c.l.b16 %v1824
    %v1918 = vunpack.c.h.b16 %v1824
    %v1919 = vunpack.c.l.b16 %v1825
    %v1920 = vunpack.c.h.b16 %v1825
    %v1921 = vunpack.c.l.b16 %v1826
    %v1922 = vunpack.c.h.b16 %v1826
    %v1923 = vpack.c.b16 %v1863, %v1859
    %v1924 = vpack.c.b16 %v1864, %v1860
    %v1925 = vpack.c.b16 %v1865, %v1861
    %v1926 = vpack.c.b16 %v1866, %v1862
    %v1927 = vpack.c.b16 %v1871, %v1867
    %v1928 = vpack.c.b16 %v1872, %v1868
    %v1929 = vpack.c.b16 %v1873, %v1869
    %v1930 = vpack.c.b16 %v1874, %v1870
    %v1931 = vpack.c.b16 %v1879, %v1875
    %v1932 = vpack.c.b16 %v1880, %v1876
    %v1933 = vpack.c.b16 %v1881, %v1877
    %v1934 = vpack.c.b16 %v1882, %v1878
    %v1935 = vpack.c.b16 %v1887, %v1883
    %v1936 = vpack.c.b16 %v1888, %v1884
    %v1937 = vpack.c.b16 %v1889, %v1885
    %v1938 = vpack.c.b16 %v1890, %v1886
    %v1939 = vpack.c.b16 %v1895, %v1891
    %v1940 = vpack.c.b16 %v1896, %v1892
    %v1941 = vpack.c.b16 %v1897, %v1893
    %v1942 = vpack.c.b16 %v1898, %v1894
    %v1943 = vpack.c.b16 %v1903, %v1899
    %v1944 = vpack.c.b16 %v1904, %v1900
    %v1945 = vpack.c.b16 %v1905, %v1901
    %v1946 = vpack.c.b16 %v1906, %v1902
    %v1947 = vpack.c.b16 %v1911, %v1907
    %v1948 = vpack.c.b16 %v1912, %v1908
    %v1949 = vpack.c.b16 %v1913, %v1909
    %v1950 = vpack.c.b16 %v1914, %v1910
    %v1951 = vpack.c.b16 %v1919, %v1915
    %v1952 = vpack.c.b16 %v1920, %v1916
    %v1953 = vpack.c.b16 %v1921, %v1917
    %v1954 = vpack.c.b16 %v1922, %v1918
    %1987 = vmatprep.subr.bf16.mxu0 %v1924
    %1988 = vmatpush1.bf16.msra.mxu0 %v1923
    %1989 = vmatprep.subr.bf16.mxu0 %v1928
    %1990 = vmatpush1.bf16.msra.mxu0 %v1927
    %1991 = vmatprep.subr.bf16.mxu0 %v1932
    %1992 = vmatpush1.bf16.msra.mxu0 %v1931
    %1993 = vmatprep.subr.bf16.mxu0 %v1936
    %1994 = vmatpush1.bf16.msra.mxu0 %v1935
    %1995 = vmatprep.subr.bf16.mxu0 %v1940
    %1996 = vmatpush1.bf16.msra.mxu0 %v1939
    %1997 = vmatprep.subr.bf16.mxu0 %v1944
    %1998 = vmatpush1.bf16.msra.mxu0 %v1943
    %1999 = vmatprep.subr.bf16.mxu0 %v1948
    %2000 = vmatpush1.bf16.msra.mxu0 %v1947
    %2001 = vmatprep.subr.bf16.mxu0 %v1952
    %2002 = vmatpush1.bf16.msra.mxu0 %v1951
    %2003 = vmatprep.subr.bf16.mxu0 0
    %2004 = vmatpush1.bf16.msra.mxu0 0
    %2005 = vmatprep.subr.bf16.mxu0 0
    %2006 = vmatpush1.bf16.msra.mxu0 0
    %2007 = vmatprep.subr.bf16.mxu0 0
    %2008 = vmatpush1.bf16.msra.mxu0 0
    %2009 = vmatprep.subr.bf16.mxu0 0
    %2010 = vmatpush1.bf16.msra.mxu0 0
    %2011 = vmatprep.subr.bf16.mxu0 0
    %2012 = vmatpush1.bf16.msra.mxu0 0
    %2013 = vmatprep.subr.bf16.mxu0 0
    %2014 = vmatpush1.bf16.msra.mxu0 0
    %2015 = vmatprep.subr.bf16.mxu0 0
    %2016 = vmatpush1.bf16.msra.mxu0 0
    %2017 = vmatprep.subr.bf16.mxu0 0
    %2018 = vmatpush1.bf16.msra.mxu0 0
    %2019 = vmatprep.mubr.bf16.mxu0 0
    %2020 = vmatmul.mubr.bf16.gmra.mrb[0].mxu0 0
    %v2021 = vpop.f32.mrb[0].mxu0
    %v2022 = vadd.f32 0.0, %v2021
    %v2023 = vpop.f32.mrb[0].mxu0
    %v2024 = vadd.f32 0.0, %v2023
    %v2025 = vpop.f32.mrb[0].mxu0
    %v2026 = vpop.f32.mrb[0].mxu0
    %2027 = vdwg.mxu0
    %2028 = vmatprep.subr.bf16.mxu0 %v1926
    %2029 = vmatpush1.bf16.msra.mxu0 %v1925
    %2030 = vmatprep.subr.bf16.mxu0 %v1930
    %2031 = vmatpush1.bf16.msra.mxu0 %v1929
    %2032 = vmatprep.subr.bf16.mxu0 %v1934
    %2033 = vmatpush1.bf16.msra.mxu0 %v1933
    %2034 = vmatprep.subr.bf16.mxu0 %v1938
    %2035 = vmatpush1.bf16.msra.mxu0 %v1937
    %2036 = vmatprep.subr.bf16.mxu0 %v1942
    %2037 = vmatpush1.bf16.msra.mxu0 %v1941
    %2038 = vmatprep.subr.bf16.mxu0 %v1946
    %2039 = vmatpush1.bf16.msra.mxu0 %v1945
    %2040 = vmatprep.subr.bf16.mxu0 %v1950
    %2041 = vmatpush1.bf16.msra.mxu0 %v1949
    %2042 = vmatprep.subr.bf16.mxu0 %v1954
    %2043 = vmatpush1.bf16.msra.mxu0 %v1953
    %2044 = vmatprep.subr.bf16.mxu0 0
    %2045 = vmatpush1.bf16.msra.mxu0 0
    %2046 = vmatprep.subr.bf16.mxu0 0
    %2047 = vmatpush1.bf16.msra.mxu0 0
    %2048 = vmatprep.subr.bf16.mxu0 0
    %2049 = vmatpush1.bf16.msra.mxu0 0
    %2050 = vmatprep.subr.bf16.mxu0 0
    %2051 = vmatpush1.bf16.msra.mxu0 0
    %2052 = vmatprep.subr.bf16.mxu0 0
    %2053 = vmatpush1.bf16.msra.mxu0 0
    %2054 = vmatprep.subr.bf16.mxu0 0
    %2055 = vmatpush1.bf16.msra.mxu0 0
    %2056 = vmatprep.subr.bf16.mxu0 0
    %2057 = vmatpush1.bf16.msra.mxu0 0
    %2058 = vmatprep.subr.bf16.mxu0 0
    %2059 = vmatpush1.bf16.msra.mxu0 0
    %2060 = vmatprep.mubr.bf16.mxu0 0
    %2061 = vmatmul.mubr.bf16.gmra.mrb[0].mxu0 0
    %v2062 = vpop.f32.mrb[0].mxu0
    %v2063 = vadd.f32 0.0, %v2062
    %v2064 = vpop.f32.mrb[0].mxu0
    %v2065 = vadd.f32 0.0, %v2064
    %v2066 = vpop.f32.mrb[0].mxu0
    %v2067 = vpop.f32.mrb[0].mxu0
    %2068 = vdwg.mxu0
    %v2069 = vadd.f32 %v1658, %v2022
    %v2070 = vadd.f32 %v1660, %v2024
    %v2071 = vadd.f32 %v1787, %v2063
    %v2072 = vadd.f32 %v1789, %v2065
    %v2073 = vxor.u32 %v2069, 2147483648
    %v2074 = vmul.f32 %v2073, 1.442695
    %v2075 = vpow.pop %v2074
    %v2076 = vadd.f32 %v2075, 1.0
    %v2077 = vrcp.pop %v2076
    %v2078 = vmul.f32 1.0, %v2077
    %v2079 = vxor.u32 %v2070, 2147483648
    %v2080 = vmul.f32 %v2079, 1.442695
    %v2081 = vpow.pop %v2080
    %v2082 = vadd.f32 %v2081, 1.0
    %v2083 = vrcp.pop %v2082
    %v2084 = vmul.f32 1.0, %v2083
    %v2085 = vtanh.pop %v2071
    %v2086 = vxor.u32 %v2072, 2147483648
    %v2087 = vmul.f32 %v2086, 1.442695
    %v2088 = vpow.pop %v2087
    %v2089 = vadd.f32 %v2088, 1.0
    %v2090 = vrcp.pop %v2089
    %v2091 = vmul.f32 1.0, %v2090
    %v2092 = vmul.f32 %v2084, 0.0
    %v2093 = vmul.f32 %v2078, %v2085
    %v2094 = vadd.f32 %v2092, %v2093
    %v2095 = vtanh.pop %v2094
    %v2096 = vmul.f32 %v2091, %v2095
    %v2097 = vpack.c.bf16 %v2096, %v2096
    %2098 = vmatprep.subr.bf16.mxu0 %v1924
    %2099 = vmatpush1.bf16.msra.mxu0 %v1923
    %2100 = vmatprep.subr.bf16.mxu0 %v1928
    %2101 = vmatpush1.bf16.msra.mxu0 %v1927
    %2102 = vmatprep.subr.bf16.mxu0 %v1932
    %2103 = vmatpush1.bf16.msra.mxu0 %v1931
    %2104 = vmatprep.subr.bf16.mxu0 %v1936
    %2105 = vmatpush1.bf16.msra.mxu0 %v1935
    %2106 = vmatprep.subr.bf16.mxu0 %v1940
    %2107 = vmatpush1.bf16.msra.mxu0 %v1939
    %2108 = vmatprep.subr.bf16.mxu0 %v1944
    %2109 = vmatpush1.bf16.msra.mxu0 %v1943
    %2110 = vmatprep.subr.bf16.mxu0 %v1948
    %2111 = vmatpush1.bf16.msra.mxu0 %v1947
    %2112 = vmatprep.subr.bf16.mxu0 %v1952
    %2113 = vmatpush1.bf16.msra.mxu0 %v1951
    %2114 = vmatprep.subr.bf16.mxu0 0
    %2115 = vmatpush1.bf16.msra.mxu0 0
    %2116 = vmatprep.subr.bf16.mxu0 0
    %2117 = vmatpush1.bf16.msra.mxu0 0
    %2118 = vmatprep.subr.bf16.mxu0 0
    %2119 = vmatpush1.bf16.msra.mxu0 0
    %2120 = vmatprep.subr.bf16.mxu0 0
    %2121 = vmatpush1.bf16.msra.mxu0 0
    %2122 = vmatprep.subr.bf16.mxu0 0
    %2123 = vmatpush1.bf16.msra.mxu0 0
    %2124 = vmatprep.subr.bf16.mxu0 0
    %2125 = vmatpush1.bf16.msra.mxu0 0
    %2126 = vmatprep.subr.bf16.mxu0 0
    %2127 = vmatpush1.bf16.msra.mxu0 0
    %2128 = vmatprep.subr.bf16.mxu0 0
    %2129 = vmatpush1.bf16.msra.mxu0 0
    %2130 = vmatprep.mubr.bf16.mxu0 0
    %2131 = vmatmul.mubr.bf16.gmra.mrb[0].mxu0 %v2097
    %v2132 = vpop.f32.mrb[0].mxu0
    %v2133 = vadd.f32 0.0, %v2132
    %v2134 = vpop.f32.mrb[0].mxu0
    %v2135 = vadd.f32 0.0, %v2134
    %v2136 = vpop.f32.mrb[0].mxu0
    %v2137 = vpop.f32.mrb[0].mxu0
    %2138 = vdwg.mxu0
    %2139 = vmatprep.subr.bf16.mxu0 %v1926
    %2140 = vmatpush1.bf16.msra.mxu0 %v1925
    %2141 = vmatprep.subr.bf16.mxu0 %v1930
    %2142 = vmatpush1.bf16.msra.mxu0 %v1929
    %2143 = vmatprep.subr.bf16.mxu0 %v1934
    %2144 = vmatpush1.bf16.msra.mxu0 %v1933
    %2145 = vmatprep.subr.bf16.mxu0 %v1938
    %2146 = vmatpush1.bf16.msra.mxu0 %v1937
    %2147 = vmatprep.subr.bf16.mxu0 %v1942
    %2148 = vmatpush1.bf16.msra.mxu0 %v1941
    %2149 = vmatprep.subr.bf16.mxu0 %v1946
    %2150 = vmatpush1.bf16.msra.mxu0 %v1945
    %2151 = vmatprep.subr.bf16.mxu0 %v1950
    %2152 = vmatpush1.bf16.msra.mxu0 %v1949
    %2153 = vmatprep.subr.bf16.mxu0 %v1954
    %2154 = vmatpush1.bf16.msra.mxu0 %v1953
    %2155 = vmatprep.subr.bf16.mxu0 0
    %2156 = vmatpush1.bf16.msra.mxu0 0
    %2157 = vmatprep.subr.bf16.mxu0 0
    %2158 = vmatpush1.bf16.msra.mxu0 0
    %2159 = vmatprep.subr.bf16.mxu0 0
    %2160 = vmatpush1.bf16.msra.mxu0 0
    %2161 = vmatprep.subr.bf16.mxu0 0
    %2162 = vmatpush1.bf16.msra.mxu0 0
    %2163 = vmatprep.subr.bf16.mxu0 0
    %2164 = vmatpush1.bf16.msra.mxu0 0
    %2165 = vmatprep.subr.bf16.mxu0 0
    %2166 = vmatpush1.bf16.msra.mxu0 0
    %2167 = vmatprep.subr.bf16.mxu0 0
    %2168 = vmatpush1.bf16.msra.mxu0 0
    %2169 = vmatprep.subr.bf16.mxu0 0
    %2170 = vmatpush1.bf16.msra.mxu0 0
    %2171 = vmatprep.mubr.bf16.mxu0 0
    %2172 = vmatmul.mubr.bf16.gmra.mrb[0].mxu0 %v2097
    %v2173 = vpop.f32.mrb[0].mxu0
    %v2174 = vadd.f32 0.0, %v2173
    %v2175 = vpop.f32.mrb[0].mxu0
    %v2176 = vadd.f32 0.0, %v2175
    %v2177 = vpop.f32.mrb[0].mxu0
    %v2178 = vpop.f32.mrb[0].mxu0
    %2179 = vdwg.mxu0
    %v2184 = vrot.slane %v2133, 6
    %v2185 = vrot.slane %v2135, 6
    %v2186 = vrot.slane %v2174, 6
    %v2187 = vrot.slane %v2176, 6
    %v2192 = vadd.f32 %v1658, %v2184
    %v2193 = vadd.f32 %v1660, %v2185
    %v2194 = vadd.f32 %v1787, %v2186
    %v2195 = vadd.f32 %v1789, %v2187
    %v2196 = vxor.u32 %v2192, 2147483648
    %v2197 = vmul.f32 %v2196, 1.442695
    %v2198 = vpow.pop %v2197
    %v2199 = vadd.f32 %v2198, 1.0
    %v2200 = vrcp.pop %v2199
    %v2201 = vmul.f32 1.0, %v2200
    %v2202 = vxor.u32 %v2193, 2147483648
    %v2203 = vmul.f32 %v2202, 1.442695
    %v2204 = vpow.pop %v2203
    %v2205 = vadd.f32 %v2204, 1.0
    %v2206 = vrcp.pop %v2205
    %v2207 = vmul.f32 1.0, %v2206
    %v2208 = vtanh.pop %v2194
    %v2209 = vxor.u32 %v2195, 2147483648
    %v2210 = vmul.f32 %v2209, 1.442695
    %v2211 = vpow.pop %v2210
    %v2212 = vadd.f32 %v2211, 1.0
    %v2213 = vrcp.pop %v2212
    %v2214 = vmul.f32 1.0, %v2213
    %v2216 = vrot.slane %v2094, 6
    %v2218 = vmul.f32 %v2207, %v2216
    %v2219 = vmul.f32 %v2201, %v2208
    %v2220 = vadd.f32 %v2218, %v2219
    %v2221 = vtanh.pop %v2220
    %v2222 = vmul.f32 %v2214, %v2221
    %v2223 = vpack.c.bf16 %v2222, %v2222
    %v2225 = vrot.slane %v2223, 1
    %2227 = vmatprep.subr.bf16.mxu0 %v1924
    %2228 = vmatpush1.bf16.msra.mxu0 %v1923
    %2229 = vmatprep.subr.bf16.mxu0 %v1928
    %2230 = vmatpush1.bf16.msra.mxu0 %v1927
    %2231 = vmatprep.subr.bf16.mxu0 %v1932
    %2232 = vmatpush1.bf16.msra.mxu0 %v1931
    %2233 = vmatprep.subr.bf16.mxu0 %v1936
    %2234 = vmatpush1.bf16.msra.mxu0 %v1935
    %2235 = vmatprep.subr.bf16.mxu0 %v1940
    %2236 = vmatpush1.bf16.msra.mxu0 %v1939
    %2237 = vmatprep.subr.bf16.mxu0 %v1944
    %2238 = vmatpush1.bf16.msra.mxu0 %v1943
    %2239 = vmatprep.subr.bf16.mxu0 %v1948
    %2240 = vmatpush1.bf16.msra.mxu0 %v1947
    %2241 = vmatprep.subr.bf16.mxu0 %v1952
    %2242 = vmatpush1.bf16.msra.mxu0 %v1951
    %2243 = vmatprep.subr.bf16.mxu0 0
    %2244 = vmatpush1.bf16.msra.mxu0 0
    %2245 = vmatprep.subr.bf16.mxu0 0
    %2246 = vmatpush1.bf16.msra.mxu0 0
    %2247 = vmatprep.subr.bf16.mxu0 0
    %2248 = vmatpush1.bf16.msra.mxu0 0
    %2249 = vmatprep.subr.bf16.mxu0 0
    %2250 = vmatpush1.bf16.msra.mxu0 0
    %2251 = vmatprep.subr.bf16.mxu0 0
    %2252 = vmatpush1.bf16.msra.mxu0 0
    %2253 = vmatprep.subr.bf16.mxu0 0
    %2254 = vmatpush1.bf16.msra.mxu0 0
    %2255 = vmatprep.subr.bf16.mxu0 0
    %2256 = vmatpush1.bf16.msra.mxu0 0
    %2257 = vmatprep.subr.bf16.mxu0 0
    %2258 = vmatpush1.bf16.msra.mxu0 0
    %2259 = vmatprep.mubr.bf16.mxu0 0
    %2260 = vmatmul.mubr.bf16.gmra.mrb[0].mxu0 %v2225
    %v2261 = vpop.f32.mrb[0].mxu0
    %v2262 = vadd.f32 0.0, %v2261
    %v2263 = vpop.f32.mrb[0].mxu0
    %v2264 = vadd.f32 0.0, %v2263
    %v2265 = vpop.f32.mrb[0].mxu0
    %v2266 = vpop.f32.mrb[0].mxu0
    %2267 = vdwg.mxu0
    %2268 = vmatprep.subr.bf16.mxu0 %v1926
    %2269 = vmatpush1.bf16.msra.mxu0 %v1925
    %2270 = vmatprep.subr.bf16.mxu0 %v1930
    %2271 = vmatpush1.bf16.msra.mxu0 %v1929
    %2272 = vmatprep.subr.bf16.mxu0 %v1934
    %2273 = vmatpush1.bf16.msra.mxu0 %v1933
    %2274 = vmatprep.subr.bf16.mxu0 %v1938
    %2275 = vmatpush1.bf16.msra.mxu0 %v1937
    %2276 = vmatprep.subr.bf16.mxu0 %v1942
    %2277 = vmatpush1.bf16.msra.mxu0 %v1941
    %2278 = vmatprep.subr.bf16.mxu0 %v1946
    %2279 = vmatpush1.bf16.msra.mxu0 %v1945
    %2280 = vmatprep.subr.bf16.mxu0 %v1950
    %2281 = vmatpush1.bf16.msra.mxu0 %v1949
    %2282 = vmatprep.subr.bf16.mxu0 %v1954
    %2283 = vmatpush1.bf16.msra.mxu0 %v1953
    %2284 = vmatprep.subr.bf16.mxu0 0
    %2285 = vmatpush1.bf16.msra.mxu0 0
    %2286 = vmatprep.subr.bf16.mxu0 0
    %2287 = vmatpush1.bf16.msra.mxu0 0
    %2288 = vmatprep.subr.bf16.mxu0 0
    %2289 = vmatpush1.bf16.msra.mxu0 0
    %2290 = vmatprep.subr.bf16.mxu0 0
    %2291 = vmatpush1.bf16.msra.mxu0 0
    %2292 = vmatprep.subr.bf16.mxu0 0
    %2293 = vmatpush1.bf16.msra.mxu0 0
    %2294 = vmatprep.subr.bf16.mxu0 0
    %2295 = vmatpush1.bf16.msra.mxu0 0
    %2296 = vmatprep.subr.bf16.mxu0 0
    %2297 = vmatpush1.bf16.msra.mxu0 0
    %2298 = vmatprep.subr.bf16.mxu0 0
    %2299 = vmatpush1.bf16.msra.mxu0 0
    %2300 = vmatprep.mubr.bf16.mxu0 0
    %2301 = vmatmul.mubr.bf16.gmra.mrb[0].mxu0 %v2225
    %v2302 = vpop.f32.mrb[0].mxu0
    %v2303 = vadd.f32 0.0, %v2302
    %v2304 = vpop.f32.mrb[0].mxu0
    %v2305 = vadd.f32 0.0, %v2304
    %v2306 = vpop.f32.mrb[0].mxu0
    %v2307 = vpop.f32.mrb[0].mxu0
    %2308 = vdwg.mxu0
    %v2313 = vrot.slane %v2262, 4
    %v2314 = vrot.slane %v2264, 4
    %v2315 = vrot.slane %v2303, 4
    %v2316 = vrot.slane %v2305, 4
    %v2321 = vadd.f32 %v1658, %v2313
    %v2322 = vadd.f32 %v1660, %v2314
    %v2323 = vadd.f32 %v1787, %v2315
    %v2324 = vadd.f32 %v1789, %v2316
    %v2325 = vxor.u32 %v2321, 2147483648
    %v2326 = vmul.f32 %v2325, 1.442695
    %v2327 = vpow.pop %v2326
    %v2328 = vadd.f32 %v2327, 1.0
    %v2329 = vrcp.pop %v2328
    %v2330 = vmul.f32 1.0, %v2329
    %v2331 = vxor.u32 %v2322, 2147483648
    %v2332 = vmul.f32 %v2331, 1.442695
    %v2333 = vpow.pop %v2332
    %v2334 = vadd.f32 %v2333, 1.0
    %v2335 = vrcp.pop %v2334
    %v2336 = vmul.f32 1.0, %v2335
    %v2337 = vtanh.pop %v2323
    %v2338 = vxor.u32 %v2324, 2147483648
    %v2339 = vmul.f32 %v2338, 1.442695
    %v2340 = vpow.pop %v2339
    %v2341 = vadd.f32 %v2340, 1.0
    %v2342 = vrcp.pop %v2341
    %v2343 = vmul.f32 1.0, %v2342
    %v2345 = vrot.slane %v2220, 6
    %v2347 = vmul.f32 %v2336, %v2345
    %v2348 = vmul.f32 %v2330, %v2337
    %v2349 = vadd.f32 %v2347, %v2348
    %v2350 = vtanh.pop %v2349
    %v2351 = vmul.f32 %v2343, %v2350
    %v2352 = vpack.c.bf16 %v2351, %v2351
    %v2354 = vrot.slane %v2352, 2
    %2356 = vmatprep.subr.bf16.mxu0 %v1924
    %2357 = vmatpush1.bf16.msra.mxu0 %v1923
    %2358 = vmatprep.subr.bf16.mxu0 %v1928
    %2359 = vmatpush1.bf16.msra.mxu0 %v1927
    %2360 = vmatprep.subr.bf16.mxu0 %v1932
    %2361 = vmatpush1.bf16.msra.mxu0 %v1931
    %2362 = vmatprep.subr.bf16.mxu0 %v1936
    %2363 = vmatpush1.bf16.msra.mxu0 %v1935
    %2364 = vmatprep.subr.bf16.mxu0 %v1940
    %2365 = vmatpush1.bf16.msra.mxu0 %v1939
    %2366 = vmatprep.subr.bf16.mxu0 %v1944
    %2367 = vmatpush1.bf16.msra.mxu0 %v1943
    %2368 = vmatprep.subr.bf16.mxu0 %v1948
    %2369 = vmatpush1.bf16.msra.mxu0 %v1947
    %2370 = vmatprep.subr.bf16.mxu0 %v1952
    %2371 = vmatpush1.bf16.msra.mxu0 %v1951
    %2372 = vmatprep.subr.bf16.mxu0 0
    %2373 = vmatpush1.bf16.msra.mxu0 0
    %2374 = vmatprep.subr.bf16.mxu0 0
    %2375 = vmatpush1.bf16.msra.mxu0 0
    %2376 = vmatprep.subr.bf16.mxu0 0
    %2377 = vmatpush1.bf16.msra.mxu0 0
    %2378 = vmatprep.subr.bf16.mxu0 0
    %2379 = vmatpush1.bf16.msra.mxu0 0
    %2380 = vmatprep.subr.bf16.mxu0 0
    %2381 = vmatpush1.bf16.msra.mxu0 0
    %2382 = vmatprep.subr.bf16.mxu0 0
    %2383 = vmatpush1.bf16.msra.mxu0 0
    %2384 = vmatprep.subr.bf16.mxu0 0
    %2385 = vmatpush1.bf16.msra.mxu0 0
    %2386 = vmatprep.subr.bf16.mxu0 0
    %2387 = vmatpush1.bf16.msra.mxu0 0
    %2388 = vmatprep.mubr.bf16.mxu0 0
    %2389 = vmatmul.mubr.bf16.gmra.mrb[0].mxu0 %v2354
    %v2390 = vpop.f32.mrb[0].mxu0
    %v2391 = vadd.f32 0.0, %v2390
    %v2392 = vpop.f32.mrb[0].mxu0
    %v2393 = vadd.f32 0.0, %v2392
    %v2394 = vpop.f32.mrb[0].mxu0
    %v2395 = vpop.f32.mrb[0].mxu0
    %2396 = vdwg.mxu0
    %2397 = vmatprep.subr.bf16.mxu0 %v1926
    %2398 = vmatpush1.bf16.msra.mxu0 %v1925
    %2399 = vmatprep.subr.bf16.mxu0 %v1930
    %2400 = vmatpush1.bf16.msra.mxu0 %v1929
    %2401 = vmatprep.subr.bf16.mxu0 %v1934
    %2402 = vmatpush1.bf16.msra.mxu0 %v1933
    %2403 = vmatprep.subr.bf16.mxu0 %v1938
    %2404 = vmatpush1.bf16.msra.mxu0 %v1937
    %2405 = vmatprep.subr.bf16.mxu0 %v1942
    %2406 = vmatpush1.bf16.msra.mxu0 %v1941
    %2407 = vmatprep.subr.bf16.mxu0 %v1946
    %2408 = vmatpush1.bf16.msra.mxu0 %v1945
    %2409 = vmatprep.subr.bf16.mxu0 %v1950
    %2410 = vmatpush1.bf16.msra.mxu0 %v1949
    %2411 = vmatprep.subr.bf16.mxu0 %v1954
    %2412 = vmatpush1.bf16.msra.mxu0 %v1953
    %2413 = vmatprep.subr.bf16.mxu0 0
    %2414 = vmatpush1.bf16.msra.mxu0 0
    %2415 = vmatprep.subr.bf16.mxu0 0
    %2416 = vmatpush1.bf16.msra.mxu0 0
    %2417 = vmatprep.subr.bf16.mxu0 0
    %2418 = vmatpush1.bf16.msra.mxu0 0
    %2419 = vmatprep.subr.bf16.mxu0 0
    %2420 = vmatpush1.bf16.msra.mxu0 0
    %2421 = vmatprep.subr.bf16.mxu0 0
    %2422 = vmatpush1.bf16.msra.mxu0 0
    %2423 = vmatprep.subr.bf16.mxu0 0
    %2424 = vmatpush1.bf16.msra.mxu0 0
    %2425 = vmatprep.subr.bf16.mxu0 0
    %2426 = vmatpush1.bf16.msra.mxu0 0
    %2427 = vmatprep.subr.bf16.mxu0 0
    %2428 = vmatpush1.bf16.msra.mxu0 0
    %2429 = vmatprep.mubr.bf16.mxu0 0
    %2430 = vmatmul.mubr.bf16.gmra.mrb[0].mxu0 %v2354
    %v2431 = vpop.f32.mrb[0].mxu0
    %v2432 = vadd.f32 0.0, %v2431
    %v2433 = vpop.f32.mrb[0].mxu0
    %v2434 = vadd.f32 0.0, %v2433
    %v2435 = vpop.f32.mrb[0].mxu0
    %v2436 = vpop.f32.mrb[0].mxu0
    %2437 = vdwg.mxu0
    %v2442 = vrot.slane %v2391, 2
    %v2443 = vrot.slane %v2393, 2
    %v2444 = vrot.slane %v2432, 2
    %v2445 = vrot.slane %v2434, 2
    %v2450 = vadd.f32 %v1658, %v2442
    %v2451 = vadd.f32 %v1660, %v2443
    %v2452 = vadd.f32 %v1787, %v2444
    %v2453 = vadd.f32 %v1789, %v2445
    %v2454 = vxor.u32 %v2450, 2147483648
    %v2455 = vmul.f32 %v2454, 1.442695
    %v2456 = vpow.pop %v2455
    %v2457 = vadd.f32 %v2456, 1.0
    %v2458 = vrcp.pop %v2457
    %v2459 = vmul.f32 1.0, %v2458
    %v2460 = vxor.u32 %v2451, 2147483648
    %v2461 = vmul.f32 %v2460, 1.442695
    %v2462 = vpow.pop %v2461
    %v2463 = vadd.f32 %v2462, 1.0
    %v2464 = vrcp.pop %v2463
    %v2465 = vmul.f32 1.0, %v2464
    %v2466 = vtanh.pop %v2452
    %v2467 = vxor.u32 %v2453, 2147483648
    %v2468 = vmul.f32 %v2467, 1.442695
    %v2469 = vpow.pop %v2468
    %v2470 = vadd.f32 %v2469, 1.0
    %v2471 = vrcp.pop %v2470
    %v2472 = vmul.f32 1.0, %v2471
    %v2474 = vrot.slane %v2349, 6
    %v2476 = vmul.f32 %v2465, %v2474
    %v2477 = vmul.f32 %v2459, %v2466
    %v2478 = vadd.f32 %v2476, %v2477
    %v2479 = vtanh.pop %v2478
    %v2480 = vmul.f32 %v2472, %v2479
    %v2481 = vpack.c.bf16 %v2480, %v2480
    %v2483 = vrot.slane %v2481, 3
    %2485 = vmatprep.subr.bf16.mxu0 %v1924
    %2486 = vmatpush1.bf16.msra.mxu0 %v1923
    %2487 = vmatprep.subr.bf16.mxu0 %v1928
    %2488 = vmatpush1.bf16.msra.mxu0 %v1927
    %2489 = vmatprep.subr.bf16.mxu0 %v1932
    %2490 = vmatpush1.bf16.msra.mxu0 %v1931
    %2491 = vmatprep.subr.bf16.mxu0 %v1936
    %2492 = vmatpush1.bf16.msra.mxu0 %v1935
    %2493 = vmatprep.subr.bf16.mxu0 %v1940
    %2494 = vmatpush1.bf16.msra.mxu0 %v1939
    %2495 = vmatprep.subr.bf16.mxu0 %v1944
    %2496 = vmatpush1.bf16.msra.mxu0 %v1943
    %2497 = vmatprep.subr.bf16.mxu0 %v1948
    %2498 = vmatpush1.bf16.msra.mxu0 %v1947
    %2499 = vmatprep.subr.bf16.mxu0 %v1952
    %2500 = vmatpush1.bf16.msra.mxu0 %v1951
    %2501 = vmatprep.subr.bf16.mxu0 0
    %2502 = vmatpush1.bf16.msra.mxu0 0
    %2503 = vmatprep.subr.bf16.mxu0 0
    %2504 = vmatpush1.bf16.msra.mxu0 0
    %2505 = vmatprep.subr.bf16.mxu0 0
    %2506 = vmatpush1.bf16.msra.mxu0 0
    %2507 = vmatprep.subr.bf16.mxu0 0
    %2508 = vmatpush1.bf16.msra.mxu0 0
    %2509 = vmatprep.subr.bf16.mxu0 0
    %2510 = vmatpush1.bf16.msra.mxu0 0
    %2511 = vmatprep.subr.bf16.mxu0 0
    %2512 = vmatpush1.bf16.msra.mxu0 0
    %2513 = vmatprep.subr.bf16.mxu0 0
    %2514 = vmatpush1.bf16.msra.mxu0 0
    %2515 = vmatprep.subr.bf16.mxu0 0
    %2516 = vmatpush1.bf16.msra.mxu0 0
    %2517 = vmatprep.mubr.bf16.mxu0 0
    %2518 = vmatmul.mubr.bf16.gmra.mrb[0].mxu0 %v2483
    %v2519 = vpop.f32.mrb[0].mxu0
    %v2520 = vadd.f32 0.0, %v2519
    %v2521 = vpop.f32.mrb[0].mxu0
    %v2522 = vadd.f32 0.0, %v2521
    %v2523 = vpop.f32.mrb[0].mxu0
    %v2524 = vpop.f32.mrb[0].mxu0
    %2525 = vdwg.mxu0
    %2526 = vmatprep.subr.bf16.mxu0 %v1926
    %2527 = vmatpush1.bf16.msra.mxu0 %v1925
    %2528 = vmatprep.subr.bf16.mxu0 %v1930
    %2529 = vmatpush1.bf16.msra.mxu0 %v1929
    %2530 = vmatprep.subr.bf16.mxu0 %v1934
    %2531 = vmatpush1.bf16.msra.mxu0 %v1933
    %2532 = vmatprep.subr.bf16.mxu0 %v1938
    %2533 = vmatpush1.bf16.msra.mxu0 %v1937
    %2534 = vmatprep.subr.bf16.mxu0 %v1942
    %2535 = vmatpush1.bf16.msra.mxu0 %v1941
    %2536 = vmatprep.subr.bf16.mxu0 %v1946
    %2537 = vmatpush1.bf16.msra.mxu0 %v1945
    %2538 = vmatprep.subr.bf16.mxu0 %v1950
    %2539 = vmatpush1.bf16.msra.mxu0 %v1949
    %2540 = vmatprep.subr.bf16.mxu0 %v1954
    %2541 = vmatpush1.bf16.msra.mxu0 %v1953
    %2542 = vmatprep.subr.bf16.mxu0 0
    %2543 = vmatpush1.bf16.msra.mxu0 0
    %2544 = vmatprep.subr.bf16.mxu0 0
    %2545 = vmatpush1.bf16.msra.mxu0 0
    %2546 = vmatprep.subr.bf16.mxu0 0
    %2547 = vmatpush1.bf16.msra.mxu0 0
    %2548 = vmatprep.subr.bf16.mxu0 0
    %2549 = vmatpush1.bf16.msra.mxu0 0
    %2550 = vmatprep.subr.bf16.mxu0 0
    %2551 = vmatpush1.bf16.msra.mxu0 0
    %2552 = vmatprep.subr.bf16.mxu0 0
    %2553 = vmatpush1.bf16.msra.mxu0 0
    %2554 = vmatprep.subr.bf16.mxu0 0
    %2555 = vmatpush1.bf16.msra.mxu0 0
    %2556 = vmatprep.subr.bf16.mxu0 0
    %2557 = vmatpush1.bf16.msra.mxu0 0
    %2558 = vmatprep.mubr.bf16.mxu0 0
    %2559 = vmatmul.mubr.bf16.gmra.mrb[0].mxu0 %v2483
    %v2560 = vpop.f32.mrb[0].mxu0
    %v2561 = vadd.f32 0.0, %v2560
    %v2562 = vpop.f32.mrb[0].mxu0
    %v2563 = vadd.f32 0.0, %v2562
    %v2564 = vpop.f32.mrb[0].mxu0
    %v2565 = vpop.f32.mrb[0].mxu0
    %2566 = vdwg.mxu0
    %v2567 = vadd.f32 %v1662, %v2520
    %v2568 = vadd.f32 %v1664, %v2522
    %v2569 = vadd.f32 %v1791, %v2561
    %v2570 = vadd.f32 %v1793, %v2563
    %v2571 = vxor.u32 %v2567, 2147483648
    %v2572 = vmul.f32 %v2571, 1.442695
    %v2573 = vpow.pop %v2572
    %v2574 = vadd.f32 %v2573, 1.0
    %v2575 = vrcp.pop %v2574
    %v2576 = vmul.f32 1.0, %v2575
    %v2577 = vxor.u32 %v2568, 2147483648
    %v2578 = vmul.f32 %v2577, 1.442695
    %v2579 = vpow.pop %v2578
    %v2580 = vadd.f32 %v2579, 1.0
    %v2581 = vrcp.pop %v2580
    %v2582 = vmul.f32 1.0, %v2581
    %v2583 = vtanh.pop %v2569
    %v2584 = vxor.u32 %v2570, 2147483648
    %v2585 = vmul.f32 %v2584, 1.442695
    %v2586 = vpow.pop %v2585
    %v2587 = vadd.f32 %v2586, 1.0
    %v2588 = vrcp.pop %v2587
    %v2589 = vmul.f32 1.0, %v2588
    %v2591 = vrot.slane %v2478, 6
    %v2593 = vmul.f32 %v2582, %v2591
    %v2594 = vmul.f32 %v2576, %v2583
    %v2595 = vadd.f32 %v2593, %v2594
    %v2596 = vtanh.pop %v2595
    %v2597 = vmul.f32 %v2589, %v2596
    %v2598 = vpack.c.bf16 %v2597, %v2597
    %2599 = vmatprep.subr.bf16.mxu0 %v1924
    %2600 = vmatpush1.bf16.msra.mxu0 %v1923
    %2601 = vmatprep.subr.bf16.mxu0 %v1928
    %2602 = vmatpush1.bf16.msra.mxu0 %v1927
    %2603 = vmatprep.subr.bf16.mxu0 %v1932
    %2604 = vmatpush1.bf16.msra.mxu0 %v1931
    %2605 = vmatprep.subr.bf16.mxu0 %v1936
    %2606 = vmatpush1.bf16.msra.mxu0 %v1935
    %2607 = vmatprep.subr.bf16.mxu0 %v1940
    %2608 = vmatpush1.bf16.msra.mxu0 %v1939
    %2609 = vmatprep.subr.bf16.mxu0 %v1944
    %2610 = vmatpush1.bf16.msra.mxu0 %v1943
    %2611 = vmatprep.subr.bf16.mxu0 %v1948
    %2612 = vmatpush1.bf16.msra.mxu0 %v1947
    %2613 = vmatprep.subr.bf16.mxu0 %v1952
    %2614 = vmatpush1.bf16.msra.mxu0 %v1951
    %2615 = vmatprep.subr.bf16.mxu0 0
    %2616 = vmatpush1.bf16.msra.mxu0 0
    %2617 = vmatprep.subr.bf16.mxu0 0
    %2618 = vmatpush1.bf16.msra.mxu0 0
    %2619 = vmatprep.subr.bf16.mxu0 0
    %2620 = vmatpush1.bf16.msra.mxu0 0
    %2621 = vmatprep.subr.bf16.mxu0 0
    %2622 = vmatpush1.bf16.msra.mxu0 0
    %2623 = vmatprep.subr.bf16.mxu0 0
    %2624 = vmatpush1.bf16.msra.mxu0 0
    %2625 = vmatprep.subr.bf16.mxu0 0
    %2626 = vmatpush1.bf16.msra.mxu0 0
    %2627 = vmatprep.subr.bf16.mxu0 0
    %2628 = vmatpush1.bf16.msra.mxu0 0
    %2629 = vmatprep.subr.bf16.mxu0 0
    %2630 = vmatpush1.bf16.msra.mxu0 0
    %2631 = vmatprep.mubr.bf16.mxu0 0
    %2632 = vmatmul.mubr.bf16.gmra.mrb[0].mxu0 %v2598
    %v2633 = vpop.f32.mrb[0].mxu0
    %v2634 = vadd.f32 0.0, %v2633
    %v2635 = vpop.f32.mrb[0].mxu0
    %v2636 = vadd.f32 0.0, %v2635
    %v2637 = vpop.f32.mrb[0].mxu0
    %v2638 = vpop.f32.mrb[0].mxu0
    %2639 = vdwg.mxu0
    %2640 = vmatprep.subr.bf16.mxu0 %v1926
    %2641 = vmatpush1.bf16.msra.mxu0 %v1925
    %2642 = vmatprep.subr.bf16.mxu0 %v1930
    %2643 = vmatpush1.bf16.msra.mxu0 %v1929
    %2644 = vmatprep.subr.bf16.mxu0 %v1934
    %2645 = vmatpush1.bf16.msra.mxu0 %v1933
    %2646 = vmatprep.subr.bf16.mxu0 %v1938
    %2647 = vmatpush1.bf16.msra.mxu0 %v1937
    %2648 = vmatprep.subr.bf16.mxu0 %v1942
    %2649 = vmatpush1.bf16.msra.mxu0 %v1941
    %2650 = vmatprep.subr.bf16.mxu0 %v1946
    %2651 = vmatpush1.bf16.msra.mxu0 %v1945
    %2652 = vmatprep.subr.bf16.mxu0 %v1950
    %2653 = vmatpush1.bf16.msra.mxu0 %v1949
    %2654 = vmatprep.subr.bf16.mxu0 %v1954
    %2655 = vmatpush1.bf16.msra.mxu0 %v1953
    %2656 = vmatprep.subr.bf16.mxu0 0
    %2657 = vmatpush1.bf16.msra.mxu0 0
    %2658 = vmatprep.subr.bf16.mxu0 0
    %2659 = vmatpush1.bf16.msra.mxu0 0
    %2660 = vmatprep.subr.bf16.mxu0 0
    %2661 = vmatpush1.bf16.msra.mxu0 0
    %2662 = vmatprep.subr.bf16.mxu0 0
    %2663 = vmatpush1.bf16.msra.mxu0 0
    %2664 = vmatprep.subr.bf16.mxu0 0
    %2665 = vmatpush1.bf16.msra.mxu0 0
    %2666 = vmatprep.subr.bf16.mxu0 0
    %2667 = vmatpush1.bf16.msra.mxu0 0
    %2668 = vmatprep.subr.bf16.mxu0 0
    %2669 = vmatpush1.bf16.msra.mxu0 0
    %2670 = vmatprep.subr.bf16.mxu0 0
    %2671 = vmatpush1.bf16.msra.mxu0 0
    %2672 = vmatprep.mubr.bf16.mxu0 0
    %2673 = vmatmul.mubr.bf16.gmra.mrb[0].mxu0 %v2598
    %v2674 = vpop.f32.mrb[0].mxu0
    %v2675 = vadd.f32 0.0, %v2674
    %v2676 = vpop.f32.mrb[0].mxu0
    %v2677 = vadd.f32 0.0, %v2676
    %v2678 = vpop.f32.mrb[0].mxu0
    %v2679 = vpop.f32.mrb[0].mxu0
    %2680 = vdwg.mxu0
    %v2685 = vrot.slane %v2634, 6
    %v2686 = vrot.slane %v2636, 6
    %v2687 = vrot.slane %v2675, 6
    %v2688 = vrot.slane %v2677, 6
    %v2693 = vadd.f32 %v1662, %v2685
    %v2694 = vadd.f32 %v1664, %v2686
    %v2695 = vadd.f32 %v1791, %v2687
    %v2696 = vadd.f32 %v1793, %v2688
    %v2697 = vxor.u32 %v2693, 2147483648
    %v2698 = vmul.f32 %v2697, 1.442695
    %v2699 = vpow.pop %v2698
    %v2700 = vadd.f32 %v2699, 1.0
    %v2701 = vrcp.pop %v2700
    %v2702 = vmul.f32 1.0, %v2701
    %v2703 = vxor.u32 %v2694, 2147483648
    %v2704 = vmul.f32 %v2703, 1.442695
    %v2705 = vpow.pop %v2704
    %v2706 = vadd.f32 %v2705, 1.0
    %v2707 = vrcp.pop %v2706
    %v2708 = vmul.f32 1.0, %v2707
    %v2709 = vtanh.pop %v2695
    %v2710 = vxor.u32 %v2696, 2147483648
    %v2711 = vmul.f32 %v2710, 1.442695
    %v2712 = vpow.pop %v2711
    %v2713 = vadd.f32 %v2712, 1.0
    %v2714 = vrcp.pop %v2713
    %v2715 = vmul.f32 1.0, %v2714
    %v2717 = vrot.slane %v2595, 6
    %v2719 = vmul.f32 %v2708, %v2717
    %v2720 = vmul.f32 %v2702, %v2709
    %v2721 = vadd.f32 %v2719, %v2720
    %v2722 = vtanh.pop %v2721
    %v2723 = vmul.f32 %v2715, %v2722
    %v2724 = vpack.c.bf16 %v2723, %v2723
    %v2726 = vrot.slane %v2724, 1
    %2728 = vmatprep.subr.bf16.mxu0 %v1924
    %2729 = vmatpush1.bf16.msra.mxu0 %v1923
    %2730 = vmatprep.subr.bf16.mxu0 %v1928
    %2731 = vmatpush1.bf16.msra.mxu0 %v1927
    %2732 = vmatprep.subr.bf16.mxu0 %v1932
    %2733 = vmatpush1.bf16.msra.mxu0 %v1931
    %2734 = vmatprep.subr.bf16.mxu0 %v1936
    %2735 = vmatpush1.bf16.msra.mxu0 %v1935
    %2736 = vmatprep.subr.bf16.mxu0 %v1940
    %2737 = vmatpush1.bf16.msra.mxu0 %v1939
    %2738 = vmatprep.subr.bf16.mxu0 %v1944
    %2739 = vmatpush1.bf16.msra.mxu0 %v1943
    %2740 = vmatprep.subr.bf16.mxu0 %v1948
    %2741 = vmatpush1.bf16.msra.mxu0 %v1947
    %2742 = vmatprep.subr.bf16.mxu0 %v1952
    %2743 = vmatpush1.bf16.msra.mxu0 %v1951
    %2744 = vmatprep.subr.bf16.mxu0 0
    %2745 = vmatpush1.bf16.msra.mxu0 0
    %2746 = vmatprep.subr.bf16.mxu0 0
    %2747 = vmatpush1.bf16.msra.mxu0 0
    %2748 = vmatprep.subr.bf16.mxu0 0
    %2749 = vmatpush1.bf16.msra.mxu0 0
    %2750 = vmatprep.subr.bf16.mxu0 0
    %2751 = vmatpush1.bf16.msra.mxu0 0
    %2752 = vmatprep.subr.bf16.mxu0 0
    %2753 = vmatpush1.bf16.msra.mxu0 0
    %2754 = vmatprep.subr.bf16.mxu0 0
    %2755 = vmatpush1.bf16.msra.mxu0 0
    %2756 = vmatprep.subr.bf16.mxu0 0
    %2757 = vmatpush1.bf16.msra.mxu0 0
    %2758 = vmatprep.subr.bf16.mxu0 0
    %2759 = vmatpush1.bf16.msra.mxu0 0
    %2760 = vmatprep.mubr.bf16.mxu0 0
    %2761 = vmatmul.mubr.bf16.gmra.mrb[0].mxu0 %v2726
    %v2762 = vpop.f32.mrb[0].mxu0
    %v2763 = vadd.f32 0.0, %v2762
    %v2764 = vpop.f32.mrb[0].mxu0
    %v2765 = vadd.f32 0.0, %v2764
    %v2766 = vpop.f32.mrb[0].mxu0
    %v2767 = vpop.f32.mrb[0].mxu0
    %2768 = vdwg.mxu0
    %2769 = vmatprep.subr.bf16.mxu0 %v1926
    %2770 = vmatpush1.bf16.msra.mxu0 %v1925
    %2771 = vmatprep.subr.bf16.mxu0 %v1930
    %2772 = vmatpush1.bf16.msra.mxu0 %v1929
    %2773 = vmatprep.subr.bf16.mxu0 %v1934
    %2774 = vmatpush1.bf16.msra.mxu0 %v1933
    %2775 = vmatprep.subr.bf16.mxu0 %v1938
    %2776 = vmatpush1.bf16.msra.mxu0 %v1937
    %2777 = vmatprep.subr.bf16.mxu0 %v1942
    %2778 = vmatpush1.bf16.msra.mxu0 %v1941
    %2779 = vmatprep.subr.bf16.mxu0 %v1946
    %2780 = vmatpush1.bf16.msra.mxu0 %v1945
    %2781 = vmatprep.subr.bf16.mxu0 %v1950
    %2782 = vmatpush1.bf16.msra.mxu0 %v1949
    %2783 = vmatprep.subr.bf16.mxu0 %v1954
    %2784 = vmatpush1.bf16.msra.mxu0 %v1953
    %2785 = vmatprep.subr.bf16.mxu0 0
    %2786 = vmatpush1.bf16.msra.mxu0 0
    %2787 = vmatprep.subr.bf16.mxu0 0
    %2788 = vmatpush1.bf16.msra.mxu0 0
    %2789 = vmatprep.subr.bf16.mxu0 0
    %2790 = vmatpush1.bf16.msra.mxu0 0
    %2791 = vmatprep.subr.bf16.mxu0 0
    %2792 = vmatpush1.bf16.msra.mxu0 0
    %2793 = vmatprep.subr.bf16.mxu0 0
    %2794 = vmatpush1.bf16.msra.mxu0 0
    %2795 = vmatprep.subr.bf16.mxu0 0
    %2796 = vmatpush1.bf16.msra.mxu0 0
    %2797 = vmatprep.subr.bf16.mxu0 0
    %2798 = vmatpush1.bf16.msra.mxu0 0
    %2799 = vmatprep.subr.bf16.mxu0 0
    %2800 = vmatpush1.bf16.msra.mxu0 0
    %2801 = vmatprep.mubr.bf16.mxu0 0
    %2802 = vmatmul.mubr.bf16.gmra.mrb[0].mxu0 %v2726
    %v2803 = vpop.f32.mrb[0].mxu0
    %v2804 = vadd.f32 0.0, %v2803
    %v2805 = vpop.f32.mrb[0].mxu0
    %v2806 = vadd.f32 0.0, %v2805
    %v2807 = vpop.f32.mrb[0].mxu0
    %v2808 = vpop.f32.mrb[0].mxu0
    %2809 = vdwg.mxu0
    %v2814 = vrot.slane %v2763, 4
    %v2815 = vrot.slane %v2765, 4
    %v2816 = vrot.slane %v2804, 4
    %v2817 = vrot.slane %v2806, 4
    %v2822 = vadd.f32 %v1662, %v2814
    %v2823 = vadd.f32 %v1664, %v2815
    %v2824 = vadd.f32 %v1791, %v2816
    %v2825 = vadd.f32 %v1793, %v2817
    %v2826 = vxor.u32 %v2822, 2147483648
    %v2827 = vmul.f32 %v2826, 1.442695
    %v2828 = vpow.pop %v2827
    %v2829 = vadd.f32 %v2828, 1.0
    %v2830 = vrcp.pop %v2829
    %v2831 = vmul.f32 1.0, %v2830
    %v2832 = vxor.u32 %v2823, 2147483648
    %v2833 = vmul.f32 %v2832, 1.442695
    %v2834 = vpow.pop %v2833
    %v2835 = vadd.f32 %v2834, 1.0
    %v2836 = vrcp.pop %v2835
    %v2837 = vmul.f32 1.0, %v2836
    %v2838 = vtanh.pop %v2824
    %v2839 = vxor.u32 %v2825, 2147483648
    %v2840 = vmul.f32 %v2839, 1.442695
    %v2841 = vpow.pop %v2840
    %v2842 = vadd.f32 %v2841, 1.0
    %v2843 = vrcp.pop %v2842
    %v2844 = vmul.f32 1.0, %v2843
    %v2846 = vrot.slane %v2721, 6
    %v2848 = vmul.f32 %v2837, %v2846
    %v2849 = vmul.f32 %v2831, %v2838
    %v2850 = vadd.f32 %v2848, %v2849
    %v2851 = vtanh.pop %v2850
    %v2852 = vmul.f32 %v2844, %v2851
    %v2853 = vpack.c.bf16 %v2852, %v2852
    %v2855 = vrot.slane %v2853, 2
    %2857 = vmatprep.subr.bf16.mxu0 %v1924
    %2858 = vmatpush1.bf16.msra.mxu0 %v1923
    %2859 = vmatprep.subr.bf16.mxu0 %v1928
    %2860 = vmatpush1.bf16.msra.mxu0 %v1927
    %2861 = vmatprep.subr.bf16.mxu0 %v1932
    %2862 = vmatpush1.bf16.msra.mxu0 %v1931
    %2863 = vmatprep.subr.bf16.mxu0 %v1936
    %2864 = vmatpush1.bf16.msra.mxu0 %v1935
    %2865 = vmatprep.subr.bf16.mxu0 %v1940
    %2866 = vmatpush1.bf16.msra.mxu0 %v1939
    %2867 = vmatprep.subr.bf16.mxu0 %v1944
    %2868 = vmatpush1.bf16.msra.mxu0 %v1943
    %2869 = vmatprep.subr.bf16.mxu0 %v1948
    %2870 = vmatpush1.bf16.msra.mxu0 %v1947
    %2871 = vmatprep.subr.bf16.mxu0 %v1952
    %2872 = vmatpush1.bf16.msra.mxu0 %v1951
    %2873 = vmatprep.subr.bf16.mxu0 0
    %2874 = vmatpush1.bf16.msra.mxu0 0
    %2875 = vmatprep.subr.bf16.mxu0 0
    %2876 = vmatpush1.bf16.msra.mxu0 0
    %2877 = vmatprep.subr.bf16.mxu0 0
    %2878 = vmatpush1.bf16.msra.mxu0 0
    %2879 = vmatprep.subr.bf16.mxu0 0
    %2880 = vmatpush1.bf16.msra.mxu0 0
    %2881 = vmatprep.subr.bf16.mxu0 0
    %2882 = vmatpush1.bf16.msra.mxu0 0
    %2883 = vmatprep.subr.bf16.mxu0 0
    %2884 = vmatpush1.bf16.msra.mxu0 0
    %2885 = vmatprep.subr.bf16.mxu0 0
    %2886 = vmatpush1.bf16.msra.mxu0 0
    %2887 = vmatprep.subr.bf16.mxu0 0
    %2888 = vmatpush1.bf16.msra.mxu0 0
    %2889 = vmatprep.mubr.bf16.mxu0 0
    %2890 = vmatmul.mubr.bf16.gmra.mrb[0].mxu0 %v2855
    %v2891 = vpop.f32.mrb[0].mxu0
    %v2892 = vadd.f32 0.0, %v2891
    %v2893 = vpop.f32.mrb[0].mxu0
    %v2894 = vadd.f32 0.0, %v2893
    %v2895 = vpop.f32.mrb[0].mxu0
    %v2896 = vpop.f32.mrb[0].mxu0
    %2897 = vdwg.mxu0
    %2898 = vmatprep.subr.bf16.mxu0 %v1926
    %2899 = vmatpush1.bf16.msra.mxu0 %v1925
    %2900 = vmatprep.subr.bf16.mxu0 %v1930
    %2901 = vmatpush1.bf16.msra.mxu0 %v1929
    %2902 = vmatprep.subr.bf16.mxu0 %v1934
    %2903 = vmatpush1.bf16.msra.mxu0 %v1933
    %2904 = vmatprep.subr.bf16.mxu0 %v1938
    %2905 = vmatpush1.bf16.msra.mxu0 %v1937
    %2906 = vmatprep.subr.bf16.mxu0 %v1942
    %2907 = vmatpush1.bf16.msra.mxu0 %v1941
    %2908 = vmatprep.subr.bf16.mxu0 %v1946
    %2909 = vmatpush1.bf16.msra.mxu0 %v1945
    %2910 = vmatprep.subr.bf16.mxu0 %v1950
    %2911 = vmatpush1.bf16.msra.mxu0 %v1949
    %2912 = vmatprep.subr.bf16.mxu0 %v1954
    %2913 = vmatpush1.bf16.msra.mxu0 %v1953
    %2914 = vmatprep.subr.bf16.mxu0 0
    %2915 = vmatpush1.bf16.msra.mxu0 0
    %2916 = vmatprep.subr.bf16.mxu0 0
    %2917 = vmatpush1.bf16.msra.mxu0 0
    %2918 = vmatprep.subr.bf16.mxu0 0
    %2919 = vmatpush1.bf16.msra.mxu0 0
    %2920 = vmatprep.subr.bf16.mxu0 0
    %2921 = vmatpush1.bf16.msra.mxu0 0
    %2922 = vmatprep.subr.bf16.mxu0 0
    %2923 = vmatpush1.bf16.msra.mxu0 0
    %2924 = vmatprep.subr.bf16.mxu0 0
    %2925 = vmatpush1.bf16.msra.mxu0 0
    %2926 = vmatprep.subr.bf16.mxu0 0
    %2927 = vmatpush1.bf16.msra.mxu0 0
    %2928 = vmatprep.subr.bf16.mxu0 0
    %2929 = vmatpush1.bf16.msra.mxu0 0
    %2930 = vmatprep.mubr.bf16.mxu0 0
    %2931 = vmatmul.mubr.bf16.gmra.mrb[0].mxu0 %v2855
    %v2932 = vpop.f32.mrb[0].mxu0
    %v2933 = vadd.f32 0.0, %v2932
    %v2934 = vpop.f32.mrb[0].mxu0
    %v2935 = vadd.f32 0.0, %v2934
    %v2936 = vpop.f32.mrb[0].mxu0
    %v2937 = vpop.f32.mrb[0].mxu0
    %2938 = vdwg.mxu0
    %v2943 = vrot.slane %v2892, 2
    %v2944 = vrot.slane %v2894, 2
    %v2945 = vrot.slane %v2933, 2
    %v2946 = vrot.slane %v2935, 2
    %v2951 = vadd.f32 %v1662, %v2943
    %v2952 = vadd.f32 %v1664, %v2944
    %v2953 = vadd.f32 %v1791, %v2945
    %v2954 = vadd.f32 %v1793, %v2946
    %v2955 = vxor.u32 %v2951, 2147483648
    %v2956 = vmul.f32 %v2955, 1.442695
    %v2957 = vpow.pop %v2956
    %v2958 = vadd.f32 %v2957, 1.0
    %v2959 = vrcp.pop %v2958
    %v2960 = vmul.f32 1.0, %v2959
    %v2961 = vxor.u32 %v2952, 2147483648
    %v2962 = vmul.f32 %v2961, 1.442695
    %v2963 = vpow.pop %v2962
    %v2964 = vadd.f32 %v2963, 1.0
    %v2965 = vrcp.pop %v2964
    %v2966 = vmul.f32 1.0, %v2965
    %v2967 = vtanh.pop %v2953
    %v2968 = vxor.u32 %v2954, 2147483648
    %v2969 = vmul.f32 %v2968, 1.442695
    %v2970 = vpow.pop %v2969
    %v2971 = vadd.f32 %v2970, 1.0
    %v2972 = vrcp.pop %v2971
    %v2973 = vmul.f32 1.0, %v2972
    %v2975 = vrot.slane %v2850, 6
    %v2977 = vmul.f32 %v2966, %v2975
    %v2978 = vmul.f32 %v2960, %v2967
    %v2979 = vadd.f32 %v2977, %v2978
    %v2980 = vtanh.pop %v2979
    %v2981 = vmul.f32 %v2973, %v2980
    %v2982 = vld [vmem:[#allocation12] sm:$0x1]
    %v2984 = vlaneseq
    %v2985 = vshrl.u32 %v2984, 7
    %v2986 = vsub.s32 0, %v2985
    %v2987 = vrot.slane %v2982, %v2986
    %v2989 = vmul.f32 %v2981, %v2987
    %vm2990 = vcmask 1047558
    %v2991 = vsel %vm2990, %v2989, 0.0
    %2992 = vadd.xlane.f32.xlu0 %v2991
    %v2993 = vpop.xlane.xlu0 %2992
    %s2994 = sld [smem:[#allocation4]]
    %v2995 = vstv %s2994
    %v2996 = vadd.f32 %v2993, %v2995
    %vm2997 = vcmask 7174
    %2998 = vst.msk [vmem:[%s7 - $0x6] sm:$0xc0] %vm2997, %v2996
    // Predicated region
    $region46: #{bert_lstm_forward.1} parent=1 // pred_check
      _
    $region47: #{bert_lstm_forward.1} parent=1 // pred_check_branch
      %3000 = sbr.rel (0) target = $region49
    $region48: #{bert_lstm_forward.1} parent=1 // pred_region
      _
    $region49: #{bert_lstm_forward.1} parent=1 // pred_fallthru
      _
    // Predicated region
    $region50: #{bert_lstm_forward.1} parent=1 // pred_check
      _
    $region51: #{bert_lstm_forward.1} parent=1 // pred_check_branch
      %3002 = sbr.rel (0) target = $region53
    $region52: #{bert_lstm_forward.1} parent=1 // pred_region
      _
    $region53: #{bert_lstm_forward.1} parent=1 // pred_fallthru
      _
    %3003 = vsyncpa [#allocation6], 1
    %3004 = vsyncpa [#allocation10], 1
    %3005 = vsyncpa [#allocation13], 1
    %3006 = vsyncpa [#allocation7], 1
  %3007 = vsyncmov [#allocation3]
  %s3008 = vpop.sfrf %3007
  %p3009 = scmp.eq.s32.totalorder %s3008, 0
  %p3010 = pneg %p3009
  %3012 = shalt.err (%p3010)
  %s3013 = scalar_lea.sflag [#allocation3], 1
  %3014 = vsyncmov %s3013
  %s3015 = vpop.sfrf %3014
  %p3016 = scmp.eq.s32.totalorder %s3015, 0
  %p3017 = pneg %p3016
  %3019 = shalt.err (%p3017)
  %s3020 = scalar_lea.sflag [#allocation3], 2
  %3021 = vsyncmov %s3020
  %s3022 = vpop.sfrf %3021
  %p3023 = scmp.eq.s32.totalorder %s3022, 0
  %p3024 = pneg %p3023
  %3026 = shalt.err (%p3024)
  %s3027 = scalar_lea.sflag [#allocation3], 3
  %3028 = vsyncmov %s3027
  %s3029 = vpop.sfrf %3028
  %p3030 = scmp.eq.s32.totalorder %s3029, 0
  %p3031 = pneg %p3030
  %3033 = shalt.err (%p3031)
  %s3034 = scalar_lea.sflag [#allocation3], 4
  %3035 = vsyncmov %s3034
  %s3036 = vpop.sfrf %3035
  %p3037 = scmp.eq.s32.totalorder %s3036, 0
  %p3038 = pneg %p3037
  %3040 = shalt.err (%p3038)
  %s3041 = scalar_lea.sflag [#allocation3], 5
  %3042 = vsyncmov %s3041
  %s3043 = vpop.sfrf %3042
  %p3044 = scmp.eq.s32.totalorder %s3043, 0
  %p3045 = pneg %p3044
  %3047 = shalt.err (%p3045)
  %s3048 = scalar_lea.sflag [#allocation3], 6
  %3049 = vsyncmov %s3048
  %s3050 = vpop.sfrf %3049
  %p3051 = scmp.eq.s32.totalorder %s3050, 0
  %p3052 = pneg %p3051
  %3054 = shalt.err (%p3052)
  %s3055 = scalar_lea.sflag [#allocation3], 7
  %3056 = vsyncmov %s3055
  %s3057 = vpop.sfrf %3056
  %p3058 = scmp.eq.s32.totalorder %s3057, 0
  %p3059 = pneg %p3058
  %3061 = shalt.err (%p3059)
  %s3062 = scalar_lea.sflag [#allocation3], 8
  %3063 = vsyncmov %s3062
  %s3064 = vpop.sfrf %3063
  %p3065 = scmp.eq.s32.totalorder %s3064, 0
  %p3066 = pneg %p3065
  %3068 = shalt.err (%p3066)
  %s3069 = scalar_lea.sflag [#allocation3], 9
  %3070 = vsyncmov %s3069
  %s3071 = vpop.sfrf %3070
  %p3072 = scmp.eq.s32.totalorder %s3071, 0
  %p3073 = pneg %p3072
  %3075 = shalt.err (%p3073)
  %s3076 = scalar_lea.sflag [#allocation3], 10
  %3077 = vsyncmov %s3076
  %s3078 = vpop.sfrf %3077
  %p3079 = scmp.eq.s32.totalorder %s3078, 0
  %p3080 = pneg %p3079
  %3082 = shalt.err (%p3080)
  %s3083 = scalar_lea.sflag [#allocation3], 11
  %3084 = vsyncmov %s3083
  %s3085 = vpop.sfrf %3084
  %p3086 = scmp.eq.s32.totalorder %s3085, 0
  %p3087 = pneg %p3086
  %3089 = shalt.err (%p3087)
  %s3090 = scalar_lea.sflag [#allocation3], 12
  %3091 = vsyncmov %s3090
  %s3092 = vpop.sfrf %3091
  %p3093 = scmp.eq.s32.totalorder %s3092, 0
  %p3094 = pneg %p3093
  %3096 = shalt.err (%p3094)
  %s3097 = scalar_lea.sflag [#allocation3], 13
  %3098 = vsyncmov %s3097
  %s3099 = vpop.sfrf %3098
  %p3100 = scmp.eq.s32.totalorder %s3099, 0
  %p3101 = pneg %p3100
  %3103 = shalt.err (%p3101)
  %s3104 = scalar_lea.sflag [#allocation3], 14
  %3105 = vsyncmov %s3104
  %s3106 = vpop.sfrf %3105
  %p3107 = scmp.eq.s32.totalorder %s3106, 0
  %p3108 = pneg %p3107
  %3110 = shalt.err (%p3108)
  %s3111 = scalar_lea.sflag [#allocation3], 15
  %3112 = vsyncmov %s3111
  %s3113 = vpop.sfrf %3112
  %p3114 = scmp.eq.s32.totalorder %s3113, 0
  %p3115 = pneg %p3114
  %3117 = shalt.err (%p3115)

</llo_original>
